<compile_context>
chip_gen: v7x
topology: tpu7x:2x2x1
jax: 0.10.0
libtpu: 0.0.40
codegen_flags: <defaults>
</compile_context>

<pallas_src>
import functools
import math

import jax
import jax.numpy as jnp
from jax import lax
from jax.experimental import pallas as pl
from jax.experimental.pallas import tpu as pltpu


_LN_EPS = 1e-5
_MASK_VALUE = -1e30


def _erf(x):
    # Abramowitz & Stegun 7.1.26: max abs error ~1.5e-7 (adequate for f32).
    a1, a2, a3, a4, a5 = (0.254829592, -0.284496736, 1.421413741,
                          -1.453152027, 1.061405429)
    p = 0.3275911
    sign = jnp.where(x >= 0.0, 1.0, -1.0)
    ax = jnp.abs(x)
    t = 1.0 / (1.0 + p * ax)
    poly = t * (a1 + t * (a2 + t * (a3 + t * (a4 + t * a5))))
    return sign * (1.0 - poly * jnp.exp(-ax * ax))


def _gelu_exact(x):
    # nn.GELU() default: 0.5 * x * (1 + erf(x / sqrt(2))).
    return 0.5 * x * (1.0 + _erf(x * (1.0 / math.sqrt(2.0))))


def _layer_norm(x, gamma, beta):
    mu = jnp.mean(x, axis=-1, keepdims=True)
    xc = x - mu
    var = jnp.mean(xc * xc, axis=-1, keepdims=True)
    return xc * lax.rsqrt(var + _LN_EPS) * gamma + beta


def _decoder_block_kernel(n_heads,
                          x_ref,
                          w_qkv_ref, b_qkv_ref, w_out_ref, b_out_ref,
                          ln1_g_ref, ln1_b_ref,
                          w1_ref, b1_ref, w2_ref, b2_ref,
                          ln2_g_ref, ln2_b_ref,
                          out_ref):
    bt, seq, dim = x_ref.shape                       # (Bt, S, D) block
    head_dim = dim // n_heads
    rows = bt * seq
    scale = 1.0 / math.sqrt(head_dim)

    # Flatten to (Bt*S, D): every position-wise op runs on one tall MXU tile.
    x = x_ref[...].astype(jnp.float32).reshape(rows, dim)

    # ---- fused QKV projection: one lane-dense (D, 3D) matmul -----------------
    qkv = jnp.dot(x, w_qkv_ref[...],
                  preferred_element_type=jnp.float32) + b_qkv_ref[...]
    q = qkv[:, 0:dim]
    k = qkv[:, dim:2 * dim]
    v = qkv[:, 2 * dim:3 * dim]

    # ---- causal scores for every (sequence, head) pair (heads/seqs unrolled) -
    score_blocks = []
    for b in range(bt):
        r0 = b * seq
        qb = q[r0:r0 + seq, :]
        kb = k[r0:r0 + seq, :]
        for h in range(n_heads):
            c0 = h * head_dim
            qh = qb[:, c0:c0 + head_dim]
            kh = kb[:, c0:c0 + head_dim]
            # scores = q @ k^T / sqrt(head_dim)  (rhs-transposed, no relayout)
            s = lax.dot_general(qh, kh, (((1,), (1,)), ((), ())),
                                preferred_element_type=jnp.float32)
            score_blocks.append(s * scale)
    s_all = jnp.concatenate(score_blocks, axis=0)    # (Bt*H*S, S)

    # One fused masked softmax over all (b, h) blocks; divide -> reciprocal mul.
    row_q = lax.broadcasted_iota(jnp.int32, (seq, seq), 0)
    col_k = lax.broadcasted_iota(jnp.int32, (seq, seq), 1)
    allow = jnp.concatenate([col_k <= row_q] * (bt * n_heads), axis=0)
    s_all = jnp.where(allow, s_all, _MASK_VALUE)
    s_all = s_all - jnp.max(s_all, axis=-1, keepdims=True)
    p_all = jnp.exp(s_all)
    denom = jnp.sum(p_all, axis=-1, keepdims=True)
    p_all = p_all * pl.reciprocal(denom, approx=False)

    # ---- PV + head merge ------------------------------------------------------
    ctx_blocks = []
    for b in range(bt):
        r0 = b * seq
        vb = v[r0:r0 + seq, :]
        head_outs = []
        for h in range(n_heads):
            c0 = h * head_dim
            s0 = (b * n_heads + h) * seq
            ph = p_all[s0:s0 + seq, :]
            vh = vb[:, c0:c0 + head_dim]
            head_outs.append(jnp.dot(ph, vh, preferred_element_type=jnp.float32))
        ctx_blocks.append(jnp.concatenate(head_outs, axis=1))   # (S, D)
    ctx = jnp.concatenate(ctx_blocks, axis=0)                    # (Bt*S, D)

    # ---- fused out-projection (D, D) ------------------------------------------
    attn = jnp.dot(ctx, w_out_ref[...],
                   preferred_element_type=jnp.float32) + b_out_ref[...]

    a1 = _layer_norm(x + attn, ln1_g_ref[...], ln1_b_ref[...])

    # ---- feed-forward: Linear(D, 4D) -> GELU(exact) -> Linear(4D, D) ----------
    h1 = jnp.dot(a1, w1_ref[...], preferred_element_type=jnp.float32) + b1_ref[...]
    h1 = _gelu_exact(h1)
    h2 = jnp.dot(h1, w2_ref[...], preferred_element_type=jnp.float32) + b2_ref[...]

    out = _layer_norm(a1 + h2, ln2_g_ref[...], ln2_b_ref[...])
    out_ref[...] = out.reshape(bt, seq, dim).astype(out_ref.dtype)


_WEIGHT_NAMES = ("w_qkv", "b_qkv", "w_out", "b_out",
                 "ln1_g", "ln1_b", "w1", "b1", "w2", "b2", "ln2_g", "ln2_b")


def _pick_batch_tile(batch):
    """Sequences per grid step.

    Prefer exactly 2 grid steps (one per v7x TensorCore, marked "parallel");
    odd batches fall back to one sequence per step.
    """
    if batch >= 2 and batch % 2 == 0:
        return batch // 2
    return 1


def decoder_block_pallas(params, x, *, seq_major=True):
    """Fused DecoderBlock forward.

    seq_major=True : x is (seq, batch, dim), the PyTorch nn.MultiheadAttention
                     layout (transposed to batch-major outside the kernel).
    seq_major=False: x is (batch, seq, dim) and is consumed directly — no extra
                     HBM round-trip transposes.
    """
    x_bsd = jnp.transpose(x, (1, 0, 2)) if seq_major else x
    batch, seq, dim = x_bsd.shape
    n_heads = int(params["n_heads"])
    d_ff = params["w1"].shape[1]

    bt = _pick_batch_tile(batch)
    grid = (batch // bt,)
    weights = [params[name] for name in _WEIGHT_NAMES]

    # Advisory cost estimate for XLA's scheduler.
    flops = int(2 * batch * seq * dim * (3 * dim)      # fused QKV
                + 4 * batch * seq * seq * dim          # scores + PV
                + 2 * batch * seq * dim * dim          # out-proj
                + 4 * batch * seq * dim * d_ff)        # FFN
    transcendentals = int(batch * seq * d_ff + batch * n_heads * seq * seq)
    bytes_accessed = int(4 * (2 * x_bsd.size + sum(int(w.size) for w in weights)))

    # Whole weight arrays live in VMEM once (single-buffered, not pipelined).
    weight_spec = pl.BlockSpec(memory_space=pltpu.MemorySpace.VMEM)

    out_bsd = pl.pallas_call(
        functools.partial(_decoder_block_kernel, n_heads),
        grid=grid,
        in_specs=[pl.BlockSpec((bt, seq, dim), lambda b: (b, 0, 0))]
                 + [weight_spec] * len(weights),
        out_specs=pl.BlockSpec((bt, seq, dim), lambda b: (b, 0, 0)),
        out_shape=jax.ShapeDtypeStruct((batch, seq, dim), jnp.float32),
        compiler_params=pltpu.CompilerParams(
            dimension_semantics=("parallel",),
            # Tiny footprint here; re-derive against 64 MiB VMEM for v7x if
            # dim_model / the batch tile are scaled up.
            vmem_limit_bytes=32 * 1024 * 1024),
        cost_estimate=pl.CostEstimate(flops=flops,
                                      transcendentals=transcendentals,
                                      bytes_accessed=bytes_accessed),
    )(x_bsd, *weights)

    return jnp.transpose(out_bsd, (1, 0, 2)) if seq_major else out_bsd


def init_decoder_block_params(key, dim_model, n_heads):
    """Deterministic synthetic parameters with DecoderBlock's shapes.

    Attention weights are stored fused & transposed to (in_features, out_features):
    w_qkv == in_proj_weight.T, w_out == out_proj.weight.T, etc.
    """
    d_ff = 4 * dim_model
    ks = jax.random.split(key, 12)

    def unif(k, shape, fan_in):
        bound = 1.0 / math.sqrt(fan_in)
        return jax.random.uniform(k, shape, jnp.float32, -bound, bound)

    return {
        "n_heads": n_heads,
        "w_qkv": unif(ks[0], (dim_model, 3 * dim_model), dim_model),
        "b_qkv": unif(ks[1], (1, 3 * dim_model), dim_model),
        "w_out": unif(ks[2], (dim_model, dim_model), dim_model),
        "b_out": unif(ks[3], (1, dim_model), dim_model),
        "ln1_g": 1.0 + 0.1 * jax.random.normal(ks[4], (1, dim_model), jnp.float32),
        "ln1_b": 0.1 * jax.random.normal(ks[5], (1, dim_model), jnp.float32),
        "w1": unif(ks[6], (dim_model, d_ff), dim_model),
        "b1": unif(ks[7], (1, d_ff), dim_model),
        "w2": unif(ks[8], (d_ff, dim_model), d_ff),
        "b2": unif(ks[9], (1, dim_model), d_ff),
        "ln2_g": 1.0 + 0.1 * jax.random.normal(ks[10], (1, dim_model), jnp.float32),
        "ln2_b": 0.1 * jax.random.normal(ks[11], (1, dim_model), jnp.float32),
    }


def decoder_block_ref(params, x, *, seq_major=True):
    """Pure-JAX reference mirroring the PyTorch DecoderBlock (exact erf GELU)."""
    xb = (jnp.transpose(x, (1, 0, 2)) if seq_major else x).astype(jnp.float32)
    batch, seq, dim = xb.shape
    n_heads = int(params["n_heads"])
    head_dim = dim // n_heads
    hp = lax.Precision.HIGHEST

    qkv = jnp.einsum("bsd,de->bse", xb, params["w_qkv"], precision=hp) + params["b_qkv"]
    q, k, v = jnp.split(qkv, 3, axis=-1)

    def split_heads(t):
        return t.reshape(batch, seq, n_heads, head_dim).transpose(0, 2, 1, 3)

    q, k, v = split_heads(q), split_heads(k), split_heads(v)
    s = jnp.einsum("bhqc,bhkc->bhqk", q, k, precision=hp) / math.sqrt(head_dim)
    mask = jnp.triu(jnp.ones((seq, seq), bool), k=1)
    s = jnp.where(mask[None, None], -jnp.inf, s)
    p = jax.nn.softmax(s, axis=-1)
    o = jnp.einsum("bhqk,bhkc->bhqc", p, v, precision=hp)
    o = o.transpose(0, 2, 1, 3).reshape(batch, seq, dim)
    attn = jnp.einsum("bsd,de->bse", o, params["w_out"], precision=hp) + params["b_out"]

    a1 = _layer_norm(xb + attn, params["ln1_g"], params["ln1_b"])
    h1 = jnp.einsum("bsd,df->bsf", a1, params["w1"], precision=hp) + params["b1"]
    h1 = jax.nn.gelu(h1, approximate=False)
    h2 = jnp.einsum("bsf,fd->bsd", h1, params["w2"], precision=hp) + params["b2"]
    out = _layer_norm(a1 + h2, params["ln2_g"], params["ln2_b"])
    return jnp.transpose(out, (1, 0, 2)) if seq_major else out


if __name__ == "__main__":
    # Small config consistent with the grokking transformer defaults:
    # dim_model=128, n_heads=4 (head_dim=32), seq_len=8, batch=4.
    dim_model, n_heads, seq_len, batch = 128, 4, 8, 4

    key = jax.random.PRNGKey(0)
    pkey, xkey = jax.random.split(key)
    params = init_decoder_block_params(pkey, dim_model, n_heads)
    x_sbd = jax.random.normal(xkey, (seq_len, batch, dim_model), jnp.float32)

    # PyTorch-layout (seq, batch, dim) path.
    out = jax.block_until_ready(decoder_block_pallas(params, x_sbd))
    ref = jax.block_until_ready(decoder_block_ref(params, x_sbd))
    assert out.shape == (seq_len, batch, dim_model), out.shape
    assert jnp.allclose(out, ref, atol=1e-3, rtol=1e-3), (
        "Pallas DecoderBlock mismatch (seq-major), max abs diff = "
        + str(float(jnp.max(jnp.abs(out - ref)))))

    # Batch-major path: input is consumed directly, no wrapper transposes.
    x_bsd = jnp.transpose(x_sbd, (1, 0, 2))
    out_b = jax.block_until_ready(
        decoder_block_pallas(params, x_bsd, seq_major=False))
    assert jnp.allclose(out_b, jnp.transpose(ref, (1, 0, 2)),
                        atol=1e-3, rtol=1e-3), (
        "Pallas DecoderBlock mismatch (batch-major), max abs diff = "
        + str(float(jnp.max(jnp.abs(out_b - jnp.transpose(ref, (1, 0, 2)))))))

    print("KERNEL_OK")
</pallas_src>

<mosaic_0001>
module attributes {stable_mosaic.version = 11 : i64} {
  func.func @_decoder_block_kernel(%arg0: i32, %arg1: memref<2x8x128xf32, #tpu.memory_space<vmem>>, %arg2: memref<128x384xf32, #tpu.memory_space<vmem>>, %arg3: memref<1x384xf32, #tpu.memory_space<vmem>>, %arg4: memref<128x128xf32, #tpu.memory_space<vmem>>, %arg5: memref<1x128xf32, #tpu.memory_space<vmem>>, %arg6: memref<1x128xf32, #tpu.memory_space<vmem>>, %arg7: memref<1x128xf32, #tpu.memory_space<vmem>>, %arg8: memref<128x512xf32, #tpu.memory_space<vmem>>, %arg9: memref<1x512xf32, #tpu.memory_space<vmem>>, %arg10: memref<512x128xf32, #tpu.memory_space<vmem>>, %arg11: memref<1x128xf32, #tpu.memory_space<vmem>>, %arg12: memref<1x128xf32, #tpu.memory_space<vmem>>, %arg13: memref<1x128xf32, #tpu.memory_space<vmem>>, %arg14: memref<2x8x128xf32, #tpu.memory_space<vmem>>) attributes {dimension_semantics = [#tpu.dimension_semantics<parallel>], iteration_bounds = array<i64: 2>, scalar_prefetch = 0 : i64, scratch_operands = 0 : i64, tpu.core_type = #tpu.core_type<tc>, window_params = [{transform_indices = @transform_0, window_bounds = array<i64: 2, 8, 128>}, {pipeline_mode = #tpu.pipeline_mode<synchronous>, transform_indices = @transform_1, window_bounds = array<i64: 128, 384>}, {pipeline_mode = #tpu.pipeline_mode<synchronous>, transform_indices = @transform_2, window_bounds = array<i64: 1, 384>}, {pipeline_mode = #tpu.pipeline_mode<synchronous>, transform_indices = @transform_3, window_bounds = array<i64: 128, 128>}, {pipeline_mode = #tpu.pipeline_mode<synchronous>, transform_indices = @transform_4, window_bounds = array<i64: 1, 128>}, {pipeline_mode = #tpu.pipeline_mode<synchronous>, transform_indices = @transform_5, window_bounds = array<i64: 1, 128>}, {pipeline_mode = #tpu.pipeline_mode<synchronous>, transform_indices = @transform_6, window_bounds = array<i64: 1, 128>}, {pipeline_mode = #tpu.pipeline_mode<synchronous>, transform_indices = @transform_7, window_bounds = array<i64: 128, 512>}, {pipeline_mode = #tpu.pipeline_mode<synchronous>, transform_indices = @transform_8, window_bounds = array<i64: 1, 512>}, {pipeline_mode = #tpu.pipeline_mode<synchronous>, transform_indices = @transform_9, window_bounds = array<i64: 512, 128>}, {pipeline_mode = #tpu.pipeline_mode<synchronous>, transform_indices = @transform_10, window_bounds = array<i64: 1, 128>}, {pipeline_mode = #tpu.pipeline_mode<synchronous>, transform_indices = @transform_11, window_bounds = array<i64: 1, 128>}, {pipeline_mode = #tpu.pipeline_mode<synchronous>, transform_indices = @transform_12, window_bounds = array<i64: 1, 128>}, {transform_indices = @transform_13, window_bounds = array<i64: 2, 8, 128>}]} {
    %c0 = arith.constant 0 : index
    %c0_0 = arith.constant 0 : index
    %c0_1 = arith.constant 0 : index
    %0 = vector.load %arg1[%c0, %c0_0, %c0_1] : memref<2x8x128xf32, #tpu.memory_space<vmem>>, vector<2x8x128xf32>
    %1 = vector.shape_cast %0 : vector<2x8x128xf32> to vector<16x128xf32>
    %c0_2 = arith.constant 0 : index
    %c0_3 = arith.constant 0 : index
    %2 = vector.load %arg2[%c0_2, %c0_3] : memref<128x384xf32, #tpu.memory_space<vmem>>, vector<128x384xf32>
    %cst = arith.constant dense<0.000000e+00> : vector<16x384xf32>
    %3 = tpu.matmul %1, %2, %cst {dimension_numbers = #tpu.dot_dimension_numbers<[1], [0], [0], [1], [0, 0, 1, 1], [], []>} : vector<16x128xf32>, vector<128x384xf32>, vector<16x384xf32> -> vector<16x384xf32>
    %c0_4 = arith.constant 0 : index
    %c0_5 = arith.constant 0 : index
    %4 = vector.load %arg3[%c0_4, %c0_5] : memref<1x384xf32, #tpu.memory_space<vmem>>, vector<1x384xf32>
    %5 = vector.broadcast %4 : vector<1x384xf32> to vector<16x384xf32>
    %6 = arith.addf %3, %5 : vector<16x384xf32>
    %7 = vector.extract_strided_slice %6 {offsets = [0, 0], sizes = [16, 128], strides = [1, 1]} : vector<16x384xf32> to vector<16x128xf32>
    %8 = vector.extract_strided_slice %6 {offsets = [0, 128], sizes = [16, 128], strides = [1, 1]} : vector<16x384xf32> to vector<16x128xf32>
    %9 = vector.extract_strided_slice %6 {offsets = [0, 256], sizes = [16, 128], strides = [1, 1]} : vector<16x384xf32> to vector<16x128xf32>
    %10 = vector.extract_strided_slice %7 {offsets = [0, 0], sizes = [8, 128], strides = [1, 1]} : vector<16x128xf32> to vector<8x128xf32>
    %11 = vector.extract_strided_slice %8 {offsets = [0, 0], sizes = [8, 128], strides = [1, 1]} : vector<16x128xf32> to vector<8x128xf32>
    %12 = vector.extract_strided_slice %10 {offsets = [0, 0], sizes = [8, 32], strides = [1, 1]} : vector<8x128xf32> to vector<8x32xf32>
    %13 = vector.extract_strided_slice %11 {offsets = [0, 0], sizes = [8, 32], strides = [1, 1]} : vector<8x128xf32> to vector<8x32xf32>
    %cst_6 = arith.constant dense<0.000000e+00> : vector<8x8xf32>
    %14 = tpu.matmul %12, %13, %cst_6 {dimension_numbers = #tpu.dot_dimension_numbers<[1], [1], [0], [0], [0, 0, 1, 0], [], []>} : vector<8x32xf32>, vector<8x32xf32>, vector<8x8xf32> -> vector<8x8xf32>
    %cst_7 = arith.constant 0.176776692 : f32
    %15 = vector.broadcast %cst_7 : f32 to vector<8x8xf32>
    %16 = arith.mulf %14, %15 : vector<8x8xf32>
    %17 = vector.extract_strided_slice %10 {offsets = [0, 32], sizes = [8, 32], strides = [1, 1]} : vector<8x128xf32> to vector<8x32xf32>
    %18 = vector.extract_strided_slice %11 {offsets = [0, 32], sizes = [8, 32], strides = [1, 1]} : vector<8x128xf32> to vector<8x32xf32>
    %cst_8 = arith.constant dense<0.000000e+00> : vector<8x8xf32>
    %19 = tpu.matmul %17, %18, %cst_8 {dimension_numbers = #tpu.dot_dimension_numbers<[1], [1], [0], [0], [0, 0, 1, 0], [], []>} : vector<8x32xf32>, vector<8x32xf32>, vector<8x8xf32> -> vector<8x8xf32>
    %cst_9 = arith.constant 0.176776692 : f32
    %20 = vector.broadcast %cst_9 : f32 to vector<8x8xf32>
    %21 = arith.mulf %19, %20 : vector<8x8xf32>
    %22 = vector.extract_strided_slice %10 {offsets = [0, 64], sizes = [8, 32], strides = [1, 1]} : vector<8x128xf32> to vector<8x32xf32>
    %23 = vector.extract_strided_slice %11 {offsets = [0, 64], sizes = [8, 32], strides = [1, 1]} : vector<8x128xf32> to vector<8x32xf32>
    %cst_10 = arith.constant dense<0.000000e+00> : vector<8x8xf32>
    %24 = tpu.matmul %22, %23, %cst_10 {dimension_numbers = #tpu.dot_dimension_numbers<[1], [1], [0], [0], [0, 0, 1, 0], [], []>} : vector<8x32xf32>, vector<8x32xf32>, vector<8x8xf32> -> vector<8x8xf32>
    %cst_11 = arith.constant 0.176776692 : f32
    %25 = vector.broadcast %cst_11 : f32 to vector<8x8xf32>
    %26 = arith.mulf %24, %25 : vector<8x8xf32>
    %27 = vector.extract_strided_slice %10 {offsets = [0, 96], sizes = [8, 32], strides = [1, 1]} : vector<8x128xf32> to vector<8x32xf32>
    %28 = vector.extract_strided_slice %11 {offsets = [0, 96], sizes = [8, 32], strides = [1, 1]} : vector<8x128xf32> to vector<8x32xf32>
    %cst_12 = arith.constant dense<0.000000e+00> : vector<8x8xf32>
    %29 = tpu.matmul %27, %28, %cst_12 {dimension_numbers = #tpu.dot_dimension_numbers<[1], [1], [0], [0], [0, 0, 1, 0], [], []>} : vector<8x32xf32>, vector<8x32xf32>, vector<8x8xf32> -> vector<8x8xf32>
    %cst_13 = arith.constant 0.176776692 : f32
    %30 = vector.broadcast %cst_13 : f32 to vector<8x8xf32>
    %31 = arith.mulf %29, %30 : vector<8x8xf32>
    %32 = vector.extract_strided_slice %7 {offsets = [8, 0], sizes = [8, 128], strides = [1, 1]} : vector<16x128xf32> to vector<8x128xf32>
    %33 = vector.extract_strided_slice %8 {offsets = [8, 0], sizes = [8, 128], strides = [1, 1]} : vector<16x128xf32> to vector<8x128xf32>
    %34 = vector.extract_strided_slice %32 {offsets = [0, 0], sizes = [8, 32], strides = [1, 1]} : vector<8x128xf32> to vector<8x32xf32>
    %35 = vector.extract_strided_slice %33 {offsets = [0, 0], sizes = [8, 32], strides = [1, 1]} : vector<8x128xf32> to vector<8x32xf32>
    %cst_14 = arith.constant dense<0.000000e+00> : vector<8x8xf32>
    %36 = tpu.matmul %34, %35, %cst_14 {dimension_numbers = #tpu.dot_dimension_numbers<[1], [1], [0], [0], [0, 0, 1, 0], [], []>} : vector<8x32xf32>, vector<8x32xf32>, vector<8x8xf32> -> vector<8x8xf32>
    %cst_15 = arith.constant 0.176776692 : f32
    %37 = vector.broadcast %cst_15 : f32 to vector<8x8xf32>
    %38 = arith.mulf %36, %37 : vector<8x8xf32>
    %39 = vector.extract_strided_slice %32 {offsets = [0, 32], sizes = [8, 32], strides = [1, 1]} : vector<8x128xf32> to vector<8x32xf32>
    %40 = vector.extract_strided_slice %33 {offsets = [0, 32], sizes = [8, 32], strides = [1, 1]} : vector<8x128xf32> to vector<8x32xf32>
    %cst_16 = arith.constant dense<0.000000e+00> : vector<8x8xf32>
    %41 = tpu.matmul %39, %40, %cst_16 {dimension_numbers = #tpu.dot_dimension_numbers<[1], [1], [0], [0], [0, 0, 1, 0], [], []>} : vector<8x32xf32>, vector<8x32xf32>, vector<8x8xf32> -> vector<8x8xf32>
    %cst_17 = arith.constant 0.176776692 : f32
    %42 = vector.broadcast %cst_17 : f32 to vector<8x8xf32>
    %43 = arith.mulf %41, %42 : vector<8x8xf32>
    %44 = vector.extract_strided_slice %32 {offsets = [0, 64], sizes = [8, 32], strides = [1, 1]} : vector<8x128xf32> to vector<8x32xf32>
    %45 = vector.extract_strided_slice %33 {offsets = [0, 64], sizes = [8, 32], strides = [1, 1]} : vector<8x128xf32> to vector<8x32xf32>
    %cst_18 = arith.constant dense<0.000000e+00> : vector<8x8xf32>
    %46 = tpu.matmul %44, %45, %cst_18 {dimension_numbers = #tpu.dot_dimension_numbers<[1], [1], [0], [0], [0, 0, 1, 0], [], []>} : vector<8x32xf32>, vector<8x32xf32>, vector<8x8xf32> -> vector<8x8xf32>
    %cst_19 = arith.constant 0.176776692 : f32
    %47 = vector.broadcast %cst_19 : f32 to vector<8x8xf32>
    %48 = arith.mulf %46, %47 : vector<8x8xf32>
    %49 = vector.extract_strided_slice %32 {offsets = [0, 96], sizes = [8, 32], strides = [1, 1]} : vector<8x128xf32> to vector<8x32xf32>
    %50 = vector.extract_strided_slice %33 {offsets = [0, 96], sizes = [8, 32], strides = [1, 1]} : vector<8x128xf32> to vector<8x32xf32>
    %cst_20 = arith.constant dense<0.000000e+00> : vector<8x8xf32>
    %51 = tpu.matmul %49, %50, %cst_20 {dimension_numbers = #tpu.dot_dimension_numbers<[1], [1], [0], [0], [0, 0, 1, 0], [], []>} : vector<8x32xf32>, vector<8x32xf32>, vector<8x8xf32> -> vector<8x8xf32>
    %cst_21 = arith.constant 0.176776692 : f32
    %52 = vector.broadcast %cst_21 : f32 to vector<8x8xf32>
    %53 = arith.mulf %51, %52 : vector<8x8xf32>
    %54 = tpu.concatenate %16, %21, %26, %31, %38, %43, %48, %53 in 0 : vector<8x8xf32>, vector<8x8xf32>, vector<8x8xf32>, vector<8x8xf32>, vector<8x8xf32>, vector<8x8xf32>, vector<8x8xf32>, vector<8x8xf32> -> vector<64x8xf32>
    %55 = tpu.iota {dimensions = array<i32: 0>} : vector<8x8xi32>
    %56 = tpu.iota {dimensions = array<i32: 1>} : vector<8x8xi32>
    %57 = arith.cmpi sle, %56, %55 : vector<8x8xi32>
    %58 = tpu.concatenate %57, %57, %57, %57, %57, %57, %57, %57 in 0 : vector<8x8xi1>, vector<8x8xi1>, vector<8x8xi1>, vector<8x8xi1>, vector<8x8xi1>, vector<8x8xi1>, vector<8x8xi1>, vector<8x8xi1> -> vector<64x8xi1>
    %cst_22 = arith.constant -1.000000e+30 : f32
    %59 = vector.broadcast %cst_22 : f32 to vector<64x8xf32>
    %60 = arith.select %58, %54, %59 : vector<64x8xi1>, vector<64x8xf32>
    %cst_23 = arith.constant dense<0xFF800000> : vector<64xf32>
    %61 = vector.multi_reduction <maximumf>, %60, %cst_23 [1] : vector<64x8xf32> to vector<64xf32>
    %62 = vector.shape_cast %61 : vector<64xf32> to vector<64x1xf32>
    %63 = vector.broadcast %62 : vector<64x1xf32> to vector<64x8xf32>
    %64 = arith.subf %60, %63 : vector<64x8xf32>
    %65 = math.exp %64 : vector<64x8xf32>
    %cst_24 = arith.constant dense<0.000000e+00> : vector<64xf32>
    %66 = vector.multi_reduction <add>, %65, %cst_24 [1] : vector<64x8xf32> to vector<64xf32>
    %67 = vector.shape_cast %66 : vector<64xf32> to vector<64x1xf32>
    %68 = tpu.reciprocal %67 : vector<64x1xf32> -> vector<64x1xf32>
    %69 = vector.broadcast %68 : vector<64x1xf32> to vector<64x8xf32>
    %70 = arith.mulf %65, %69 : vector<64x8xf32>
    %71 = vector.extract_strided_slice %9 {offsets = [0, 0], sizes = [8, 128], strides = [1, 1]} : vector<16x128xf32> to vector<8x128xf32>
    %72 = vector.extract_strided_slice %70 {offsets = [0, 0], sizes = [8, 8], strides = [1, 1]} : vector<64x8xf32> to vector<8x8xf32>
    %73 = vector.extract_strided_slice %71 {offsets = [0, 0], sizes = [8, 32], strides = [1, 1]} : vector<8x128xf32> to vector<8x32xf32>
    %cst_25 = arith.constant dense<0.000000e+00> : vector<8x32xf32>
    %74 = tpu.matmul %72, %73, %cst_25 {dimension_numbers = #tpu.dot_dimension_numbers<[1], [0], [0], [1], [0, 0, 1, 1], [], []>} : vector<8x8xf32>, vector<8x32xf32>, vector<8x32xf32> -> vector<8x32xf32>
    %75 = vector.extract_strided_slice %70 {offsets = [8, 0], sizes = [8, 8], strides = [1, 1]} : vector<64x8xf32> to vector<8x8xf32>
    %76 = vector.extract_strided_slice %71 {offsets = [0, 32], sizes = [8, 32], strides = [1, 1]} : vector<8x128xf32> to vector<8x32xf32>
    %cst_26 = arith.constant dense<0.000000e+00> : vector<8x32xf32>
    %77 = tpu.matmul %75, %76, %cst_26 {dimension_numbers = #tpu.dot_dimension_numbers<[1], [0], [0], [1], [0, 0, 1, 1], [], []>} : vector<8x8xf32>, vector<8x32xf32>, vector<8x32xf32> -> vector<8x32xf32>
    %78 = vector.extract_strided_slice %70 {offsets = [16, 0], sizes = [8, 8], strides = [1, 1]} : vector<64x8xf32> to vector<8x8xf32>
    %79 = vector.extract_strided_slice %71 {offsets = [0, 64], sizes = [8, 32], strides = [1, 1]} : vector<8x128xf32> to vector<8x32xf32>
    %cst_27 = arith.constant dense<0.000000e+00> : vector<8x32xf32>
    %80 = tpu.matmul %78, %79, %cst_27 {dimension_numbers = #tpu.dot_dimension_numbers<[1], [0], [0], [1], [0, 0, 1, 1], [], []>} : vector<8x8xf32>, vector<8x32xf32>, vector<8x32xf32> -> vector<8x32xf32>
    %81 = vector.extract_strided_slice %70 {offsets = [24, 0], sizes = [8, 8], strides = [1, 1]} : vector<64x8xf32> to vector<8x8xf32>
    %82 = vector.extract_strided_slice %71 {offsets = [0, 96], sizes = [8, 32], strides = [1, 1]} : vector<8x128xf32> to vector<8x32xf32>
    %cst_28 = arith.constant dense<0.000000e+00> : vector<8x32xf32>
    %83 = tpu.matmul %81, %82, %cst_28 {dimension_numbers = #tpu.dot_dimension_numbers<[1], [0], [0], [1], [0, 0, 1, 1], [], []>} : vector<8x8xf32>, vector<8x32xf32>, vector<8x32xf32> -> vector<8x32xf32>
    %84 = tpu.concatenate %74, %77, %80, %83 in 1 : vector<8x32xf32>, vector<8x32xf32>, vector<8x32xf32>, vector<8x32xf32> -> vector<8x128xf32>
    %85 = vector.extract_strided_slice %9 {offsets = [8, 0], sizes = [8, 128], strides = [1, 1]} : vector<16x128xf32> to vector<8x128xf32>
    %86 = vector.extract_strided_slice %70 {offsets = [32, 0], sizes = [8, 8], strides = [1, 1]} : vector<64x8xf32> to vector<8x8xf32>
    %87 = vector.extract_strided_slice %85 {offsets = [0, 0], sizes = [8, 32], strides = [1, 1]} : vector<8x128xf32> to vector<8x32xf32>
    %cst_29 = arith.constant dense<0.000000e+00> : vector<8x32xf32>
    %88 = tpu.matmul %86, %87, %cst_29 {dimension_numbers = #tpu.dot_dimension_numbers<[1], [0], [0], [1], [0, 0, 1, 1], [], []>} : vector<8x8xf32>, vector<8x32xf32>, vector<8x32xf32> -> vector<8x32xf32>
    %89 = vector.extract_strided_slice %70 {offsets = [40, 0], sizes = [8, 8], strides = [1, 1]} : vector<64x8xf32> to vector<8x8xf32>
    %90 = vector.extract_strided_slice %85 {offsets = [0, 32], sizes = [8, 32], strides = [1, 1]} : vector<8x128xf32> to vector<8x32xf32>
    %cst_30 = arith.constant dense<0.000000e+00> : vector<8x32xf32>
    %91 = tpu.matmul %89, %90, %cst_30 {dimension_numbers = #tpu.dot_dimension_numbers<[1], [0], [0], [1], [0, 0, 1, 1], [], []>} : vector<8x8xf32>, vector<8x32xf32>, vector<8x32xf32> -> vector<8x32xf32>
    %92 = vector.extract_strided_slice %70 {offsets = [48, 0], sizes = [8, 8], strides = [1, 1]} : vector<64x8xf32> to vector<8x8xf32>
    %93 = vector.extract_strided_slice %85 {offsets = [0, 64], sizes = [8, 32], strides = [1, 1]} : vector<8x128xf32> to vector<8x32xf32>
    %cst_31 = arith.constant dense<0.000000e+00> : vector<8x32xf32>
    %94 = tpu.matmul %92, %93, %cst_31 {dimension_numbers = #tpu.dot_dimension_numbers<[1], [0], [0], [1], [0, 0, 1, 1], [], []>} : vector<8x8xf32>, vector<8x32xf32>, vector<8x32xf32> -> vector<8x32xf32>
    %95 = vector.extract_strided_slice %70 {offsets = [56, 0], sizes = [8, 8], strides = [1, 1]} : vector<64x8xf32> to vector<8x8xf32>
    %96 = vector.extract_strided_slice %85 {offsets = [0, 96], sizes = [8, 32], strides = [1, 1]} : vector<8x128xf32> to vector<8x32xf32>
    %cst_32 = arith.constant dense<0.000000e+00> : vector<8x32xf32>
    %97 = tpu.matmul %95, %96, %cst_32 {dimension_numbers = #tpu.dot_dimension_numbers<[1], [0], [0], [1], [0, 0, 1, 1], [], []>} : vector<8x8xf32>, vector<8x32xf32>, vector<8x32xf32> -> vector<8x32xf32>
    %98 = tpu.concatenate %88, %91, %94, %97 in 1 : vector<8x32xf32>, vector<8x32xf32>, vector<8x32xf32>, vector<8x32xf32> -> vector<8x128xf32>
    %99 = tpu.concatenate %84, %98 in 0 : vector<8x128xf32>, vector<8x128xf32> -> vector<16x128xf32>
    %c0_33 = arith.constant 0 : index
    %c0_34 = arith.constant 0 : index
    %100 = vector.load %arg4[%c0_33, %c0_34] : memref<128x128xf32, #tpu.memory_space<vmem>>, vector<128x128xf32>
    %cst_35 = arith.constant dense<0.000000e+00> : vector<16x128xf32>
    %101 = tpu.matmul %99, %100, %cst_35 {dimension_numbers = #tpu.dot_dimension_numbers<[1], [0], [0], [1], [0, 0, 1, 1], [], []>} : vector<16x128xf32>, vector<128x128xf32>, vector<16x128xf32> -> vector<16x128xf32>
    %c0_36 = arith.constant 0 : index
    %c0_37 = arith.constant 0 : index
    %102 = vector.load %arg5[%c0_36, %c0_37] : memref<1x128xf32, #tpu.memory_space<vmem>>, vector<1x128xf32>
    %103 = vector.broadcast %102 : vector<1x128xf32> to vector<16x128xf32>
    %104 = arith.addf %101, %103 : vector<16x128xf32>
    %105 = arith.addf %1, %104 : vector<16x128xf32>
    %c0_38 = arith.constant 0 : index
    %c0_39 = arith.constant 0 : index
    %106 = vector.load %arg6[%c0_38, %c0_39] : memref<1x128xf32, #tpu.memory_space<vmem>>, vector<1x128xf32>
    %c0_40 = arith.constant 0 : index
    %c0_41 = arith.constant 0 : index
    %107 = vector.load %arg7[%c0_40, %c0_41] : memref<1x128xf32, #tpu.memory_space<vmem>>, vector<1x128xf32>
    %cst_42 = arith.constant dense<0.000000e+00> : vector<16xf32>
    %108 = vector.multi_reduction <add>, %105, %cst_42 [1] : vector<16x128xf32> to vector<16xf32>
    %109 = vector.shape_cast %108 : vector<16xf32> to vector<16x1xf32>
    %cst_43 = arith.constant 1.280000e+02 : f32
    %110 = vector.broadcast %cst_43 : f32 to vector<16x1xf32>
    %111 = arith.divf %109, %110 : vector<16x1xf32>
    %112 = vector.broadcast %111 : vector<16x1xf32> to vector<16x128xf32>
    %113 = arith.subf %105, %112 : vector<16x128xf32>
    %114 = arith.mulf %113, %113 : vector<16x128xf32>
    %cst_44 = arith.constant dense<0.000000e+00> : vector<16xf32>
    %115 = vector.multi_reduction <add>, %114, %cst_44 [1] : vector<16x128xf32> to vector<16xf32>
    %116 = vector.shape_cast %115 : vector<16xf32> to vector<16x1xf32>
    %cst_45 = arith.constant 1.280000e+02 : f32
    %117 = vector.broadcast %cst_45 : f32 to vector<16x1xf32>
    %118 = arith.divf %116, %117 : vector<16x1xf32>
    %cst_46 = arith.constant 9.99999974E-6 : f32
    %119 = vector.broadcast %cst_46 : f32 to vector<16x1xf32>
    %120 = arith.addf %118, %119 : vector<16x1xf32>
    %121 = math.rsqrt %120 : vector<16x1xf32>
    %122 = vector.broadcast %121 : vector<16x1xf32> to vector<16x128xf32>
    %123 = arith.mulf %113, %122 : vector<16x128xf32>
    %124 = vector.broadcast %106 : vector<1x128xf32> to vector<16x128xf32>
    %125 = arith.mulf %123, %124 : vector<16x128xf32>
    %126 = vector.broadcast %107 : vector<1x128xf32> to vector<16x128xf32>
    %127 = arith.addf %125, %126 : vector<16x128xf32>
    %c0_47 = arith.constant 0 : index
    %c0_48 = arith.constant 0 : index
    %128 = vector.load %arg8[%c0_47, %c0_48] : memref<128x512xf32, #tpu.memory_space<vmem>>, vector<128x512xf32>
    %cst_49 = arith.constant dense<0.000000e+00> : vector<16x512xf32>
    %129 = tpu.matmul %127, %128, %cst_49 {dimension_numbers = #tpu.dot_dimension_numbers<[1], [0], [0], [1], [0, 0, 1, 1], [], []>} : vector<16x128xf32>, vector<128x512xf32>, vector<16x512xf32> -> vector<16x512xf32>
    %c0_50 = arith.constant 0 : index
    %c0_51 = arith.constant 0 : index
    %130 = vector.load %arg9[%c0_50, %c0_51] : memref<1x512xf32, #tpu.memory_space<vmem>>, vector<1x512xf32>
    %131 = vector.broadcast %130 : vector<1x512xf32> to vector<16x512xf32>
    %132 = arith.addf %129, %131 : vector<16x512xf32>
    %cst_52 = arith.constant 5.000000e-01 : f32
    %133 = vector.broadcast %cst_52 : f32 to vector<16x512xf32>
    %134 = arith.mulf %133, %132 : vector<16x512xf32>
    %cst_53 = arith.constant 0.707106769 : f32
    %135 = vector.broadcast %cst_53 : f32 to vector<16x512xf32>
    %136 = arith.mulf %132, %135 : vector<16x512xf32>
    %cst_54 = arith.constant 0.000000e+00 : f32
    %137 = vector.broadcast %cst_54 : f32 to vector<16x512xf32>
    %138 = arith.cmpf oge, %136, %137 : vector<16x512xf32>
    %cst_55 = arith.constant 1.000000e+00 : f32
    %cst_56 = arith.constant -1.000000e+00 : f32
    %139 = vector.broadcast %cst_55 : f32 to vector<16x512xf32>
    %140 = vector.broadcast %cst_56 : f32 to vector<16x512xf32>
    %141 = arith.select %138, %139, %140 : vector<16x512xi1>, vector<16x512xf32>
    %142 = math.absf %136 : vector<16x512xf32>
    %cst_57 = arith.constant 0.327591091 : f32
    %143 = vector.broadcast %cst_57 : f32 to vector<16x512xf32>
    %144 = arith.mulf %143, %142 : vector<16x512xf32>
    %cst_58 = arith.constant 1.000000e+00 : f32
    %145 = vector.broadcast %cst_58 : f32 to vector<16x512xf32>
    %146 = arith.addf %145, %144 : vector<16x512xf32>
    %cst_59 = arith.constant 1.000000e+00 : f32
    %147 = vector.broadcast %cst_59 : f32 to vector<16x512xf32>
    %148 = arith.divf %147, %146 : vector<16x512xf32>
    %cst_60 = arith.constant 1.06140542 : f32
    %149 = vector.broadcast %cst_60 : f32 to vector<16x512xf32>
    %150 = arith.mulf %148, %149 : vector<16x512xf32>
    %cst_61 = arith.constant -1.45315206 : f32
    %151 = vector.broadcast %cst_61 : f32 to vector<16x512xf32>
    %152 = arith.addf %151, %150 : vector<16x512xf32>
    %153 = arith.mulf %148, %152 : vector<16x512xf32>
    %cst_62 = arith.constant 1.42141378 : f32
    %154 = vector.broadcast %cst_62 : f32 to vector<16x512xf32>
    %155 = arith.addf %154, %153 : vector<16x512xf32>
    %156 = arith.mulf %148, %155 : vector<16x512xf32>
    %cst_63 = arith.constant -0.284496725 : f32
    %157 = vector.broadcast %cst_63 : f32 to vector<16x512xf32>
    %158 = arith.addf %157, %156 : vector<16x512xf32>
    %159 = arith.mulf %148, %158 : vector<16x512xf32>
    %cst_64 = arith.constant 0.254829586 : f32
    %160 = vector.broadcast %cst_64 : f32 to vector<16x512xf32>
    %161 = arith.addf %160, %159 : vector<16x512xf32>
    %162 = arith.mulf %148, %161 : vector<16x512xf32>
    %cst_65 = arith.constant 0.000000e+00 : f32
    %163 = vector.broadcast %cst_65 : f32 to vector<16x512xf32>
    %164 = arith.subf %163, %142 : vector<16x512xf32>
    %165 = arith.mulf %164, %142 : vector<16x512xf32>
    %166 = math.exp %165 : vector<16x512xf32>
    %167 = arith.mulf %162, %166 : vector<16x512xf32>
    %cst_66 = arith.constant 1.000000e+00 : f32
    %168 = vector.broadcast %cst_66 : f32 to vector<16x512xf32>
    %169 = arith.subf %168, %167 : vector<16x512xf32>
    %170 = arith.mulf %141, %169 : vector<16x512xf32>
    %cst_67 = arith.constant 1.000000e+00 : f32
    %171 = vector.broadcast %cst_67 : f32 to vector<16x512xf32>
    %172 = arith.addf %171, %170 : vector<16x512xf32>
    %173 = arith.mulf %134, %172 : vector<16x512xf32>
    %c0_68 = arith.constant 0 : index
    %c0_69 = arith.constant 0 : index
    %174 = vector.load %arg10[%c0_68, %c0_69] : memref<512x128xf32, #tpu.memory_space<vmem>>, vector<512x128xf32>
    %cst_70 = arith.constant dense<0.000000e+00> : vector<16x128xf32>
    %175 = tpu.matmul %173, %174, %cst_70 {dimension_numbers = #tpu.dot_dimension_numbers<[1], [0], [0], [1], [0, 0, 1, 1], [], []>} : vector<16x512xf32>, vector<512x128xf32>, vector<16x128xf32> -> vector<16x128xf32>
    %c0_71 = arith.constant 0 : index
    %c0_72 = arith.constant 0 : index
    %176 = vector.load %arg11[%c0_71, %c0_72] : memref<1x128xf32, #tpu.memory_space<vmem>>, vector<1x128xf32>
    %177 = vector.broadcast %176 : vector<1x128xf32> to vector<16x128xf32>
    %178 = arith.addf %175, %177 : vector<16x128xf32>
    %179 = arith.addf %127, %178 : vector<16x128xf32>
    %c0_73 = arith.constant 0 : index
    %c0_74 = arith.constant 0 : index
    %180 = vector.load %arg12[%c0_73, %c0_74] : memref<1x128xf32, #tpu.memory_space<vmem>>, vector<1x128xf32>
    %c0_75 = arith.constant 0 : index
    %c0_76 = arith.constant 0 : index
    %181 = vector.load %arg13[%c0_75, %c0_76] : memref<1x128xf32, #tpu.memory_space<vmem>>, vector<1x128xf32>
    %cst_77 = arith.constant dense<0.000000e+00> : vector<16xf32>
    %182 = vector.multi_reduction <add>, %179, %cst_77 [1] : vector<16x128xf32> to vector<16xf32>
    %183 = vector.shape_cast %182 : vector<16xf32> to vector<16x1xf32>
    %cst_78 = arith.constant 1.280000e+02 : f32
    %184 = vector.broadcast %cst_78 : f32 to vector<16x1xf32>
    %185 = arith.divf %183, %184 : vector<16x1xf32>
    %186 = vector.broadcast %185 : vector<16x1xf32> to vector<16x128xf32>
    %187 = arith.subf %179, %186 : vector<16x128xf32>
    %188 = arith.mulf %187, %187 : vector<16x128xf32>
    %cst_79 = arith.constant dense<0.000000e+00> : vector<16xf32>
    %189 = vector.multi_reduction <add>, %188, %cst_79 [1] : vector<16x128xf32> to vector<16xf32>
    %190 = vector.shape_cast %189 : vector<16xf32> to vector<16x1xf32>
    %cst_80 = arith.constant 1.280000e+02 : f32
    %191 = vector.broadcast %cst_80 : f32 to vector<16x1xf32>
    %192 = arith.divf %190, %191 : vector<16x1xf32>
    %cst_81 = arith.constant 9.99999974E-6 : f32
    %193 = vector.broadcast %cst_81 : f32 to vector<16x1xf32>
    %194 = arith.addf %192, %193 : vector<16x1xf32>
    %195 = math.rsqrt %194 : vector<16x1xf32>
    %196 = vector.broadcast %195 : vector<16x1xf32> to vector<16x128xf32>
    %197 = arith.mulf %187, %196 : vector<16x128xf32>
    %198 = vector.broadcast %180 : vector<1x128xf32> to vector<16x128xf32>
    %199 = arith.mulf %197, %198 : vector<16x128xf32>
    %200 = vector.broadcast %181 : vector<1x128xf32> to vector<16x128xf32>
    %201 = arith.addf %199, %200 : vector<16x128xf32>
    %202 = vector.shape_cast %201 : vector<16x128xf32> to vector<2x8x128xf32>
    %c0_82 = arith.constant 0 : index
    %c0_83 = arith.constant 0 : index
    %c0_84 = arith.constant 0 : index
    %203 = vector.load %arg14[%c0_82, %c0_83, %c0_84] : memref<2x8x128xf32, #tpu.memory_space<vmem>>, vector<2x8x128xf32>
    tpu.vector_store %arg14[%c0_82, %c0_83, %c0_84], %202 {strides = array<i32>} : memref<2x8x128xf32, #tpu.memory_space<vmem>>, vector<2x8x128xf32>,
    return
  }
  func.func @transform_0(%arg0: i32) -> (i32, i32, i32) {
    %c0_i32 = arith.constant 0 : i32
    %c0_i32_0 = arith.constant 0 : i32
    %c0_i32_1 = arith.constant 0 : i32
    return %arg0, %c0_i32, %c0_i32_0 : i32, i32, i32
  }
  func.func @transform_1(%arg0: i32) -> (i32, i32) {
    %c0_i32 = arith.constant 0 : i32
    %c0_i32_0 = arith.constant 0 : i32
    %c0_i32_1 = arith.constant 0 : i32
    return %c0_i32, %c0_i32_0 : i32, i32
  }
  func.func @transform_2(%arg0: i32) -> (i32, i32) {
    %c0_i32 = arith.constant 0 : i32
    %c0_i32_0 = arith.constant 0 : i32
    %c0_i32_1 = arith.constant 0 : i32
    return %c0_i32, %c0_i32_0 : i32, i32
  }
  func.func @transform_3(%arg0: i32) -> (i32, i32) {
    %c0_i32 = arith.constant 0 : i32
    %c0_i32_0 = arith.constant 0 : i32
    %c0_i32_1 = arith.constant 0 : i32
    return %c0_i32, %c0_i32_0 : i32, i32
  }
  func.func @transform_4(%arg0: i32) -> (i32, i32) {
    %c0_i32 = arith.constant 0 : i32
    %c0_i32_0 = arith.constant 0 : i32
    %c0_i32_1 = arith.constant 0 : i32
    return %c0_i32, %c0_i32_0 : i32, i32
  }
  func.func @transform_5(%arg0: i32) -> (i32, i32) {
    %c0_i32 = arith.constant 0 : i32
    %c0_i32_0 = arith.constant 0 : i32
    %c0_i32_1 = arith.constant 0 : i32
    return %c0_i32, %c0_i32_0 : i32, i32
  }
  func.func @transform_6(%arg0: i32) -> (i32, i32) {
    %c0_i32 = arith.constant 0 : i32
    %c0_i32_0 = arith.constant 0 : i32
    %c0_i32_1 = arith.constant 0 : i32
    return %c0_i32, %c0_i32_0 : i32, i32
  }
  func.func @transform_7(%arg0: i32) -> (i32, i32) {
    %c0_i32 = arith.constant 0 : i32
    %c0_i32_0 = arith.constant 0 : i32
    %c0_i32_1 = arith.constant 0 : i32
    return %c0_i32, %c0_i32_0 : i32, i32
  }
  func.func @transform_8(%arg0: i32) -> (i32, i32) {
    %c0_i32 = arith.constant 0 : i32
    %c0_i32_0 = arith.constant 0 : i32
    %c0_i32_1 = arith.constant 0 : i32
    return %c0_i32, %c0_i32_0 : i32, i32
  }
  func.func @transform_9(%arg0: i32) -> (i32, i32) {
    %c0_i32 = arith.constant 0 : i32
    %c0_i32_0 = arith.constant 0 : i32
    %c0_i32_1 = arith.constant 0 : i32
    return %c0_i32, %c0_i32_0 : i32, i32
  }
  func.func @transform_10(%arg0: i32) -> (i32, i32) {
    %c0_i32 = arith.constant 0 : i32
    %c0_i32_0 = arith.constant 0 : i32
    %c0_i32_1 = arith.constant 0 : i32
    return %c0_i32, %c0_i32_0 : i32, i32
  }
  func.func @transform_11(%arg0: i32) -> (i32, i32) {
    %c0_i32 = arith.constant 0 : i32
    %c0_i32_0 = arith.constant 0 : i32
    %c0_i32_1 = arith.constant 0 : i32
    return %c0_i32, %c0_i32_0 : i32, i32
  }
  func.func @transform_12(%arg0: i32) -> (i32, i32) {
    %c0_i32 = arith.constant 0 : i32
    %c0_i32_0 = arith.constant 0 : i32
    %c0_i32_1 = arith.constant 0 : i32
    return %c0_i32, %c0_i32_0 : i32, i32
  }
  func.func @transform_13(%arg0: i32) -> (i32, i32, i32) {
    %c0_i32 = arith.constant 0 : i32
    %c0_i32_0 = arith.constant 0 : i32
    %c0_i32_1 = arith.constant 0 : i32
    return %arg0, %c0_i32, %c0_i32_0 : i32, i32, i32
  }
}

</mosaic_0001>

<llo_original>
// kernel: tpu_custom_call.1
$region0: #{tpu_custom_call.1}
  #allocation0 [shape = 'u32[]', space=smem, size = 0x4, offset = 0x4, fixed_abs, tag = 'smem constant byte address 0x4 - core index']
  #allocation1 [shape = 'u32[144,128]{1,0:T(1,128)}', space=vmem, size = 0x12000, scoped, tag = 'internal scratch']
  %s0 = inlined_call_operand.hbm [shape: f32[4,8,128], index: 0, kind: input, shape index: {}]
  %s1 = inlined_call_operand.hbm [shape: f32[128,384], index: 1, kind: input, shape index: {}]
  %s2 = inlined_call_operand.vmem [shape: f32[1,384], index: 2, kind: input, shape index: {}]
  %s3 = inlined_call_operand.hbm [shape: f32[128,128], index: 3, kind: input, shape index: {}]
  %s4 = inlined_call_operand.vmem [shape: f32[1,128], index: 4, kind: input, shape index: {}]
  %s5 = inlined_call_operand.vmem [shape: f32[1,128], index: 5, kind: input, shape index: {}]
  %s6 = inlined_call_operand.vmem [shape: f32[1,128], index: 6, kind: input, shape index: {}]
  %s7 = inlined_call_operand.hbm [shape: f32[128,512], index: 7, kind: input, shape index: {}]
  %s8 = inlined_call_operand.vmem [shape: f32[1,512], index: 8, kind: input, shape index: {}]
  %s9 = inlined_call_operand.hbm [shape: f32[512,128], index: 9, kind: input, shape index: {}]
  %s10 = inlined_call_operand.vmem [shape: f32[1,128], index: 10, kind: input, shape index: {}]
  %s11 = inlined_call_operand.vmem [shape: f32[1,128], index: 11, kind: input, shape index: {}]
  %s12 = inlined_call_operand.vmem [shape: f32[1,128], index: 12, kind: input, shape index: {}]
  %s13 = inlined_call_operand.hbm [shape: f32[4,8,128], index: 13, kind: output, shape index: {}]
  %s14 = sld [smem:[#allocation0]]
  $region105: #{tpu_custom_call.1} parent=0
    _
  %s16 = ssub.s32 1, %s14
  %s17 = scalar_select 0, %s16, %s14
  $region1: #{tpu_custom_call.1} parent=0
    #allocation2 [shape = 'u8[16384]{0}', space=vmem, size = 0x4000, scoped, tag = 'input window, operand 0']
    #allocation3 [shape = 's32[2]{0}', space=sflag, size = 0x8, scoped, tag = 'scoped memory for tpu_custom_call.1']
    #allocation4 [shape = 's32[2]{0}', space=sflag, size = 0x8, scoped, tag = 'scoped memory for tpu_custom_call.1']
    #allocation5 [shape = 'u8[196608]{0}', space=vmem, size = 0x30000, scoped, tag = 'input window, operand 1, single buffered']
    #allocation6 [shape = 's32[1]{0}', space=sflag, size = 0x4, scoped, tag = 'scoped memory for tpu_custom_call.1']
    #allocation7 [shape = 'u8[65536]{0}', space=vmem, size = 0x10000, scoped, tag = 'input window, operand 3, single buffered']
    #allocation8 [shape = 'u8[262144]{0}', space=vmem, size = 0x40000, scoped, tag = 'input window, operand 7, single buffered']
    #allocation9 [shape = 's32[1]{0}', space=sflag, size = 0x4, scoped, tag = 'scoped memory for tpu_custom_call.1']
    #allocation10 [shape = 'u8[262144]{0}', space=vmem, size = 0x40000, scoped, tag = 'input window, operand 9, single buffered']
    #allocation11 [shape = 'u8[16384]{0}', space=vmem, size = 0x4000, scoped, tag = 'output window, operand 0']
    %18 = vsyncpa [#allocation3], 0
    %s19 = scalar_lea.sflag [#allocation3], 1
    %20 = vsyncpa %s19, 0
    %21 = vsyncpa [#allocation6], 0
    %22 = vsyncpa [#allocation9], 0
    %23 = vsyncpa [#allocation4], 0
    %s24 = scalar_lea.sflag [#allocation4], 1
    %25 = vsyncpa %s24, 0
    loop: start=0, step=1, limit=4
    $region2: #{tpu_custom_call.1} parent=1 // loop_pre_header
      _
    $region3: #{tpu_custom_call.1} parent=1 // loop_header
      %s27 = sphi 0, %s31
      %p28 = scmp.ge.s32.totalorder %s27, 4
      %s37 = sphi 0, %s39
      %s40 = sphi 0, %s37
      %s41 = sphi 0, %s40
      %s57 = sphi 0, %s41
      %s61 = sphi 0, %s61
      %s63 = sphi 0, %s61
      %s64 = sphi 0, %s63
      %s78 = sphi 0, %s64
      %s82 = sphi 0, %s82
      %s84 = sphi 0, %s82
      %s85 = sphi 0, %s84
      %s99 = sphi 0, %s85
      %s103 = sphi 0, %s103
      %s105 = sphi 0, %s103
      %s106 = sphi 0, %s105
      %s120 = sphi 0, %s106
      %s124 = sphi 0, %s124
      %s126 = sphi 0, %s124
      %s127 = sphi 0, %s126
      %s141 = sphi 0, %s127
      %s145 = sphi 0, %s145
      %s147 = sphi 0, %s145
      %s148 = sphi 0, %s147
      %s162 = sphi 0, %s148
      %s166 = sphi 0, %s166
      %s168 = sphi 0, %s166
      %s169 = sphi 0, %s168
      %s183 = sphi 0, %s169
      %s187 = sphi 0, %s187
      %s189 = sphi 0, %s187
      %s190 = sphi 0, %s189
      %s204 = sphi 0, %s190
      %s208 = sphi 0, %s208
      %s210 = sphi 0, %s208
      %s211 = sphi 0, %s210
      %s225 = sphi 0, %s211
      %s229 = sphi 0, %s229
      %s231 = sphi 0, %s229
      %s232 = sphi 0, %s231
      %s246 = sphi 0, %s232
      %s250 = sphi 0, %s250
      %s252 = sphi 0, %s250
      %s253 = sphi 0, %s252
      %s267 = sphi 0, %s253
      %s271 = sphi 0, %s271
      %s273 = sphi 0, %s271
      %s274 = sphi 0, %s273
      %s288 = sphi 0, %s274
      %s292 = sphi 0, %s292
      %s294 = sphi 0, %s292
      %s295 = sphi 0, %s294
      %s309 = sphi 0, %s295
      %s315 = sphi 0, %s317
      %s318 = sphi 0, %s315
      %s319 = sphi 0, %s318
      %s335 = sphi 0, %s319
    $region4: #{tpu_custom_call.1} parent=1 // loop_header_branch
      %30 = sbr.rel (%p28) target = $region8
    $region5: #{tpu_custom_call.1} parent=1 // loop_body
      %s32 = ssub.s32 %s27, 1
      %s33 = ssub.s32 %s27, 2
      %s34 = sadd.s32 %s27, 1
      %s35 = ssub.s32 %s27, %s34
      %p36 = scmp.eq.s32.totalorder %s35, 0
      %s38 = sadd.s32 %s37, 1
      %s39 = scalar_select %p36, %s37, %s38
      %p42 = pneg %p36
      %p43 = scmp.eq.s32.totalorder %s27, 1
      %p44 = por %p42, %p43
      %p45 = scmp.ne.s32.totalorder %s37, %s40
      %p46 = scmp.eq.s32.totalorder %s27, 0
      %p47 = por %p45, %p46
      %p48 = scmp.ne.s32.totalorder %s37, %s40
      %p49 = scmp.eq.s32.totalorder %s32, 1
      %p50 = por %p48, %p49
      %p51 = scmp.ne.s32.totalorder %s40, %s41
      %p52 = scmp.eq.s32.totalorder %s32, 0
      %p53 = por %p51, %p52
      %p54 = scmp.ne.s32.totalorder %s40, %s41
      %p55 = scmp.eq.s32.totalorder %s33, 1
      %p56 = por %p54, %p55
      %p58 = scmp.ne.s32.totalorder %s41, %s57
      %p59 = scmp.eq.s32.totalorder %s33, 0
      %p60 = por %p58, %p59
      %s62 = sadd.s32 %s61, 1
      %p65 = scmp.eq.s32.totalorder %s27, 1
      %p66 = scmp.ne.s32.totalorder %s61, %s63
      %p67 = scmp.eq.s32.totalorder %s27, 0
      %p68 = por %p66, %p67
      %p69 = scmp.ne.s32.totalorder %s61, %s63
      %p70 = scmp.eq.s32.totalorder %s32, 1
      %p71 = por %p69, %p70
      %p72 = scmp.ne.s32.totalorder %s63, %s64
      %p73 = scmp.eq.s32.totalorder %s32, 0
      %p74 = por %p72, %p73
      %p75 = scmp.ne.s32.totalorder %s63, %s64
      %p76 = scmp.eq.s32.totalorder %s33, 1
      %p77 = por %p75, %p76
      %p79 = scmp.ne.s32.totalorder %s64, %s78
      %p80 = scmp.eq.s32.totalorder %s33, 0
      %p81 = por %p79, %p80
      %s83 = sadd.s32 %s82, 1
      %p86 = scmp.eq.s32.totalorder %s27, 1
      %p87 = scmp.ne.s32.totalorder %s82, %s84
      %p88 = scmp.eq.s32.totalorder %s27, 0
      %p89 = por %p87, %p88
      %p90 = scmp.ne.s32.totalorder %s82, %s84
      %p91 = scmp.eq.s32.totalorder %s32, 1
      %p92 = por %p90, %p91
      %p93 = scmp.ne.s32.totalorder %s84, %s85
      %p94 = scmp.eq.s32.totalorder %s32, 0
      %p95 = por %p93, %p94
      %p96 = scmp.ne.s32.totalorder %s84, %s85
      %p97 = scmp.eq.s32.totalorder %s33, 1
      %p98 = por %p96, %p97
      %p100 = scmp.ne.s32.totalorder %s85, %s99
      %p101 = scmp.eq.s32.totalorder %s33, 0
      %p102 = por %p100, %p101
      %s104 = sadd.s32 %s103, 1
      %p107 = scmp.eq.s32.totalorder %s27, 1
      %p108 = scmp.ne.s32.totalorder %s103, %s105
      %p109 = scmp.eq.s32.totalorder %s27, 0
      %p110 = por %p108, %p109
      %p111 = scmp.ne.s32.totalorder %s103, %s105
      %p112 = scmp.eq.s32.totalorder %s32, 1
      %p113 = por %p111, %p112
      %p114 = scmp.ne.s32.totalorder %s105, %s106
      %p115 = scmp.eq.s32.totalorder %s32, 0
      %p116 = por %p114, %p115
      %p117 = scmp.ne.s32.totalorder %s105, %s106
      %p118 = scmp.eq.s32.totalorder %s33, 1
      %p119 = por %p117, %p118
      %p121 = scmp.ne.s32.totalorder %s106, %s120
      %p122 = scmp.eq.s32.totalorder %s33, 0
      %p123 = por %p121, %p122
      %s125 = sadd.s32 %s124, 1
      %p128 = scmp.eq.s32.totalorder %s27, 1
      %p129 = scmp.ne.s32.totalorder %s124, %s126
      %p130 = scmp.eq.s32.totalorder %s27, 0
      %p131 = por %p129, %p130
      %p132 = scmp.ne.s32.totalorder %s124, %s126
      %p133 = scmp.eq.s32.totalorder %s32, 1
      %p134 = por %p132, %p133
      %p135 = scmp.ne.s32.totalorder %s126, %s127
      %p136 = scmp.eq.s32.totalorder %s32, 0
      %p137 = por %p135, %p136
      %p138 = scmp.ne.s32.totalorder %s126, %s127
      %p139 = scmp.eq.s32.totalorder %s33, 1
      %p140 = por %p138, %p139
      %p142 = scmp.ne.s32.totalorder %s127, %s141
      %p143 = scmp.eq.s32.totalorder %s33, 0
      %p144 = por %p142, %p143
      %s146 = sadd.s32 %s145, 1
      %p149 = scmp.eq.s32.totalorder %s27, 1
      %p150 = scmp.ne.s32.totalorder %s145, %s147
      %p151 = scmp.eq.s32.totalorder %s27, 0
      %p152 = por %p150, %p151
      %p153 = scmp.ne.s32.totalorder %s145, %s147
      %p154 = scmp.eq.s32.totalorder %s32, 1
      %p155 = por %p153, %p154
      %p156 = scmp.ne.s32.totalorder %s147, %s148
      %p157 = scmp.eq.s32.totalorder %s32, 0
      %p158 = por %p156, %p157
      %p159 = scmp.ne.s32.totalorder %s147, %s148
      %p160 = scmp.eq.s32.totalorder %s33, 1
      %p161 = por %p159, %p160
      %p163 = scmp.ne.s32.totalorder %s148, %s162
      %p164 = scmp.eq.s32.totalorder %s33, 0
      %p165 = por %p163, %p164
      %s167 = sadd.s32 %s166, 1
      %p170 = scmp.eq.s32.totalorder %s27, 1
      %p171 = scmp.ne.s32.totalorder %s166, %s168
      %p172 = scmp.eq.s32.totalorder %s27, 0
      %p173 = por %p171, %p172
      %p174 = scmp.ne.s32.totalorder %s166, %s168
      %p175 = scmp.eq.s32.totalorder %s32, 1
      %p176 = por %p174, %p175
      %p177 = scmp.ne.s32.totalorder %s168, %s169
      %p178 = scmp.eq.s32.totalorder %s32, 0
      %p179 = por %p177, %p178
      %p180 = scmp.ne.s32.totalorder %s168, %s169
      %p181 = scmp.eq.s32.totalorder %s33, 1
      %p182 = por %p180, %p181
      %p184 = scmp.ne.s32.totalorder %s169, %s183
      %p185 = scmp.eq.s32.totalorder %s33, 0
      %p186 = por %p184, %p185
      %s188 = sadd.s32 %s187, 1
      %p191 = scmp.eq.s32.totalorder %s27, 1
      %p192 = scmp.ne.s32.totalorder %s187, %s189
      %p193 = scmp.eq.s32.totalorder %s27, 0
      %p194 = por %p192, %p193
      %p195 = scmp.ne.s32.totalorder %s187, %s189
      %p196 = scmp.eq.s32.totalorder %s32, 1
      %p197 = por %p195, %p196
      %p198 = scmp.ne.s32.totalorder %s189, %s190
      %p199 = scmp.eq.s32.totalorder %s32, 0
      %p200 = por %p198, %p199
      %p201 = scmp.ne.s32.totalorder %s189, %s190
      %p202 = scmp.eq.s32.totalorder %s33, 1
      %p203 = por %p201, %p202
      %p205 = scmp.ne.s32.totalorder %s190, %s204
      %p206 = scmp.eq.s32.totalorder %s33, 0
      %p207 = por %p205, %p206
      %s209 = sadd.s32 %s208, 1
      %p212 = scmp.eq.s32.totalorder %s27, 1
      %p213 = scmp.ne.s32.totalorder %s208, %s210
      %p214 = scmp.eq.s32.totalorder %s27, 0
      %p215 = por %p213, %p214
      %p216 = scmp.ne.s32.totalorder %s208, %s210
      %p217 = scmp.eq.s32.totalorder %s32, 1
      %p218 = por %p216, %p217
      %p219 = scmp.ne.s32.totalorder %s210, %s211
      %p220 = scmp.eq.s32.totalorder %s32, 0
      %p221 = por %p219, %p220
      %p222 = scmp.ne.s32.totalorder %s210, %s211
      %p223 = scmp.eq.s32.totalorder %s33, 1
      %p224 = por %p222, %p223
      %p226 = scmp.ne.s32.totalorder %s211, %s225
      %p227 = scmp.eq.s32.totalorder %s33, 0
      %p228 = por %p226, %p227
      %s230 = sadd.s32 %s229, 1
      %p233 = scmp.eq.s32.totalorder %s27, 1
      %p234 = scmp.ne.s32.totalorder %s229, %s231
      %p235 = scmp.eq.s32.totalorder %s27, 0
      %p236 = por %p234, %p235
      %p237 = scmp.ne.s32.totalorder %s229, %s231
      %p238 = scmp.eq.s32.totalorder %s32, 1
      %p239 = por %p237, %p238
      %p240 = scmp.ne.s32.totalorder %s231, %s232
      %p241 = scmp.eq.s32.totalorder %s32, 0
      %p242 = por %p240, %p241
      %p243 = scmp.ne.s32.totalorder %s231, %s232
      %p244 = scmp.eq.s32.totalorder %s33, 1
      %p245 = por %p243, %p244
      %p247 = scmp.ne.s32.totalorder %s232, %s246
      %p248 = scmp.eq.s32.totalorder %s33, 0
      %p249 = por %p247, %p248
      %s251 = sadd.s32 %s250, 1
      %p254 = scmp.eq.s32.totalorder %s27, 1
      %p255 = scmp.ne.s32.totalorder %s250, %s252
      %p256 = scmp.eq.s32.totalorder %s27, 0
      %p257 = por %p255, %p256
      %p258 = scmp.ne.s32.totalorder %s250, %s252
      %p259 = scmp.eq.s32.totalorder %s32, 1
      %p260 = por %p258, %p259
      %p261 = scmp.ne.s32.totalorder %s252, %s253
      %p262 = scmp.eq.s32.totalorder %s32, 0
      %p263 = por %p261, %p262
      %p264 = scmp.ne.s32.totalorder %s252, %s253
      %p265 = scmp.eq.s32.totalorder %s33, 1
      %p266 = por %p264, %p265
      %p268 = scmp.ne.s32.totalorder %s253, %s267
      %p269 = scmp.eq.s32.totalorder %s33, 0
      %p270 = por %p268, %p269
      %s272 = sadd.s32 %s271, 1
      %p275 = scmp.eq.s32.totalorder %s27, 1
      %p276 = scmp.ne.s32.totalorder %s271, %s273
      %p277 = scmp.eq.s32.totalorder %s27, 0
      %p278 = por %p276, %p277
      %p279 = scmp.ne.s32.totalorder %s271, %s273
      %p280 = scmp.eq.s32.totalorder %s32, 1
      %p281 = por %p279, %p280
      %p282 = scmp.ne.s32.totalorder %s273, %s274
      %p283 = scmp.eq.s32.totalorder %s32, 0
      %p284 = por %p282, %p283
      %p285 = scmp.ne.s32.totalorder %s273, %s274
      %p286 = scmp.eq.s32.totalorder %s33, 1
      %p287 = por %p285, %p286
      %p289 = scmp.ne.s32.totalorder %s274, %s288
      %p290 = scmp.eq.s32.totalorder %s33, 0
      %p291 = por %p289, %p290
      %s293 = sadd.s32 %s292, 1
      %p296 = scmp.eq.s32.totalorder %s27, 1
      %p297 = scmp.ne.s32.totalorder %s292, %s294
      %p298 = scmp.eq.s32.totalorder %s27, 0
      %p299 = por %p297, %p298
      %p300 = scmp.ne.s32.totalorder %s292, %s294
      %p301 = scmp.eq.s32.totalorder %s32, 1
      %p302 = por %p300, %p301
      %p303 = scmp.ne.s32.totalorder %s294, %s295
      %p304 = scmp.eq.s32.totalorder %s32, 0
      %p305 = por %p303, %p304
      %p306 = scmp.ne.s32.totalorder %s294, %s295
      %p307 = scmp.eq.s32.totalorder %s33, 1
      %p308 = por %p306, %p307
      %p310 = scmp.ne.s32.totalorder %s295, %s309
      %p311 = scmp.eq.s32.totalorder %s33, 0
      %p312 = por %p310, %p311
      %s313 = ssub.s32 %s27, %s34
      %p314 = scmp.eq.s32.totalorder %s313, 0
      %s316 = sadd.s32 %s315, 1
      %s317 = scalar_select %p314, %s315, %s316
      %p320 = pneg %p314
      %p321 = scmp.eq.s32.totalorder %s27, 1
      %p322 = por %p320, %p321
      %p323 = scmp.ne.s32.totalorder %s315, %s318
      %p324 = scmp.eq.s32.totalorder %s27, 0
      %p325 = por %p323, %p324
      %p326 = scmp.ne.s32.totalorder %s315, %s318
      %p327 = scmp.eq.s32.totalorder %s32, 1
      %p328 = por %p326, %p327
      %p329 = scmp.ne.s32.totalorder %s318, %s319
      %p330 = scmp.eq.s32.totalorder %s32, 0
      %p331 = por %p329, %p330
      %p332 = scmp.ne.s32.totalorder %s318, %s319
      %p333 = scmp.eq.s32.totalorder %s33, 1
      %p334 = por %p332, %p333
      %p336 = scmp.ne.s32.totalorder %s319, %s335
      %p337 = scmp.eq.s32.totalorder %s33, 0
      %p338 = por %p336, %p337
      %p339 = scmp.le.s32.totalorder 1, %s27
      %p340 = scmp.lt.s32.totalorder %s27, 3
      %p341 = pnand %p339, %p340
      %p342 = pneg %p341
      // Predicated region
      $region9: #{tpu_custom_call.1} parent=5 // pred_check
        _
      $region10: #{tpu_custom_call.1} parent=5 // pred_check_branch
        %344 = sbr.rel (%p341) target = $region12
      $region11: #{tpu_custom_call.1} parent=5 // pred_region
        %s345 = ssub.s32 %s27, 1
        // Predicated region
        $region13: #{tpu_custom_call.1} parent=11 // pred_check
          %p346 = pneg %p74
        $region14: #{tpu_custom_call.1} parent=11 // pred_check_branch
          %348 = sbr.rel (%p346) target = $region16
        $region15: #{tpu_custom_call.1} parent=11 // pred_region
          %s350 = ssub.s32 6144, 6144
          %351 = vsyncadd [#allocation6], %s350
          %s352 = sshll.u32 [#allocation5], 4
          %s353 = int_to_ptr.vmem [resolvable:$true] %s352
          %358 = dma.hbm_to_vmem [thread:$0]  %s1, 6144, %s353, [#allocation6], 384, 384, 24
        $region16: #{tpu_custom_call.1} parent=11 // pred_fallthru
          _
        // Predicated region
        $region17: #{tpu_custom_call.1} parent=11 // pred_check
          %p359 = pneg %p95
        $region18: #{tpu_custom_call.1} parent=11 // pred_check_branch
          %361 = sbr.rel (%p359) target = $region20
        $region19: #{tpu_custom_call.1} parent=11 // pred_region
          _
        $region20: #{tpu_custom_call.1} parent=11 // pred_fallthru
          _
        // Predicated region
        $region21: #{tpu_custom_call.1} parent=11 // pred_check
          %p362 = pneg %p116
        $region22: #{tpu_custom_call.1} parent=11 // pred_check_branch
          %364 = sbr.rel (%p362) target = $region24
        $region23: #{tpu_custom_call.1} parent=11 // pred_region
          %s366 = ssub.s32 2048, 2048
          %367 = vsyncadd [#allocation6], %s366
          %s368 = sshll.u32 [#allocation7], 4
          %s369 = int_to_ptr.vmem [resolvable:$true] %s368
          %374 = dma.hbm_to_vmem [thread:$0]  %s3, 2048, %s369, [#allocation6], 128, 128, 8
        $region24: #{tpu_custom_call.1} parent=11 // pred_fallthru
          _
        // Predicated region
        $region25: #{tpu_custom_call.1} parent=11 // pred_check
          %p375 = pneg %p137
        $region26: #{tpu_custom_call.1} parent=11 // pred_check_branch
          %377 = sbr.rel (%p375) target = $region28
        $region27: #{tpu_custom_call.1} parent=11 // pred_region
          _
        $region28: #{tpu_custom_call.1} parent=11 // pred_fallthru
          _
        // Predicated region
        $region29: #{tpu_custom_call.1} parent=11 // pred_check
          %p378 = pneg %p158
        $region30: #{tpu_custom_call.1} parent=11 // pred_check_branch
          %380 = sbr.rel (%p378) target = $region32
        $region31: #{tpu_custom_call.1} parent=11 // pred_region
          _
        $region32: #{tpu_custom_call.1} parent=11 // pred_fallthru
          _
        // Predicated region
        $region33: #{tpu_custom_call.1} parent=11 // pred_check
          %p381 = pneg %p179
        $region34: #{tpu_custom_call.1} parent=11 // pred_check_branch
          %383 = sbr.rel (%p381) target = $region36
        $region35: #{tpu_custom_call.1} parent=11 // pred_region
          _
        $region36: #{tpu_custom_call.1} parent=11 // pred_fallthru
          _
        // Predicated region
        $region37: #{tpu_custom_call.1} parent=11 // pred_check
          %p384 = pneg %p200
        $region38: #{tpu_custom_call.1} parent=11 // pred_check_branch
          %386 = sbr.rel (%p384) target = $region40
        $region39: #{tpu_custom_call.1} parent=11 // pred_region
          %s388 = ssub.s32 8192, 8192
          %389 = vsyncadd [#allocation9], %s388
          %s390 = sshll.u32 [#allocation8], 4
          %s391 = int_to_ptr.vmem [resolvable:$true] %s390
          %396 = dma.hbm_to_vmem [thread:$0]  %s7, 8192, %s391, [#allocation9], 512, 512, 32
        $region40: #{tpu_custom_call.1} parent=11 // pred_fallthru
          _
        // Predicated region
        $region41: #{tpu_custom_call.1} parent=11 // pred_check
          %p397 = pneg %p221
        $region42: #{tpu_custom_call.1} parent=11 // pred_check_branch
          %399 = sbr.rel (%p397) target = $region44
        $region43: #{tpu_custom_call.1} parent=11 // pred_region
          _
        $region44: #{tpu_custom_call.1} parent=11 // pred_fallthru
          _
        // Predicated region
        $region45: #{tpu_custom_call.1} parent=11 // pred_check
          %p400 = pneg %p242
        $region46: #{tpu_custom_call.1} parent=11 // pred_check_branch
          %402 = sbr.rel (%p400) target = $region48
        $region47: #{tpu_custom_call.1} parent=11 // pred_region
          %s404 = ssub.s32 8192, 8192
          %405 = vsyncadd [#allocation9], %s404
          %s406 = sshll.u32 [#allocation10], 4
          %s407 = int_to_ptr.vmem [resolvable:$true] %s406
          %412 = dma.hbm_to_vmem [thread:$0]  %s9, 8192, %s407, [#allocation9], 128, 128, 8
        $region48: #{tpu_custom_call.1} parent=11 // pred_fallthru
          _
        // Predicated region
        $region49: #{tpu_custom_call.1} parent=11 // pred_check
          %p413 = pneg %p263
        $region50: #{tpu_custom_call.1} parent=11 // pred_check_branch
          %415 = sbr.rel (%p413) target = $region52
        $region51: #{tpu_custom_call.1} parent=11 // pred_region
          _
        $region52: #{tpu_custom_call.1} parent=11 // pred_fallthru
          _
        // Predicated region
        $region53: #{tpu_custom_call.1} parent=11 // pred_check
          %p416 = pneg %p284
        $region54: #{tpu_custom_call.1} parent=11 // pred_check_branch
          %418 = sbr.rel (%p416) target = $region56
        $region55: #{tpu_custom_call.1} parent=11 // pred_region
          _
        $region56: #{tpu_custom_call.1} parent=11 // pred_fallthru
          _
        // Predicated region
        $region57: #{tpu_custom_call.1} parent=11 // pred_check
          %p419 = pneg %p305
        $region58: #{tpu_custom_call.1} parent=11 // pred_check_branch
          %421 = sbr.rel (%p419) target = $region60
        $region59: #{tpu_custom_call.1} parent=11 // pred_region
          _
        $region60: #{tpu_custom_call.1} parent=11 // pred_fallthru
          _
      $region12: #{tpu_custom_call.1} parent=5 // pred_fallthru
        _
      %p422 = scmp.lt.s32.totalorder %s27, 2
      // Predicated region
      $region61: #{tpu_custom_call.1} parent=5 // pred_check
        %p423 = pneg %p422
      $region62: #{tpu_custom_call.1} parent=5 // pred_check_branch
        %425 = sbr.rel (%p423) target = $region64
      $region63: #{tpu_custom_call.1} parent=5 // pred_region
        // Predicated region
        $region65: #{tpu_custom_call.1} parent=63 // pred_check
          %p426 = pneg %p47
        $region66: #{tpu_custom_call.1} parent=63 // pred_check_branch
          %428 = sbr.rel (%p426) target = $region68
        $region67: #{tpu_custom_call.1} parent=63 // pred_region
          %s429 = sand.u32 %s37, 1
          %s430 = scalar_lea.sflag [#allocation3], %s429
          %s431 = sand.u32 %s37, 1
          %s432 = smul.addr %s431, 16
          %s433 = scalar_lea.vmem [#allocation2], %s432
          %s434 = smul.u32 2, %s27
          %s436 = ssub.s32 256, 256
          %437 = vsyncadd %s430, %s436
          %s438 = smul.addr %s434, 128
          %s439 = scalar_lea.hbm %s0, %s438
          %s440 = sshll.u32 %s433, 4
          %s441 = int_to_ptr.vmem [resolvable:$true] %s440
          %446 = dma.hbm_to_vmem [thread:$0]  %s439, 256, %s441, %s430, 128, 128, 8
        $region68: #{tpu_custom_call.1} parent=63 // pred_fallthru
          _
      $region64: #{tpu_custom_call.1} parent=5 // pred_fallthru
        _
      %p447 = scmp.le.s32.totalorder 1, %s27
      %p448 = scmp.lt.s32.totalorder %s27, 3
      %p449 = pnand %p447, %p448
      %p450 = pneg %p449
      // Predicated region
      $region69: #{tpu_custom_call.1} parent=5 // pred_check
        _
      $region70: #{tpu_custom_call.1} parent=5 // pred_check_branch
        %452 = sbr.rel (%p449) target = $region72
      $region71: #{tpu_custom_call.1} parent=5 // pred_region
        %s453 = ssub.s32 %s27, 1
        %s454 = sand.u32 %s40, 1
        %s455 = scalar_lea.sflag [#allocation3], %s454
        %s456 = sand.u32 %s40, 1
        %s457 = smul.addr %s456, 16
        %s458 = scalar_lea.vmem [#allocation2], %s457
        // Predicated region
        $region73: #{tpu_custom_call.1} parent=71 // pred_check
          %p459 = pneg %p53
        $region74: #{tpu_custom_call.1} parent=71 // pred_check_branch
          %461 = sbr.rel (%p459) target = $region76
        $region75: #{tpu_custom_call.1} parent=71 // pred_region
          %462 = dma.done %s455, 256
        $region76: #{tpu_custom_call.1} parent=71 // pred_fallthru
          _
        // Predicated region
        $region77: #{tpu_custom_call.1} parent=71 // pred_check
          %p463 = pneg %p74
        $region78: #{tpu_custom_call.1} parent=71 // pred_check_branch
          %465 = sbr.rel (%p463) target = $region80
        $region79: #{tpu_custom_call.1} parent=71 // pred_region
          %466 = dma.done [#allocation6], 6144
        $region80: #{tpu_custom_call.1} parent=71 // pred_fallthru
          _
        // Predicated region
        $region81: #{tpu_custom_call.1} parent=71 // pred_check
          %p467 = pneg %p116
        $region82: #{tpu_custom_call.1} parent=71 // pred_check_branch
          %469 = sbr.rel (%p467) target = $region84
        $region83: #{tpu_custom_call.1} parent=71 // pred_region
          %470 = dma.done [#allocation6], 2048
        $region84: #{tpu_custom_call.1} parent=71 // pred_fallthru
          _
        // Predicated region
        $region85: #{tpu_custom_call.1} parent=71 // pred_check
          %p471 = pneg %p200
        $region86: #{tpu_custom_call.1} parent=71 // pred_check_branch
          %473 = sbr.rel (%p471) target = $region88
        $region87: #{tpu_custom_call.1} parent=71 // pred_region
          %474 = dma.done [#allocation9], 8192
        $region88: #{tpu_custom_call.1} parent=71 // pred_fallthru
          _
        // Predicated region
        $region89: #{tpu_custom_call.1} parent=71 // pred_check
          %p475 = pneg %p242
        $region90: #{tpu_custom_call.1} parent=71 // pred_check_branch
          %477 = sbr.rel (%p475) target = $region92
        $region91: #{tpu_custom_call.1} parent=71 // pred_region
          %478 = dma.done [#allocation9], 8192
        $region92: #{tpu_custom_call.1} parent=71 // pred_fallthru
          _
        %s479 = sand.u32 %s40, 1
        %s480 = scalar_lea.sflag [#allocation3], %s479
        %s481 = sand.u32 %s40, 1
        %s482 = smul.addr %s481, 16
        %s483 = scalar_lea.vmem [#allocation2], %s482
        %p484 = pneg %p53
        %p485 = pneg %p50
        %p486 = pneg %p74
        %p487 = pneg %p71
        %p488 = pneg %p95
        %p489 = pneg %p92
        %p490 = pneg %p116
        %p491 = pneg %p113
        %p492 = pneg %p137
        %p493 = pneg %p134
        %p494 = pneg %p158
        %p495 = pneg %p155
        %p496 = pneg %p179
        %p497 = pneg %p176
        %p498 = pneg %p200
        %p499 = pneg %p197
        %p500 = pneg %p221
        %p501 = pneg %p218
        %p502 = pneg %p242
        %p503 = pneg %p239
        %p504 = pneg %p263
        %p505 = pneg %p260
        %p506 = pneg %p284
        %p507 = pneg %p281
        %p508 = pneg %p305
        %p509 = pneg %p302
        %p510 = pneg %p331
        %p511 = pneg %p328
        %s512 = sand.u32 %s318, 1
        %s513 = scalar_lea.sflag [#allocation4], %s512
        %s514 = sand.u32 %s318, 1
        %s515 = smul.addr %s514, 16
        %s516 = scalar_lea.vmem [#allocation11], %s515
        %s517 = smul.u32 2, %s32
        %s518 = smul.u32 2, %s32
        %v519 = vld [vmem:[%s458] sm:$0xff]
        %v520 = vld [vmem:[%s458 + $0x8] sm:$0xff]
        %v521 = vld [vmem:[#allocation5] sm:$0xff]
        %v522 = vld [vmem:[#allocation5 + $0x8] sm:$0xff]
        %v523 = vld [vmem:[#allocation5 + $0x10] sm:$0xff]
        %v524 = vld [vmem:[#allocation5 + $0x18] sm:$0xff]
        %v525 = vld [vmem:[#allocation5 + $0x20] sm:$0xff]
        %v526 = vld [vmem:[#allocation5 + $0x28] sm:$0xff]
        %v527 = vld [vmem:[#allocation5 + $0x30] sm:$0xff]
        %v528 = vld [vmem:[#allocation5 + $0x38] sm:$0xff]
        %v529 = vld [vmem:[#allocation5 + $0x40] sm:$0xff]
        %v530 = vld [vmem:[#allocation5 + $0x48] sm:$0xff]
        %v531 = vld [vmem:[#allocation5 + $0x50] sm:$0xff]
        %v532 = vld [vmem:[#allocation5 + $0x58] sm:$0xff]
        %v533 = vld [vmem:[#allocation5 + $0x60] sm:$0xff]
        %v534 = vld [vmem:[#allocation5 + $0x68] sm:$0xff]
        %v535 = vld [vmem:[#allocation5 + $0x70] sm:$0xff]
        %v536 = vld [vmem:[#allocation5 + $0x78] sm:$0xff]
        %v537 = vld [vmem:[#allocation5 + $0x80] sm:$0xff]
        %v538 = vld [vmem:[#allocation5 + $0x88] sm:$0xff]
        %v539 = vld [vmem:[#allocation5 + $0x90] sm:$0xff]
        %v540 = vld [vmem:[#allocation5 + $0x98] sm:$0xff]
        %v541 = vld [vmem:[#allocation5 + $0xa0] sm:$0xff]
        %v542 = vld [vmem:[#allocation5 + $0xa8] sm:$0xff]
        %v543 = vld [vmem:[#allocation5 + $0xb0] sm:$0xff]
        %v544 = vld [vmem:[#allocation5 + $0xb8] sm:$0xff]
        %v545 = vld [vmem:[#allocation5 + $0xc0] sm:$0xff]
        %v546 = vld [vmem:[#allocation5 + $0xc8] sm:$0xff]
        %v547 = vld [vmem:[#allocation5 + $0xd0] sm:$0xff]
        %v548 = vld [vmem:[#allocation5 + $0xd8] sm:$0xff]
        %v549 = vld [vmem:[#allocation5 + $0xe0] sm:$0xff]
        %v550 = vld [vmem:[#allocation5 + $0xe8] sm:$0xff]
        %v551 = vld [vmem:[#allocation5 + $0xf0] sm:$0xff]
        %v552 = vld [vmem:[#allocation5 + $0xf8] sm:$0xff]
        %v553 = vld [vmem:[#allocation5 + $0x100] sm:$0xff]
        %v554 = vld [vmem:[#allocation5 + $0x108] sm:$0xff]
        %v555 = vld [vmem:[#allocation5 + $0x110] sm:$0xff]
        %v556 = vld [vmem:[#allocation5 + $0x118] sm:$0xff]
        %v557 = vld [vmem:[#allocation5 + $0x120] sm:$0xff]
        %v558 = vld [vmem:[#allocation5 + $0x128] sm:$0xff]
        %v559 = vld [vmem:[#allocation5 + $0x130] sm:$0xff]
        %v560 = vld [vmem:[#allocation5 + $0x138] sm:$0xff]
        %v561 = vld [vmem:[#allocation5 + $0x140] sm:$0xff]
        %v562 = vld [vmem:[#allocation5 + $0x148] sm:$0xff]
        %v563 = vld [vmem:[#allocation5 + $0x150] sm:$0xff]
        %v564 = vld [vmem:[#allocation5 + $0x158] sm:$0xff]
        %v565 = vld [vmem:[#allocation5 + $0x160] sm:$0xff]
        %v566 = vld [vmem:[#allocation5 + $0x168] sm:$0xff]
        %v567 = vld [vmem:[#allocation5 + $0x170] sm:$0xff]
        %v568 = vld [vmem:[#allocation5 + $0x178] sm:$0xff]
        %v569 = vld [vmem:[%s2] sm:$0x7]
        %v571 = vlaneseq
        %v572 = vshrl.u32 %v571, 7
        %v573 = vsub.s32 0, %v572
        %v574 = vrot.slane %v569, %v573
        %v575 = vlaneseq
        %v576 = vshrl.u32 %v575, 7
        %v577 = vsub.s32 1, %v576
        %v578 = vrot.slane %v569, %v577
        %v579 = vlaneseq
        %v580 = vshrl.u32 %v579, 7
        %v581 = vsub.s32 2, %v580
        %v582 = vrot.slane %v569, %v581
        %586 = vmatprep.subr.mxu0 %v522
        %587 = vmatpush1.msra.mxu0 %v521
        %588 = vmatprep.subr.mxu0 %v525
        %589 = vmatpush1.msra.mxu0 %v524
        %590 = vmatprep.subr.mxu0 %v528
        %591 = vmatpush1.msra.mxu0 %v527
        %592 = vmatprep.subr.mxu0 %v531
        %593 = vmatpush1.msra.mxu0 %v530
        %594 = vmatprep.subr.mxu0 %v534
        %595 = vmatpush1.msra.mxu0 %v533
        %596 = vmatprep.subr.mxu0 %v537
        %597 = vmatpush1.msra.mxu0 %v536
        %598 = vmatprep.subr.mxu0 %v540
        %599 = vmatpush1.msra.mxu0 %v539
        %600 = vmatprep.subr.mxu0 %v543
        %601 = vmatpush1.msra.mxu0 %v542
        %602 = vmatprep.subr.mxu0 %v546
        %603 = vmatpush1.msra.mxu0 %v545
        %604 = vmatprep.subr.mxu0 %v549
        %605 = vmatpush1.msra.mxu0 %v548
        %606 = vmatprep.subr.mxu0 %v552
        %607 = vmatpush1.msra.mxu0 %v551
        %608 = vmatprep.subr.mxu0 %v555
        %609 = vmatpush1.msra.mxu0 %v554
        %610 = vmatprep.subr.mxu0 %v558
        %611 = vmatpush1.msra.mxu0 %v557
        %612 = vmatprep.subr.mxu0 %v561
        %613 = vmatpush1.msra.mxu0 %v560
        %614 = vmatprep.subr.mxu0 %v564
        %615 = vmatpush1.msra.mxu0 %v563
        %616 = vmatprep.subr.mxu0 %v567
        %617 = vmatpush1.msra.mxu0 %v566
        %618 = vmatprep.subr.mxu0 0.0
        %619 = vmatpush1.msra.mxu0 0.0
        %620 = vmatprep.subr.mxu0 0.0
        %621 = vmatpush1.msra.mxu0 0.0
        %622 = vmatprep.subr.mxu0 0.0
        %623 = vmatpush1.msra.mxu0 0.0
        %624 = vmatprep.subr.mxu0 0.0
        %625 = vmatpush1.msra.mxu0 0.0
        %626 = vmatprep.subr.mxu0 0.0
        %627 = vmatpush1.msra.mxu0 0.0
        %628 = vmatprep.subr.mxu0 0.0
        %629 = vmatpush1.msra.mxu0 0.0
        %630 = vmatprep.subr.mxu0 0.0
        %631 = vmatpush1.msra.mxu0 0.0
        %632 = vmatprep.subr.mxu0 0.0
        %633 = vmatpush1.msra.mxu0 0.0
        %634 = vmatprep.subr.mxu0 0.0
        %635 = vmatpush1.msra.mxu0 0.0
        %636 = vmatprep.subr.mxu0 0.0
        %637 = vmatpush1.msra.mxu0 0.0
        %638 = vmatprep.subr.mxu0 0.0
        %639 = vmatpush1.msra.mxu0 0.0
        %640 = vmatprep.subr.mxu0 0.0
        %641 = vmatpush1.msra.mxu0 0.0
        %642 = vmatprep.subr.mxu0 0.0
        %643 = vmatpush1.msra.mxu0 0.0
        %644 = vmatprep.subr.mxu0 0.0
        %645 = vmatpush1.msra.mxu0 0.0
        %646 = vmatprep.subr.mxu0 0.0
        %647 = vmatpush1.msra.mxu0 0.0
        %648 = vmatprep.subr.mxu0 0.0
        %649 = vmatpush1.msra.mxu0 0.0
        %650 = vmatprep.mubr.f32.mxu0 0.0
        %651 = vmatmul.mubr.f32.gmra.mrb[0].mxu0 %v519
        %v652 = vpop.f32.mrb[0].mxu0
        %v653 = vadd.f32 %v574, %v652
        %v654 = vpop.f32.mrb[0].mxu0
        %v655 = vadd.f32 %v578, %v654
        %656 = vmatprep.mubr.f32.mxu0 0.0
        %657 = vmatmul.mubr.f32.gmra.mrb[0].mxu0 %v520
        %v658 = vpop.f32.mrb[0].mxu0
        %v659 = vadd.f32 %v574, %v658
        %v660 = vpop.f32.mrb[0].mxu0
        %v661 = vadd.f32 %v578, %v660
        %662 = vdwg.mxu0
        %663 = vmatprep.subr.mxu0 0.0
        %664 = vmatpush1.msra.mxu0 %v523
        %665 = vmatprep.subr.mxu0 0.0
        %666 = vmatpush1.msra.mxu0 %v526
        %667 = vmatprep.subr.mxu0 0.0
        %668 = vmatpush1.msra.mxu0 %v529
        %669 = vmatprep.subr.mxu0 0.0
        %670 = vmatpush1.msra.mxu0 %v532
        %671 = vmatprep.subr.mxu0 0.0
        %672 = vmatpush1.msra.mxu0 %v535
        %673 = vmatprep.subr.mxu0 0.0
        %674 = vmatpush1.msra.mxu0 %v538
        %675 = vmatprep.subr.mxu0 0.0
        %676 = vmatpush1.msra.mxu0 %v541
        %677 = vmatprep.subr.mxu0 0.0
        %678 = vmatpush1.msra.mxu0 %v544
        %679 = vmatprep.subr.mxu0 0.0
        %680 = vmatpush1.msra.mxu0 %v547
        %681 = vmatprep.subr.mxu0 0.0
        %682 = vmatpush1.msra.mxu0 %v550
        %683 = vmatprep.subr.mxu0 0.0
        %684 = vmatpush1.msra.mxu0 %v553
        %685 = vmatprep.subr.mxu0 0.0
        %686 = vmatpush1.msra.mxu0 %v556
        %687 = vmatprep.subr.mxu0 0.0
        %688 = vmatpush1.msra.mxu0 %v559
        %689 = vmatprep.subr.mxu0 0.0
        %690 = vmatpush1.msra.mxu0 %v562
        %691 = vmatprep.subr.mxu0 0.0
        %692 = vmatpush1.msra.mxu0 %v565
        %693 = vmatprep.subr.mxu0 0.0
        %694 = vmatpush1.msra.mxu0 %v568
        %695 = vmatprep.subr.mxu0 0.0
        %696 = vmatpush1.msra.mxu0 0.0
        %697 = vmatprep.subr.mxu0 0.0
        %698 = vmatpush1.msra.mxu0 0.0
        %699 = vmatprep.subr.mxu0 0.0
        %700 = vmatpush1.msra.mxu0 0.0
        %701 = vmatprep.subr.mxu0 0.0
        %702 = vmatpush1.msra.mxu0 0.0
        %703 = vmatprep.subr.mxu0 0.0
        %704 = vmatpush1.msra.mxu0 0.0
        %705 = vmatprep.subr.mxu0 0.0
        %706 = vmatpush1.msra.mxu0 0.0
        %707 = vmatprep.subr.mxu0 0.0
        %708 = vmatpush1.msra.mxu0 0.0
        %709 = vmatprep.subr.mxu0 0.0
        %710 = vmatpush1.msra.mxu0 0.0
        %711 = vmatprep.subr.mxu0 0.0
        %712 = vmatpush1.msra.mxu0 0.0
        %713 = vmatprep.subr.mxu0 0.0
        %714 = vmatpush1.msra.mxu0 0.0
        %715 = vmatprep.subr.mxu0 0.0
        %716 = vmatpush1.msra.mxu0 0.0
        %717 = vmatprep.subr.mxu0 0.0
        %718 = vmatpush1.msra.mxu0 0.0
        %719 = vmatprep.subr.mxu0 0.0
        %720 = vmatpush1.msra.mxu0 0.0
        %721 = vmatprep.subr.mxu0 0.0
        %722 = vmatpush1.msra.mxu0 0.0
        %723 = vmatprep.subr.mxu0 0.0
        %724 = vmatpush1.msra.mxu0 0.0
        %725 = vmatprep.subr.mxu0 0.0
        %726 = vmatpush1.msra.mxu0 0.0
        %727 = vmatprep.mubr.f32.mxu0 0.0
        %728 = vmatmul.mubr.f32.gmra.mrb[0].mxu0 %v519
        %v729 = vpop.f32.mrb[0].mxu0
        %v730 = vadd.f32 %v582, %v729
        %v731 = vpop.f32.mrb[0].mxu0
        %732 = vmatprep.mubr.f32.mxu0 0.0
        %733 = vmatmul.mubr.f32.gmra.mrb[0].mxu0 %v520
        %v734 = vpop.f32.mrb[0].mxu0
        %v735 = vadd.f32 %v582, %v734
        %v736 = vpop.f32.mrb[0].mxu0
        %737 = vdwg.mxu0
        %vm738 = vcmask 261120
        %v740 = vsel %vm738, %v653, 0
        %v743 = vsel %vm738, %v655, 0
        %745 = vmatprep.subr.mxu0 0.0
        %746 = vmatpush1.xpose.msra.mxu0 %v743
        %747 = vmatprep.subr.mxu0 0.0
        %748 = vmatpush1.xpose.msra.mxu0 0.0
        %749 = vmatprep.subr.mxu0 0.0
        %750 = vmatpush1.xpose.msra.mxu0 0.0
        %751 = vmatprep.subr.mxu0 0.0
        %752 = vmatpush1.xpose.msra.mxu0 0.0
        %753 = vmatprep.subr.mxu0 0.0
        %754 = vmatpush1.xpose.msra.mxu0 0.0
        %755 = vmatprep.subr.mxu0 0.0
        %756 = vmatpush1.xpose.msra.mxu0 0.0
        %757 = vmatprep.subr.mxu0 0.0
        %758 = vmatpush1.xpose.msra.mxu0 0.0
        %759 = vmatprep.subr.mxu0 0.0
        %760 = vmatpush1.xpose.msra.mxu0 0.0
        %761 = vmatprep.subr.mxu0 0.0
        %762 = vmatpush1.xpose.msra.mxu0 0.0
        %763 = vmatprep.subr.mxu0 0.0
        %764 = vmatpush1.xpose.msra.mxu0 0.0
        %765 = vmatprep.subr.mxu0 0.0
        %766 = vmatpush1.xpose.msra.mxu0 0.0
        %767 = vmatprep.subr.mxu0 0.0
        %768 = vmatpush1.xpose.msra.mxu0 0.0
        %769 = vmatprep.subr.mxu0 0.0
        %770 = vmatpush1.xpose.msra.mxu0 0.0
        %771 = vmatprep.subr.mxu0 0.0
        %772 = vmatpush1.xpose.msra.mxu0 0.0
        %773 = vmatprep.subr.mxu0 0.0
        %774 = vmatpush1.xpose.msra.mxu0 0.0
        %775 = vmatprep.subr.mxu0 0.0
        %776 = vmatpush1.xpose.msra.mxu0 0.0
        %777 = vmatprep.subr.mxu0 0.0
        %778 = vmatpush1.xpose.msra.mxu0 0.0
        %779 = vmatprep.subr.mxu0 0.0
        %780 = vmatpush1.xpose.msra.mxu0 0.0
        %781 = vmatprep.subr.mxu0 0.0
        %782 = vmatpush1.xpose.msra.mxu0 0.0
        %783 = vmatprep.subr.mxu0 0.0
        %784 = vmatpush1.xpose.msra.mxu0 0.0
        %785 = vmatprep.subr.mxu0 0.0
        %786 = vmatpush1.xpose.msra.mxu0 0.0
        %787 = vmatprep.subr.mxu0 0.0
        %788 = vmatpush1.xpose.msra.mxu0 0.0
        %789 = vmatprep.subr.mxu0 0.0
        %790 = vmatpush1.xpose.msra.mxu0 0.0
        %791 = vmatprep.subr.mxu0 0.0
        %792 = vmatpush1.xpose.msra.mxu0 0.0
        %793 = vmatprep.subr.mxu0 0.0
        %794 = vmatpush1.xpose.msra.mxu0 0.0
        %795 = vmatprep.subr.mxu0 0.0
        %796 = vmatpush1.xpose.msra.mxu0 0.0
        %797 = vmatprep.subr.mxu0 0.0
        %798 = vmatpush1.xpose.msra.mxu0 0.0
        %799 = vmatprep.subr.mxu0 0.0
        %800 = vmatpush1.xpose.msra.mxu0 0.0
        %801 = vmatprep.subr.mxu0 0.0
        %802 = vmatpush1.xpose.msra.mxu0 0.0
        %803 = vmatprep.subr.mxu0 0.0
        %804 = vmatpush1.xpose.msra.mxu0 0.0
        %805 = vmatprep.subr.mxu0 0.0
        %806 = vmatpush1.xpose.msra.mxu0 0.0
        %807 = vmatprep.subr.mxu0 0.0
        %808 = vmatpush1.xpose.msra.mxu0 0.0
        %809 = vmatprep.mubr.f32.mxu0 0.0
        %810 = vmatmul.mubr.f32.gmra.mrb[0].mxu0 %v740
        %v811 = vpop.f32.mrb[0].mxu0
        %v812 = vadd.f32 0.0, %v811
        %v813 = vpop.f32.mrb[0].mxu0
        %814 = vdwg.mxu0
        %v815 = vmul.f32 %v812, 0.17677669
        %816 = vrot.lane.b32.xlu0 %v653, 96
        %v817 = vpop.permute.xlu0 %816
        %818 = vrot.lane.b32.xlu0 %v655, 96
        %v819 = vpop.permute.xlu0 %818
        %v820 = vsel %vm738, %v817, 0
        %v822 = vsel %vm738, %v819, 0
        %824 = vmatprep.subr.mxu0 0.0
        %825 = vmatpush1.xpose.msra.mxu0 %v822
        %826 = vmatprep.subr.mxu0 0.0
        %827 = vmatpush1.xpose.msra.mxu0 0.0
        %828 = vmatprep.subr.mxu0 0.0
        %829 = vmatpush1.xpose.msra.mxu0 0.0
        %830 = vmatprep.subr.mxu0 0.0
        %831 = vmatpush1.xpose.msra.mxu0 0.0
        %832 = vmatprep.subr.mxu0 0.0
        %833 = vmatpush1.xpose.msra.mxu0 0.0
        %834 = vmatprep.subr.mxu0 0.0
        %835 = vmatpush1.xpose.msra.mxu0 0.0
        %836 = vmatprep.subr.mxu0 0.0
        %837 = vmatpush1.xpose.msra.mxu0 0.0
        %838 = vmatprep.subr.mxu0 0.0
        %839 = vmatpush1.xpose.msra.mxu0 0.0
        %840 = vmatprep.subr.mxu0 0.0
        %841 = vmatpush1.xpose.msra.mxu0 0.0
        %842 = vmatprep.subr.mxu0 0.0
        %843 = vmatpush1.xpose.msra.mxu0 0.0
        %844 = vmatprep.subr.mxu0 0.0
        %845 = vmatpush1.xpose.msra.mxu0 0.0
        %846 = vmatprep.subr.mxu0 0.0
        %847 = vmatpush1.xpose.msra.mxu0 0.0
        %848 = vmatprep.subr.mxu0 0.0
        %849 = vmatpush1.xpose.msra.mxu0 0.0
        %850 = vmatprep.subr.mxu0 0.0
        %851 = vmatpush1.xpose.msra.mxu0 0.0
        %852 = vmatprep.subr.mxu0 0.0
        %853 = vmatpush1.xpose.msra.mxu0 0.0
        %854 = vmatprep.subr.mxu0 0.0
        %855 = vmatpush1.xpose.msra.mxu0 0.0
        %856 = vmatprep.subr.mxu0 0.0
        %857 = vmatpush1.xpose.msra.mxu0 0.0
        %858 = vmatprep.subr.mxu0 0.0
        %859 = vmatpush1.xpose.msra.mxu0 0.0
        %860 = vmatprep.subr.mxu0 0.0
        %861 = vmatpush1.xpose.msra.mxu0 0.0
        %862 = vmatprep.subr.mxu0 0.0
        %863 = vmatpush1.xpose.msra.mxu0 0.0
        %864 = vmatprep.subr.mxu0 0.0
        %865 = vmatpush1.xpose.msra.mxu0 0.0
        %866 = vmatprep.subr.mxu0 0.0
        %867 = vmatpush1.xpose.msra.mxu0 0.0
        %868 = vmatprep.subr.mxu0 0.0
        %869 = vmatpush1.xpose.msra.mxu0 0.0
        %870 = vmatprep.subr.mxu0 0.0
        %871 = vmatpush1.xpose.msra.mxu0 0.0
        %872 = vmatprep.subr.mxu0 0.0
        %873 = vmatpush1.xpose.msra.mxu0 0.0
        %874 = vmatprep.subr.mxu0 0.0
        %875 = vmatpush1.xpose.msra.mxu0 0.0
        %876 = vmatprep.subr.mxu0 0.0
        %877 = vmatpush1.xpose.msra.mxu0 0.0
        %878 = vmatprep.subr.mxu0 0.0
        %879 = vmatpush1.xpose.msra.mxu0 0.0
        %880 = vmatprep.subr.mxu0 0.0
        %881 = vmatpush1.xpose.msra.mxu0 0.0
        %882 = vmatprep.subr.mxu0 0.0
        %883 = vmatpush1.xpose.msra.mxu0 0.0
        %884 = vmatprep.subr.mxu0 0.0
        %885 = vmatpush1.xpose.msra.mxu0 0.0
        %886 = vmatprep.subr.mxu0 0.0
        %887 = vmatpush1.xpose.msra.mxu0 0.0
        %888 = vmatprep.mubr.f32.mxu0 0.0
        %889 = vmatmul.mubr.f32.gmra.mrb[0].mxu0 %v820
        %v890 = vpop.f32.mrb[0].mxu0
        %v891 = vadd.f32 0.0, %v890
        %v892 = vpop.f32.mrb[0].mxu0
        %893 = vdwg.mxu0
        %v894 = vmul.f32 %v891, 0.17677669
        %895 = vrot.lane.b32.xlu0 %v653, 64
        %v896 = vpop.permute.xlu0 %895
        %897 = vrot.lane.b32.xlu0 %v655, 64
        %v898 = vpop.permute.xlu0 %897
        %v899 = vsel %vm738, %v896, 0
        %v901 = vsel %vm738, %v898, 0
        %903 = vmatprep.subr.mxu0 0.0
        %904 = vmatpush1.xpose.msra.mxu0 %v901
        %905 = vmatprep.subr.mxu0 0.0
        %906 = vmatpush1.xpose.msra.mxu0 0.0
        %907 = vmatprep.subr.mxu0 0.0
        %908 = vmatpush1.xpose.msra.mxu0 0.0
        %909 = vmatprep.subr.mxu0 0.0
        %910 = vmatpush1.xpose.msra.mxu0 0.0
        %911 = vmatprep.subr.mxu0 0.0
        %912 = vmatpush1.xpose.msra.mxu0 0.0
        %913 = vmatprep.subr.mxu0 0.0
        %914 = vmatpush1.xpose.msra.mxu0 0.0
        %915 = vmatprep.subr.mxu0 0.0
        %916 = vmatpush1.xpose.msra.mxu0 0.0
        %917 = vmatprep.subr.mxu0 0.0
        %918 = vmatpush1.xpose.msra.mxu0 0.0
        %919 = vmatprep.subr.mxu0 0.0
        %920 = vmatpush1.xpose.msra.mxu0 0.0
        %921 = vmatprep.subr.mxu0 0.0
        %922 = vmatpush1.xpose.msra.mxu0 0.0
        %923 = vmatprep.subr.mxu0 0.0
        %924 = vmatpush1.xpose.msra.mxu0 0.0
        %925 = vmatprep.subr.mxu0 0.0
        %926 = vmatpush1.xpose.msra.mxu0 0.0
        %927 = vmatprep.subr.mxu0 0.0
        %928 = vmatpush1.xpose.msra.mxu0 0.0
        %929 = vmatprep.subr.mxu0 0.0
        %930 = vmatpush1.xpose.msra.mxu0 0.0
        %931 = vmatprep.subr.mxu0 0.0
        %932 = vmatpush1.xpose.msra.mxu0 0.0
        %933 = vmatprep.subr.mxu0 0.0
        %934 = vmatpush1.xpose.msra.mxu0 0.0
        %935 = vmatprep.subr.mxu0 0.0
        %936 = vmatpush1.xpose.msra.mxu0 0.0
        %937 = vmatprep.subr.mxu0 0.0
        %938 = vmatpush1.xpose.msra.mxu0 0.0
        %939 = vmatprep.subr.mxu0 0.0
        %940 = vmatpush1.xpose.msra.mxu0 0.0
        %941 = vmatprep.subr.mxu0 0.0
        %942 = vmatpush1.xpose.msra.mxu0 0.0
        %943 = vmatprep.subr.mxu0 0.0
        %944 = vmatpush1.xpose.msra.mxu0 0.0
        %945 = vmatprep.subr.mxu0 0.0
        %946 = vmatpush1.xpose.msra.mxu0 0.0
        %947 = vmatprep.subr.mxu0 0.0
        %948 = vmatpush1.xpose.msra.mxu0 0.0
        %949 = vmatprep.subr.mxu0 0.0
        %950 = vmatpush1.xpose.msra.mxu0 0.0
        %951 = vmatprep.subr.mxu0 0.0
        %952 = vmatpush1.xpose.msra.mxu0 0.0
        %953 = vmatprep.subr.mxu0 0.0
        %954 = vmatpush1.xpose.msra.mxu0 0.0
        %955 = vmatprep.subr.mxu0 0.0
        %956 = vmatpush1.xpose.msra.mxu0 0.0
        %957 = vmatprep.subr.mxu0 0.0
        %958 = vmatpush1.xpose.msra.mxu0 0.0
        %959 = vmatprep.subr.mxu0 0.0
        %960 = vmatpush1.xpose.msra.mxu0 0.0
        %961 = vmatprep.subr.mxu0 0.0
        %962 = vmatpush1.xpose.msra.mxu0 0.0
        %963 = vmatprep.subr.mxu0 0.0
        %964 = vmatpush1.xpose.msra.mxu0 0.0
        %965 = vmatprep.subr.mxu0 0.0
        %966 = vmatpush1.xpose.msra.mxu0 0.0
        %967 = vmatprep.mubr.f32.mxu0 0.0
        %968 = vmatmul.mubr.f32.gmra.mrb[0].mxu0 %v899
        %v969 = vpop.f32.mrb[0].mxu0
        %v970 = vadd.f32 0.0, %v969
        %v971 = vpop.f32.mrb[0].mxu0
        %972 = vdwg.mxu0
        %v973 = vmul.f32 %v970, 0.17677669
        %974 = vrot.lane.b32.xlu0 %v653, 32
        %v975 = vpop.permute.xlu0 %974
        %976 = vrot.lane.b32.xlu0 %v655, 32
        %v977 = vpop.permute.xlu0 %976
        %v978 = vsel %vm738, %v975, 0
        %v980 = vsel %vm738, %v977, 0
        %982 = vmatprep.subr.mxu0 0.0
        %983 = vmatpush1.xpose.msra.mxu0 %v980
        %984 = vmatprep.subr.mxu0 0.0
        %985 = vmatpush1.xpose.msra.mxu0 0.0
        %986 = vmatprep.subr.mxu0 0.0
        %987 = vmatpush1.xpose.msra.mxu0 0.0
        %988 = vmatprep.subr.mxu0 0.0
        %989 = vmatpush1.xpose.msra.mxu0 0.0
        %990 = vmatprep.subr.mxu0 0.0
        %991 = vmatpush1.xpose.msra.mxu0 0.0
        %992 = vmatprep.subr.mxu0 0.0
        %993 = vmatpush1.xpose.msra.mxu0 0.0
        %994 = vmatprep.subr.mxu0 0.0
        %995 = vmatpush1.xpose.msra.mxu0 0.0
        %996 = vmatprep.subr.mxu0 0.0
        %997 = vmatpush1.xpose.msra.mxu0 0.0
        %998 = vmatprep.subr.mxu0 0.0
        %999 = vmatpush1.xpose.msra.mxu0 0.0
        %1000 = vmatprep.subr.mxu0 0.0
        %1001 = vmatpush1.xpose.msra.mxu0 0.0
        %1002 = vmatprep.subr.mxu0 0.0
        %1003 = vmatpush1.xpose.msra.mxu0 0.0
        %1004 = vmatprep.subr.mxu0 0.0
        %1005 = vmatpush1.xpose.msra.mxu0 0.0
        %1006 = vmatprep.subr.mxu0 0.0
        %1007 = vmatpush1.xpose.msra.mxu0 0.0
        %1008 = vmatprep.subr.mxu0 0.0
        %1009 = vmatpush1.xpose.msra.mxu0 0.0
        %1010 = vmatprep.subr.mxu0 0.0
        %1011 = vmatpush1.xpose.msra.mxu0 0.0
        %1012 = vmatprep.subr.mxu0 0.0
        %1013 = vmatpush1.xpose.msra.mxu0 0.0
        %1014 = vmatprep.subr.mxu0 0.0
        %1015 = vmatpush1.xpose.msra.mxu0 0.0
        %1016 = vmatprep.subr.mxu0 0.0
        %1017 = vmatpush1.xpose.msra.mxu0 0.0
        %1018 = vmatprep.subr.mxu0 0.0
        %1019 = vmatpush1.xpose.msra.mxu0 0.0
        %1020 = vmatprep.subr.mxu0 0.0
        %1021 = vmatpush1.xpose.msra.mxu0 0.0
        %1022 = vmatprep.subr.mxu0 0.0
        %1023 = vmatpush1.xpose.msra.mxu0 0.0
        %1024 = vmatprep.subr.mxu0 0.0
        %1025 = vmatpush1.xpose.msra.mxu0 0.0
        %1026 = vmatprep.subr.mxu0 0.0
        %1027 = vmatpush1.xpose.msra.mxu0 0.0
        %1028 = vmatprep.subr.mxu0 0.0
        %1029 = vmatpush1.xpose.msra.mxu0 0.0
        %1030 = vmatprep.subr.mxu0 0.0
        %1031 = vmatpush1.xpose.msra.mxu0 0.0
        %1032 = vmatprep.subr.mxu0 0.0
        %1033 = vmatpush1.xpose.msra.mxu0 0.0
        %1034 = vmatprep.subr.mxu0 0.0
        %1035 = vmatpush1.xpose.msra.mxu0 0.0
        %1036 = vmatprep.subr.mxu0 0.0
        %1037 = vmatpush1.xpose.msra.mxu0 0.0
        %1038 = vmatprep.subr.mxu0 0.0
        %1039 = vmatpush1.xpose.msra.mxu0 0.0
        %1040 = vmatprep.subr.mxu0 0.0
        %1041 = vmatpush1.xpose.msra.mxu0 0.0
        %1042 = vmatprep.subr.mxu0 0.0
        %1043 = vmatpush1.xpose.msra.mxu0 0.0
        %1044 = vmatprep.subr.mxu0 0.0
        %1045 = vmatpush1.xpose.msra.mxu0 0.0
        %1046 = vmatprep.mubr.f32.mxu0 0.0
        %1047 = vmatmul.mubr.f32.gmra.mrb[0].mxu0 %v978
        %v1048 = vpop.f32.mrb[0].mxu0
        %v1049 = vadd.f32 0.0, %v1048
        %v1050 = vpop.f32.mrb[0].mxu0
        %1051 = vdwg.mxu0
        %v1052 = vmul.f32 %v1049, 0.17677669
        %v1054 = vsel %vm738, %v659, 0
        %v1057 = vsel %vm738, %v661, 0
        %1059 = vmatprep.subr.mxu0 0.0
        %1060 = vmatpush1.xpose.msra.mxu0 %v1057
        %1061 = vmatprep.subr.mxu0 0.0
        %1062 = vmatpush1.xpose.msra.mxu0 0.0
        %1063 = vmatprep.subr.mxu0 0.0
        %1064 = vmatpush1.xpose.msra.mxu0 0.0
        %1065 = vmatprep.subr.mxu0 0.0
        %1066 = vmatpush1.xpose.msra.mxu0 0.0
        %1067 = vmatprep.subr.mxu0 0.0
        %1068 = vmatpush1.xpose.msra.mxu0 0.0
        %1069 = vmatprep.subr.mxu0 0.0
        %1070 = vmatpush1.xpose.msra.mxu0 0.0
        %1071 = vmatprep.subr.mxu0 0.0
        %1072 = vmatpush1.xpose.msra.mxu0 0.0
        %1073 = vmatprep.subr.mxu0 0.0
        %1074 = vmatpush1.xpose.msra.mxu0 0.0
        %1075 = vmatprep.subr.mxu0 0.0
        %1076 = vmatpush1.xpose.msra.mxu0 0.0
        %1077 = vmatprep.subr.mxu0 0.0
        %1078 = vmatpush1.xpose.msra.mxu0 0.0
        %1079 = vmatprep.subr.mxu0 0.0
        %1080 = vmatpush1.xpose.msra.mxu0 0.0
        %1081 = vmatprep.subr.mxu0 0.0
        %1082 = vmatpush1.xpose.msra.mxu0 0.0
        %1083 = vmatprep.subr.mxu0 0.0
        %1084 = vmatpush1.xpose.msra.mxu0 0.0
        %1085 = vmatprep.subr.mxu0 0.0
        %1086 = vmatpush1.xpose.msra.mxu0 0.0
        %1087 = vmatprep.subr.mxu0 0.0
        %1088 = vmatpush1.xpose.msra.mxu0 0.0
        %1089 = vmatprep.subr.mxu0 0.0
        %1090 = vmatpush1.xpose.msra.mxu0 0.0
        %1091 = vmatprep.subr.mxu0 0.0
        %1092 = vmatpush1.xpose.msra.mxu0 0.0
        %1093 = vmatprep.subr.mxu0 0.0
        %1094 = vmatpush1.xpose.msra.mxu0 0.0
        %1095 = vmatprep.subr.mxu0 0.0
        %1096 = vmatpush1.xpose.msra.mxu0 0.0
        %1097 = vmatprep.subr.mxu0 0.0
        %1098 = vmatpush1.xpose.msra.mxu0 0.0
        %1099 = vmatprep.subr.mxu0 0.0
        %1100 = vmatpush1.xpose.msra.mxu0 0.0
        %1101 = vmatprep.subr.mxu0 0.0
        %1102 = vmatpush1.xpose.msra.mxu0 0.0
        %1103 = vmatprep.subr.mxu0 0.0
        %1104 = vmatpush1.xpose.msra.mxu0 0.0
        %1105 = vmatprep.subr.mxu0 0.0
        %1106 = vmatpush1.xpose.msra.mxu0 0.0
        %1107 = vmatprep.subr.mxu0 0.0
        %1108 = vmatpush1.xpose.msra.mxu0 0.0
        %1109 = vmatprep.subr.mxu0 0.0
        %1110 = vmatpush1.xpose.msra.mxu0 0.0
        %1111 = vmatprep.subr.mxu0 0.0
        %1112 = vmatpush1.xpose.msra.mxu0 0.0
        %1113 = vmatprep.subr.mxu0 0.0
        %1114 = vmatpush1.xpose.msra.mxu0 0.0
        %1115 = vmatprep.subr.mxu0 0.0
        %1116 = vmatpush1.xpose.msra.mxu0 0.0
        %1117 = vmatprep.subr.mxu0 0.0
        %1118 = vmatpush1.xpose.msra.mxu0 0.0
        %1119 = vmatprep.subr.mxu0 0.0
        %1120 = vmatpush1.xpose.msra.mxu0 0.0
        %1121 = vmatprep.subr.mxu0 0.0
        %1122 = vmatpush1.xpose.msra.mxu0 0.0
        %1123 = vmatprep.mubr.f32.mxu0 0.0
        %1124 = vmatmul.mubr.f32.gmra.mrb[0].mxu0 %v1054
        %v1125 = vpop.f32.mrb[0].mxu0
        %v1126 = vadd.f32 0.0, %v1125
        %v1127 = vpop.f32.mrb[0].mxu0
        %1128 = vdwg.mxu0
        %v1129 = vmul.f32 %v1126, 0.17677669
        %1130 = vrot.lane.b32.xlu0 %v659, 96
        %v1131 = vpop.permute.xlu0 %1130
        %1132 = vrot.lane.b32.xlu0 %v661, 96
        %v1133 = vpop.permute.xlu0 %1132
        %v1134 = vsel %vm738, %v1131, 0
        %v1136 = vsel %vm738, %v1133, 0
        %1138 = vmatprep.subr.mxu0 0.0
        %1139 = vmatpush1.xpose.msra.mxu0 %v1136
        %1140 = vmatprep.subr.mxu0 0.0
        %1141 = vmatpush1.xpose.msra.mxu0 0.0
        %1142 = vmatprep.subr.mxu0 0.0
        %1143 = vmatpush1.xpose.msra.mxu0 0.0
        %1144 = vmatprep.subr.mxu0 0.0
        %1145 = vmatpush1.xpose.msra.mxu0 0.0
        %1146 = vmatprep.subr.mxu0 0.0
        %1147 = vmatpush1.xpose.msra.mxu0 0.0
        %1148 = vmatprep.subr.mxu0 0.0
        %1149 = vmatpush1.xpose.msra.mxu0 0.0
        %1150 = vmatprep.subr.mxu0 0.0
        %1151 = vmatpush1.xpose.msra.mxu0 0.0
        %1152 = vmatprep.subr.mxu0 0.0
        %1153 = vmatpush1.xpose.msra.mxu0 0.0
        %1154 = vmatprep.subr.mxu0 0.0
        %1155 = vmatpush1.xpose.msra.mxu0 0.0
        %1156 = vmatprep.subr.mxu0 0.0
        %1157 = vmatpush1.xpose.msra.mxu0 0.0
        %1158 = vmatprep.subr.mxu0 0.0
        %1159 = vmatpush1.xpose.msra.mxu0 0.0
        %1160 = vmatprep.subr.mxu0 0.0
        %1161 = vmatpush1.xpose.msra.mxu0 0.0
        %1162 = vmatprep.subr.mxu0 0.0
        %1163 = vmatpush1.xpose.msra.mxu0 0.0
        %1164 = vmatprep.subr.mxu0 0.0
        %1165 = vmatpush1.xpose.msra.mxu0 0.0
        %1166 = vmatprep.subr.mxu0 0.0
        %1167 = vmatpush1.xpose.msra.mxu0 0.0
        %1168 = vmatprep.subr.mxu0 0.0
        %1169 = vmatpush1.xpose.msra.mxu0 0.0
        %1170 = vmatprep.subr.mxu0 0.0
        %1171 = vmatpush1.xpose.msra.mxu0 0.0
        %1172 = vmatprep.subr.mxu0 0.0
        %1173 = vmatpush1.xpose.msra.mxu0 0.0
        %1174 = vmatprep.subr.mxu0 0.0
        %1175 = vmatpush1.xpose.msra.mxu0 0.0
        %1176 = vmatprep.subr.mxu0 0.0
        %1177 = vmatpush1.xpose.msra.mxu0 0.0
        %1178 = vmatprep.subr.mxu0 0.0
        %1179 = vmatpush1.xpose.msra.mxu0 0.0
        %1180 = vmatprep.subr.mxu0 0.0
        %1181 = vmatpush1.xpose.msra.mxu0 0.0
        %1182 = vmatprep.subr.mxu0 0.0
        %1183 = vmatpush1.xpose.msra.mxu0 0.0
        %1184 = vmatprep.subr.mxu0 0.0
        %1185 = vmatpush1.xpose.msra.mxu0 0.0
        %1186 = vmatprep.subr.mxu0 0.0
        %1187 = vmatpush1.xpose.msra.mxu0 0.0
        %1188 = vmatprep.subr.mxu0 0.0
        %1189 = vmatpush1.xpose.msra.mxu0 0.0
        %1190 = vmatprep.subr.mxu0 0.0
        %1191 = vmatpush1.xpose.msra.mxu0 0.0
        %1192 = vmatprep.subr.mxu0 0.0
        %1193 = vmatpush1.xpose.msra.mxu0 0.0
        %1194 = vmatprep.subr.mxu0 0.0
        %1195 = vmatpush1.xpose.msra.mxu0 0.0
        %1196 = vmatprep.subr.mxu0 0.0
        %1197 = vmatpush1.xpose.msra.mxu0 0.0
        %1198 = vmatprep.subr.mxu0 0.0
        %1199 = vmatpush1.xpose.msra.mxu0 0.0
        %1200 = vmatprep.subr.mxu0 0.0
        %1201 = vmatpush1.xpose.msra.mxu0 0.0
        %1202 = vmatprep.mubr.f32.mxu0 0.0
        %1203 = vmatmul.mubr.f32.gmra.mrb[0].mxu0 %v1134
        %v1204 = vpop.f32.mrb[0].mxu0
        %v1205 = vadd.f32 0.0, %v1204
        %v1206 = vpop.f32.mrb[0].mxu0
        %1207 = vdwg.mxu0
        %v1208 = vmul.f32 %v1205, 0.17677669
        %1209 = vrot.lane.b32.xlu0 %v659, 64
        %v1210 = vpop.permute.xlu0 %1209
        %1211 = vrot.lane.b32.xlu0 %v661, 64
        %v1212 = vpop.permute.xlu0 %1211
        %v1213 = vsel %vm738, %v1210, 0
        %v1215 = vsel %vm738, %v1212, 0
        %1217 = vmatprep.subr.mxu0 0.0
        %1218 = vmatpush1.xpose.msra.mxu0 %v1215
        %1219 = vmatprep.subr.mxu0 0.0
        %1220 = vmatpush1.xpose.msra.mxu0 0.0
        %1221 = vmatprep.subr.mxu0 0.0
        %1222 = vmatpush1.xpose.msra.mxu0 0.0
        %1223 = vmatprep.subr.mxu0 0.0
        %1224 = vmatpush1.xpose.msra.mxu0 0.0
        %1225 = vmatprep.subr.mxu0 0.0
        %1226 = vmatpush1.xpose.msra.mxu0 0.0
        %1227 = vmatprep.subr.mxu0 0.0
        %1228 = vmatpush1.xpose.msra.mxu0 0.0
        %1229 = vmatprep.subr.mxu0 0.0
        %1230 = vmatpush1.xpose.msra.mxu0 0.0
        %1231 = vmatprep.subr.mxu0 0.0
        %1232 = vmatpush1.xpose.msra.mxu0 0.0
        %1233 = vmatprep.subr.mxu0 0.0
        %1234 = vmatpush1.xpose.msra.mxu0 0.0
        %1235 = vmatprep.subr.mxu0 0.0
        %1236 = vmatpush1.xpose.msra.mxu0 0.0
        %1237 = vmatprep.subr.mxu0 0.0
        %1238 = vmatpush1.xpose.msra.mxu0 0.0
        %1239 = vmatprep.subr.mxu0 0.0
        %1240 = vmatpush1.xpose.msra.mxu0 0.0
        %1241 = vmatprep.subr.mxu0 0.0
        %1242 = vmatpush1.xpose.msra.mxu0 0.0
        %1243 = vmatprep.subr.mxu0 0.0
        %1244 = vmatpush1.xpose.msra.mxu0 0.0
        %1245 = vmatprep.subr.mxu0 0.0
        %1246 = vmatpush1.xpose.msra.mxu0 0.0
        %1247 = vmatprep.subr.mxu0 0.0
        %1248 = vmatpush1.xpose.msra.mxu0 0.0
        %1249 = vmatprep.subr.mxu0 0.0
        %1250 = vmatpush1.xpose.msra.mxu0 0.0
        %1251 = vmatprep.subr.mxu0 0.0
        %1252 = vmatpush1.xpose.msra.mxu0 0.0
        %1253 = vmatprep.subr.mxu0 0.0
        %1254 = vmatpush1.xpose.msra.mxu0 0.0
        %1255 = vmatprep.subr.mxu0 0.0
        %1256 = vmatpush1.xpose.msra.mxu0 0.0
        %1257 = vmatprep.subr.mxu0 0.0
        %1258 = vmatpush1.xpose.msra.mxu0 0.0
        %1259 = vmatprep.subr.mxu0 0.0
        %1260 = vmatpush1.xpose.msra.mxu0 0.0
        %1261 = vmatprep.subr.mxu0 0.0
        %1262 = vmatpush1.xpose.msra.mxu0 0.0
        %1263 = vmatprep.subr.mxu0 0.0
        %1264 = vmatpush1.xpose.msra.mxu0 0.0
        %1265 = vmatprep.subr.mxu0 0.0
        %1266 = vmatpush1.xpose.msra.mxu0 0.0
        %1267 = vmatprep.subr.mxu0 0.0
        %1268 = vmatpush1.xpose.msra.mxu0 0.0
        %1269 = vmatprep.subr.mxu0 0.0
        %1270 = vmatpush1.xpose.msra.mxu0 0.0
        %1271 = vmatprep.subr.mxu0 0.0
        %1272 = vmatpush1.xpose.msra.mxu0 0.0
        %1273 = vmatprep.subr.mxu0 0.0
        %1274 = vmatpush1.xpose.msra.mxu0 0.0
        %1275 = vmatprep.subr.mxu0 0.0
        %1276 = vmatpush1.xpose.msra.mxu0 0.0
        %1277 = vmatprep.subr.mxu0 0.0
        %1278 = vmatpush1.xpose.msra.mxu0 0.0
        %1279 = vmatprep.subr.mxu0 0.0
        %1280 = vmatpush1.xpose.msra.mxu0 0.0
        %1281 = vmatprep.mubr.f32.mxu0 0.0
        %1282 = vmatmul.mubr.f32.gmra.mrb[0].mxu0 %v1213
        %v1283 = vpop.f32.mrb[0].mxu0
        %v1284 = vadd.f32 0.0, %v1283
        %v1285 = vpop.f32.mrb[0].mxu0
        %1286 = vdwg.mxu0
        %v1287 = vmul.f32 %v1284, 0.17677669
        %1288 = vrot.lane.b32.xlu0 %v659, 32
        %v1289 = vpop.permute.xlu0 %1288
        %1290 = vrot.lane.b32.xlu0 %v661, 32
        %v1291 = vpop.permute.xlu0 %1290
        %v1292 = vsel %vm738, %v1289, 0
        %v1294 = vsel %vm738, %v1291, 0
        %1296 = vmatprep.subr.mxu0 0.0
        %1297 = vmatpush1.xpose.msra.mxu0 %v1294
        %1298 = vmatprep.subr.mxu0 0.0
        %1299 = vmatpush1.xpose.msra.mxu0 0.0
        %1300 = vmatprep.subr.mxu0 0.0
        %1301 = vmatpush1.xpose.msra.mxu0 0.0
        %1302 = vmatprep.subr.mxu0 0.0
        %1303 = vmatpush1.xpose.msra.mxu0 0.0
        %1304 = vmatprep.subr.mxu0 0.0
        %1305 = vmatpush1.xpose.msra.mxu0 0.0
        %1306 = vmatprep.subr.mxu0 0.0
        %1307 = vmatpush1.xpose.msra.mxu0 0.0
        %1308 = vmatprep.subr.mxu0 0.0
        %1309 = vmatpush1.xpose.msra.mxu0 0.0
        %1310 = vmatprep.subr.mxu0 0.0
        %1311 = vmatpush1.xpose.msra.mxu0 0.0
        %1312 = vmatprep.subr.mxu0 0.0
        %1313 = vmatpush1.xpose.msra.mxu0 0.0
        %1314 = vmatprep.subr.mxu0 0.0
        %1315 = vmatpush1.xpose.msra.mxu0 0.0
        %1316 = vmatprep.subr.mxu0 0.0
        %1317 = vmatpush1.xpose.msra.mxu0 0.0
        %1318 = vmatprep.subr.mxu0 0.0
        %1319 = vmatpush1.xpose.msra.mxu0 0.0
        %1320 = vmatprep.subr.mxu0 0.0
        %1321 = vmatpush1.xpose.msra.mxu0 0.0
        %1322 = vmatprep.subr.mxu0 0.0
        %1323 = vmatpush1.xpose.msra.mxu0 0.0
        %1324 = vmatprep.subr.mxu0 0.0
        %1325 = vmatpush1.xpose.msra.mxu0 0.0
        %1326 = vmatprep.subr.mxu0 0.0
        %1327 = vmatpush1.xpose.msra.mxu0 0.0
        %1328 = vmatprep.subr.mxu0 0.0
        %1329 = vmatpush1.xpose.msra.mxu0 0.0
        %1330 = vmatprep.subr.mxu0 0.0
        %1331 = vmatpush1.xpose.msra.mxu0 0.0
        %1332 = vmatprep.subr.mxu0 0.0
        %1333 = vmatpush1.xpose.msra.mxu0 0.0
        %1334 = vmatprep.subr.mxu0 0.0
        %1335 = vmatpush1.xpose.msra.mxu0 0.0
        %1336 = vmatprep.subr.mxu0 0.0
        %1337 = vmatpush1.xpose.msra.mxu0 0.0
        %1338 = vmatprep.subr.mxu0 0.0
        %1339 = vmatpush1.xpose.msra.mxu0 0.0
        %1340 = vmatprep.subr.mxu0 0.0
        %1341 = vmatpush1.xpose.msra.mxu0 0.0
        %1342 = vmatprep.subr.mxu0 0.0
        %1343 = vmatpush1.xpose.msra.mxu0 0.0
        %1344 = vmatprep.subr.mxu0 0.0
        %1345 = vmatpush1.xpose.msra.mxu0 0.0
        %1346 = vmatprep.subr.mxu0 0.0
        %1347 = vmatpush1.xpose.msra.mxu0 0.0
        %1348 = vmatprep.subr.mxu0 0.0
        %1349 = vmatpush1.xpose.msra.mxu0 0.0
        %1350 = vmatprep.subr.mxu0 0.0
        %1351 = vmatpush1.xpose.msra.mxu0 0.0
        %1352 = vmatprep.subr.mxu0 0.0
        %1353 = vmatpush1.xpose.msra.mxu0 0.0
        %1354 = vmatprep.subr.mxu0 0.0
        %1355 = vmatpush1.xpose.msra.mxu0 0.0
        %1356 = vmatprep.subr.mxu0 0.0
        %1357 = vmatpush1.xpose.msra.mxu0 0.0
        %1358 = vmatprep.subr.mxu0 0.0
        %1359 = vmatpush1.xpose.msra.mxu0 0.0
        %1360 = vmatprep.mubr.f32.mxu0 0.0
        %1361 = vmatmul.mubr.f32.gmra.mrb[0].mxu0 %v1292
        %v1362 = vpop.f32.mrb[0].mxu0
        %v1363 = vadd.f32 0.0, %v1362
        %v1364 = vpop.f32.mrb[0].mxu0
        %1365 = vdwg.mxu0
        %v1366 = vmul.f32 %v1363, 0.17677669
        %v1367 = vlaneseq
        %v1368 = vshrl.u32 %v1367, 7
        %v1369 = vlaneseq
        %v1370 = vand.u32 %v1369, 127
        %vm1371 = vcmp.le.s32.totalorder %v1370, %v1368
        %v1372 = vsel %vm1371, %v815, -1e+30
        %v1373 = vsel %vm1371, %v894, -1e+30
        %v1374 = vsel %vm1371, %v973, -1e+30
        %v1375 = vsel %vm1371, %v1052, -1e+30
        %v1376 = vsel %vm1371, %v1129, -1e+30
        %v1377 = vsel %vm1371, %v1208, -1e+30
        %v1378 = vsel %vm1371, %v1287, -1e+30
        %v1379 = vsel %vm1371, %v1366, -1e+30
        %vm1380 = vcmask 64512
        %v1381 = vsel %vm1380, %v1372, -inf
        %1382 = vmax.xlane.f32.xlu0 %v1381
        %v1383 = vpop.xlane.xlu0 %1382
        %v1384 = vsel %vm1380, %v1373, -inf
        %1385 = vmax.xlane.f32.xlu0 %v1384
        %v1386 = vpop.xlane.xlu0 %1385
        %v1387 = vsel %vm1380, %v1374, -inf
        %1388 = vmax.xlane.f32.xlu0 %v1387
        %v1389 = vpop.xlane.xlu0 %1388
        %v1390 = vsel %vm1380, %v1375, -inf
        %1391 = vmax.xlane.f32.xlu0 %v1390
        %v1392 = vpop.xlane.xlu0 %1391
        %v1393 = vsel %vm1380, %v1376, -inf
        %1394 = vmax.xlane.f32.xlu0 %v1393
        %v1395 = vpop.xlane.xlu0 %1394
        %v1396 = vsel %vm1380, %v1377, -inf
        %1397 = vmax.xlane.f32.xlu0 %v1396
        %v1398 = vpop.xlane.xlu0 %1397
        %v1399 = vsel %vm1380, %v1378, -inf
        %1400 = vmax.xlane.f32.xlu0 %v1399
        %v1401 = vpop.xlane.xlu0 %1400
        %v1402 = vsel %vm1380, %v1379, -inf
        %1403 = vmax.xlane.f32.xlu0 %v1402
        %v1404 = vpop.xlane.xlu0 %1403
        %v1405 = vsub.f32 %v1372, %v1383
        %v1406 = vsub.f32 %v1373, %v1386
        %v1407 = vsub.f32 %v1374, %v1389
        %v1408 = vsub.f32 %v1375, %v1392
        %v1409 = vsub.f32 %v1376, %v1395
        %v1410 = vsub.f32 %v1377, %v1398
        %v1411 = vsub.f32 %v1378, %v1401
        %v1412 = vsub.f32 %v1379, %v1404
        %v1413 = vmul.f32 %v1405, 1.442695
        %v1414 = vpow.pop %v1413
        %v1415 = vmul.f32 %v1406, 1.442695
        %v1416 = vpow.pop %v1415
        %v1417 = vmul.f32 %v1407, 1.442695
        %v1418 = vpow.pop %v1417
        %v1419 = vmul.f32 %v1408, 1.442695
        %v1420 = vpow.pop %v1419
        %v1421 = vmul.f32 %v1409, 1.442695
        %v1422 = vpow.pop %v1421
        %v1423 = vmul.f32 %v1410, 1.442695
        %v1424 = vpow.pop %v1423
        %v1425 = vmul.f32 %v1411, 1.442695
        %v1426 = vpow.pop %v1425
        %v1427 = vmul.f32 %v1412, 1.442695
        %v1428 = vpow.pop %v1427
        %v1429 = vsel %vm1380, %v1414, 0.0
        %1430 = vadd.xlane.f32.xlu0 %v1429
        %v1431 = vpop.xlane.xlu0 %1430
        %v1432 = vsel %vm1380, %v1416, 0.0
        %1433 = vadd.xlane.f32.xlu0 %v1432
        %v1434 = vpop.xlane.xlu0 %1433
        %v1435 = vsel %vm1380, %v1418, 0.0
        %1436 = vadd.xlane.f32.xlu0 %v1435
        %v1437 = vpop.xlane.xlu0 %1436
        %v1438 = vsel %vm1380, %v1420, 0.0
        %1439 = vadd.xlane.f32.xlu0 %v1438
        %v1440 = vpop.xlane.xlu0 %1439
        %v1441 = vsel %vm1380, %v1422, 0.0
        %1442 = vadd.xlane.f32.xlu0 %v1441
        %v1443 = vpop.xlane.xlu0 %1442
        %v1444 = vsel %vm1380, %v1424, 0.0
        %1445 = vadd.xlane.f32.xlu0 %v1444
        %v1446 = vpop.xlane.xlu0 %1445
        %v1447 = vsel %vm1380, %v1426, 0.0
        %1448 = vadd.xlane.f32.xlu0 %v1447
        %v1449 = vpop.xlane.xlu0 %1448
        %v1450 = vsel %vm1380, %v1428, 0.0
        %1451 = vadd.xlane.f32.xlu0 %v1450
        %v1452 = vpop.xlane.xlu0 %1451
        %v1453 = vrcp.pop %v1431
        %v1454 = vrcp.pop %v1434
        %v1455 = vrcp.pop %v1437
        %v1456 = vrcp.pop %v1440
        %v1457 = vrcp.pop %v1443
        %v1458 = vrcp.pop %v1446
        %v1459 = vrcp.pop %v1449
        %v1460 = vrcp.pop %v1452
        %v1461 = vmul.f32 %v1414, %v1453
        %v1462 = vmul.f32 %v1416, %v1454
        %v1463 = vmul.f32 %v1418, %v1455
        %v1464 = vmul.f32 %v1420, %v1456
        %v1465 = vmul.f32 %v1422, %v1457
        %v1466 = vmul.f32 %v1424, %v1458
        %v1467 = vmul.f32 %v1426, %v1459
        %v1468 = vmul.f32 %v1428, %v1460
        %v1470 = vsel %vm1380, %v1461, 0
        %1472 = vmatprep.subr.mxu0 0.0
        %1473 = vmatpush1.msra.mxu0 %v730
        %1474 = vmatprep.subr.mxu0 0.0
        %1475 = vmatpush1.msra.mxu0 0.0
        %1476 = vmatprep.subr.mxu0 0.0
        %1477 = vmatpush1.msra.mxu0 0.0
        %1478 = vmatprep.subr.mxu0 0.0
        %1479 = vmatpush1.msra.mxu0 0.0
        %1480 = vmatprep.subr.mxu0 0.0
        %1481 = vmatpush1.msra.mxu0 0.0
        %1482 = vmatprep.subr.mxu0 0.0
        %1483 = vmatpush1.msra.mxu0 0.0
        %1484 = vmatprep.subr.mxu0 0.0
        %1485 = vmatpush1.msra.mxu0 0.0
        %1486 = vmatprep.subr.mxu0 0.0
        %1487 = vmatpush1.msra.mxu0 0.0
        %1488 = vmatprep.subr.mxu0 0.0
        %1489 = vmatpush1.msra.mxu0 0.0
        %1490 = vmatprep.subr.mxu0 0.0
        %1491 = vmatpush1.msra.mxu0 0.0
        %1492 = vmatprep.subr.mxu0 0.0
        %1493 = vmatpush1.msra.mxu0 0.0
        %1494 = vmatprep.subr.mxu0 0.0
        %1495 = vmatpush1.msra.mxu0 0.0
        %1496 = vmatprep.subr.mxu0 0.0
        %1497 = vmatpush1.msra.mxu0 0.0
        %1498 = vmatprep.subr.mxu0 0.0
        %1499 = vmatpush1.msra.mxu0 0.0
        %1500 = vmatprep.subr.mxu0 0.0
        %1501 = vmatpush1.msra.mxu0 0.0
        %1502 = vmatprep.subr.mxu0 0.0
        %1503 = vmatpush1.msra.mxu0 0.0
        %1504 = vmatprep.subr.mxu0 0.0
        %1505 = vmatpush1.msra.mxu0 0.0
        %1506 = vmatprep.subr.mxu0 0.0
        %1507 = vmatpush1.msra.mxu0 0.0
        %1508 = vmatprep.subr.mxu0 0.0
        %1509 = vmatpush1.msra.mxu0 0.0
        %1510 = vmatprep.subr.mxu0 0.0
        %1511 = vmatpush1.msra.mxu0 0.0
        %1512 = vmatprep.subr.mxu0 0.0
        %1513 = vmatpush1.msra.mxu0 0.0
        %1514 = vmatprep.subr.mxu0 0.0
        %1515 = vmatpush1.msra.mxu0 0.0
        %1516 = vmatprep.subr.mxu0 0.0
        %1517 = vmatpush1.msra.mxu0 0.0
        %1518 = vmatprep.subr.mxu0 0.0
        %1519 = vmatpush1.msra.mxu0 0.0
        %1520 = vmatprep.subr.mxu0 0.0
        %1521 = vmatpush1.msra.mxu0 0.0
        %1522 = vmatprep.subr.mxu0 0.0
        %1523 = vmatpush1.msra.mxu0 0.0
        %1524 = vmatprep.subr.mxu0 0.0
        %1525 = vmatpush1.msra.mxu0 0.0
        %1526 = vmatprep.subr.mxu0 0.0
        %1527 = vmatpush1.msra.mxu0 0.0
        %1528 = vmatprep.subr.mxu0 0.0
        %1529 = vmatpush1.msra.mxu0 0.0
        %1530 = vmatprep.subr.mxu0 0.0
        %1531 = vmatpush1.msra.mxu0 0.0
        %1532 = vmatprep.subr.mxu0 0.0
        %1533 = vmatpush1.msra.mxu0 0.0
        %1534 = vmatprep.subr.mxu0 0.0
        %1535 = vmatpush1.msra.mxu0 0.0
        %1536 = vmatprep.mubr.f32.mxu0 0.0
        %1537 = vmatmul.mubr.f32.gmra.mrb[0].mxu0 %v1470
        %v1538 = vpop.f32.mrb[0].mxu0
        %v1539 = vadd.f32 0.0, %v1538
        %v1540 = vpop.f32.mrb[0].mxu0
        %1541 = vdwg.mxu0
        %1543 = vrot.lane.b32.xlu0 %v730, 96
        %v1544 = vpop.permute.xlu0 %1543
        %v1547 = vsel %vm1380, %v1462, 0
        %1549 = vmatprep.subr.mxu0 0.0
        %1550 = vmatpush1.msra.mxu0 %v1544
        %1551 = vmatprep.subr.mxu0 0.0
        %1552 = vmatpush1.msra.mxu0 0.0
        %1553 = vmatprep.subr.mxu0 0.0
        %1554 = vmatpush1.msra.mxu0 0.0
        %1555 = vmatprep.subr.mxu0 0.0
        %1556 = vmatpush1.msra.mxu0 0.0
        %1557 = vmatprep.subr.mxu0 0.0
        %1558 = vmatpush1.msra.mxu0 0.0
        %1559 = vmatprep.subr.mxu0 0.0
        %1560 = vmatpush1.msra.mxu0 0.0
        %1561 = vmatprep.subr.mxu0 0.0
        %1562 = vmatpush1.msra.mxu0 0.0
        %1563 = vmatprep.subr.mxu0 0.0
        %1564 = vmatpush1.msra.mxu0 0.0
        %1565 = vmatprep.subr.mxu0 0.0
        %1566 = vmatpush1.msra.mxu0 0.0
        %1567 = vmatprep.subr.mxu0 0.0
        %1568 = vmatpush1.msra.mxu0 0.0
        %1569 = vmatprep.subr.mxu0 0.0
        %1570 = vmatpush1.msra.mxu0 0.0
        %1571 = vmatprep.subr.mxu0 0.0
        %1572 = vmatpush1.msra.mxu0 0.0
        %1573 = vmatprep.subr.mxu0 0.0
        %1574 = vmatpush1.msra.mxu0 0.0
        %1575 = vmatprep.subr.mxu0 0.0
        %1576 = vmatpush1.msra.mxu0 0.0
        %1577 = vmatprep.subr.mxu0 0.0
        %1578 = vmatpush1.msra.mxu0 0.0
        %1579 = vmatprep.subr.mxu0 0.0
        %1580 = vmatpush1.msra.mxu0 0.0
        %1581 = vmatprep.subr.mxu0 0.0
        %1582 = vmatpush1.msra.mxu0 0.0
        %1583 = vmatprep.subr.mxu0 0.0
        %1584 = vmatpush1.msra.mxu0 0.0
        %1585 = vmatprep.subr.mxu0 0.0
        %1586 = vmatpush1.msra.mxu0 0.0
        %1587 = vmatprep.subr.mxu0 0.0
        %1588 = vmatpush1.msra.mxu0 0.0
        %1589 = vmatprep.subr.mxu0 0.0
        %1590 = vmatpush1.msra.mxu0 0.0
        %1591 = vmatprep.subr.mxu0 0.0
        %1592 = vmatpush1.msra.mxu0 0.0
        %1593 = vmatprep.subr.mxu0 0.0
        %1594 = vmatpush1.msra.mxu0 0.0
        %1595 = vmatprep.subr.mxu0 0.0
        %1596 = vmatpush1.msra.mxu0 0.0
        %1597 = vmatprep.subr.mxu0 0.0
        %1598 = vmatpush1.msra.mxu0 0.0
        %1599 = vmatprep.subr.mxu0 0.0
        %1600 = vmatpush1.msra.mxu0 0.0
        %1601 = vmatprep.subr.mxu0 0.0
        %1602 = vmatpush1.msra.mxu0 0.0
        %1603 = vmatprep.subr.mxu0 0.0
        %1604 = vmatpush1.msra.mxu0 0.0
        %1605 = vmatprep.subr.mxu0 0.0
        %1606 = vmatpush1.msra.mxu0 0.0
        %1607 = vmatprep.subr.mxu0 0.0
        %1608 = vmatpush1.msra.mxu0 0.0
        %1609 = vmatprep.subr.mxu0 0.0
        %1610 = vmatpush1.msra.mxu0 0.0
        %1611 = vmatprep.subr.mxu0 0.0
        %1612 = vmatpush1.msra.mxu0 0.0
        %1613 = vmatprep.mubr.f32.mxu0 0.0
        %1614 = vmatmul.mubr.f32.gmra.mrb[0].mxu0 %v1547
        %v1615 = vpop.f32.mrb[0].mxu0
        %v1616 = vadd.f32 0.0, %v1615
        %v1617 = vpop.f32.mrb[0].mxu0
        %1618 = vdwg.mxu0
        %1619 = vrot.lane.b32.xlu0 %v730, 64
        %v1620 = vpop.permute.xlu0 %1619
        %v1623 = vsel %vm1380, %v1463, 0
        %1625 = vmatprep.subr.mxu0 0.0
        %1626 = vmatpush1.msra.mxu0 %v1620
        %1627 = vmatprep.subr.mxu0 0.0
        %1628 = vmatpush1.msra.mxu0 0.0
        %1629 = vmatprep.subr.mxu0 0.0
        %1630 = vmatpush1.msra.mxu0 0.0
        %1631 = vmatprep.subr.mxu0 0.0
        %1632 = vmatpush1.msra.mxu0 0.0
        %1633 = vmatprep.subr.mxu0 0.0
        %1634 = vmatpush1.msra.mxu0 0.0
        %1635 = vmatprep.subr.mxu0 0.0
        %1636 = vmatpush1.msra.mxu0 0.0
        %1637 = vmatprep.subr.mxu0 0.0
        %1638 = vmatpush1.msra.mxu0 0.0
        %1639 = vmatprep.subr.mxu0 0.0
        %1640 = vmatpush1.msra.mxu0 0.0
        %1641 = vmatprep.subr.mxu0 0.0
        %1642 = vmatpush1.msra.mxu0 0.0
        %1643 = vmatprep.subr.mxu0 0.0
        %1644 = vmatpush1.msra.mxu0 0.0
        %1645 = vmatprep.subr.mxu0 0.0
        %1646 = vmatpush1.msra.mxu0 0.0
        %1647 = vmatprep.subr.mxu0 0.0
        %1648 = vmatpush1.msra.mxu0 0.0
        %1649 = vmatprep.subr.mxu0 0.0
        %1650 = vmatpush1.msra.mxu0 0.0
        %1651 = vmatprep.subr.mxu0 0.0
        %1652 = vmatpush1.msra.mxu0 0.0
        %1653 = vmatprep.subr.mxu0 0.0
        %1654 = vmatpush1.msra.mxu0 0.0
        %1655 = vmatprep.subr.mxu0 0.0
        %1656 = vmatpush1.msra.mxu0 0.0
        %1657 = vmatprep.subr.mxu0 0.0
        %1658 = vmatpush1.msra.mxu0 0.0
        %1659 = vmatprep.subr.mxu0 0.0
        %1660 = vmatpush1.msra.mxu0 0.0
        %1661 = vmatprep.subr.mxu0 0.0
        %1662 = vmatpush1.msra.mxu0 0.0
        %1663 = vmatprep.subr.mxu0 0.0
        %1664 = vmatpush1.msra.mxu0 0.0
        %1665 = vmatprep.subr.mxu0 0.0
        %1666 = vmatpush1.msra.mxu0 0.0
        %1667 = vmatprep.subr.mxu0 0.0
        %1668 = vmatpush1.msra.mxu0 0.0
        %1669 = vmatprep.subr.mxu0 0.0
        %1670 = vmatpush1.msra.mxu0 0.0
        %1671 = vmatprep.subr.mxu0 0.0
        %1672 = vmatpush1.msra.mxu0 0.0
        %1673 = vmatprep.subr.mxu0 0.0
        %1674 = vmatpush1.msra.mxu0 0.0
        %1675 = vmatprep.subr.mxu0 0.0
        %1676 = vmatpush1.msra.mxu0 0.0
        %1677 = vmatprep.subr.mxu0 0.0
        %1678 = vmatpush1.msra.mxu0 0.0
        %1679 = vmatprep.subr.mxu0 0.0
        %1680 = vmatpush1.msra.mxu0 0.0
        %1681 = vmatprep.subr.mxu0 0.0
        %1682 = vmatpush1.msra.mxu0 0.0
        %1683 = vmatprep.subr.mxu0 0.0
        %1684 = vmatpush1.msra.mxu0 0.0
        %1685 = vmatprep.subr.mxu0 0.0
        %1686 = vmatpush1.msra.mxu0 0.0
        %1687 = vmatprep.subr.mxu0 0.0
        %1688 = vmatpush1.msra.mxu0 0.0
        %1689 = vmatprep.mubr.f32.mxu0 0.0
        %1690 = vmatmul.mubr.f32.gmra.mrb[0].mxu0 %v1623
        %v1691 = vpop.f32.mrb[0].mxu0
        %v1692 = vadd.f32 0.0, %v1691
        %v1693 = vpop.f32.mrb[0].mxu0
        %1694 = vdwg.mxu0
        %1695 = vrot.lane.b32.xlu0 %v730, 32
        %v1696 = vpop.permute.xlu0 %1695
        %v1699 = vsel %vm1380, %v1464, 0
        %1701 = vmatprep.subr.mxu0 0.0
        %1702 = vmatpush1.msra.mxu0 %v1696
        %1703 = vmatprep.subr.mxu0 0.0
        %1704 = vmatpush1.msra.mxu0 0.0
        %1705 = vmatprep.subr.mxu0 0.0
        %1706 = vmatpush1.msra.mxu0 0.0
        %1707 = vmatprep.subr.mxu0 0.0
        %1708 = vmatpush1.msra.mxu0 0.0
        %1709 = vmatprep.subr.mxu0 0.0
        %1710 = vmatpush1.msra.mxu0 0.0
        %1711 = vmatprep.subr.mxu0 0.0
        %1712 = vmatpush1.msra.mxu0 0.0
        %1713 = vmatprep.subr.mxu0 0.0
        %1714 = vmatpush1.msra.mxu0 0.0
        %1715 = vmatprep.subr.mxu0 0.0
        %1716 = vmatpush1.msra.mxu0 0.0
        %1717 = vmatprep.subr.mxu0 0.0
        %1718 = vmatpush1.msra.mxu0 0.0
        %1719 = vmatprep.subr.mxu0 0.0
        %1720 = vmatpush1.msra.mxu0 0.0
        %1721 = vmatprep.subr.mxu0 0.0
        %1722 = vmatpush1.msra.mxu0 0.0
        %1723 = vmatprep.subr.mxu0 0.0
        %1724 = vmatpush1.msra.mxu0 0.0
        %1725 = vmatprep.subr.mxu0 0.0
        %1726 = vmatpush1.msra.mxu0 0.0
        %1727 = vmatprep.subr.mxu0 0.0
        %1728 = vmatpush1.msra.mxu0 0.0
        %1729 = vmatprep.subr.mxu0 0.0
        %1730 = vmatpush1.msra.mxu0 0.0
        %1731 = vmatprep.subr.mxu0 0.0
        %1732 = vmatpush1.msra.mxu0 0.0
        %1733 = vmatprep.subr.mxu0 0.0
        %1734 = vmatpush1.msra.mxu0 0.0
        %1735 = vmatprep.subr.mxu0 0.0
        %1736 = vmatpush1.msra.mxu0 0.0
        %1737 = vmatprep.subr.mxu0 0.0
        %1738 = vmatpush1.msra.mxu0 0.0
        %1739 = vmatprep.subr.mxu0 0.0
        %1740 = vmatpush1.msra.mxu0 0.0
        %1741 = vmatprep.subr.mxu0 0.0
        %1742 = vmatpush1.msra.mxu0 0.0
        %1743 = vmatprep.subr.mxu0 0.0
        %1744 = vmatpush1.msra.mxu0 0.0
        %1745 = vmatprep.subr.mxu0 0.0
        %1746 = vmatpush1.msra.mxu0 0.0
        %1747 = vmatprep.subr.mxu0 0.0
        %1748 = vmatpush1.msra.mxu0 0.0
        %1749 = vmatprep.subr.mxu0 0.0
        %1750 = vmatpush1.msra.mxu0 0.0
        %1751 = vmatprep.subr.mxu0 0.0
        %1752 = vmatpush1.msra.mxu0 0.0
        %1753 = vmatprep.subr.mxu0 0.0
        %1754 = vmatpush1.msra.mxu0 0.0
        %1755 = vmatprep.subr.mxu0 0.0
        %1756 = vmatpush1.msra.mxu0 0.0
        %1757 = vmatprep.subr.mxu0 0.0
        %1758 = vmatpush1.msra.mxu0 0.0
        %1759 = vmatprep.subr.mxu0 0.0
        %1760 = vmatpush1.msra.mxu0 0.0
        %1761 = vmatprep.subr.mxu0 0.0
        %1762 = vmatpush1.msra.mxu0 0.0
        %1763 = vmatprep.subr.mxu0 0.0
        %1764 = vmatpush1.msra.mxu0 0.0
        %1765 = vmatprep.mubr.f32.mxu0 0.0
        %1766 = vmatmul.mubr.f32.gmra.mrb[0].mxu0 %v1699
        %v1767 = vpop.f32.mrb[0].mxu0
        %v1768 = vadd.f32 0.0, %v1767
        %v1769 = vpop.f32.mrb[0].mxu0
        %1770 = vdwg.mxu0
        %1772 = vrot.lane.b32.xlu0 %v1616, 32
        %v1773 = vpop.permute.xlu0 %1772
        %1776 = vrot.lane.b32.xlu0 %v1692, 64
        %v1777 = vpop.permute.xlu0 %1776
        %1780 = vrot.lane.b32.xlu0 %v1768, 96
        %v1781 = vpop.permute.xlu0 %1780
        %v1783 = vsel %vm738, %v1539, %v1773
        %vm1784 = vcmask 523264
        %v1785 = vsel %vm1784, %v1783, %v1777
        %vm1786 = vcmask 785408
        %v1787 = vsel %vm1786, %v1785, %v1781
        %v1789 = vsel %vm1380, %v1465, 0
        %1791 = vmatprep.subr.mxu0 0.0
        %1792 = vmatpush1.msra.mxu0 %v735
        %1793 = vmatprep.subr.mxu0 0.0
        %1794 = vmatpush1.msra.mxu0 0.0
        %1795 = vmatprep.subr.mxu0 0.0
        %1796 = vmatpush1.msra.mxu0 0.0
        %1797 = vmatprep.subr.mxu0 0.0
        %1798 = vmatpush1.msra.mxu0 0.0
        %1799 = vmatprep.subr.mxu0 0.0
        %1800 = vmatpush1.msra.mxu0 0.0
        %1801 = vmatprep.subr.mxu0 0.0
        %1802 = vmatpush1.msra.mxu0 0.0
        %1803 = vmatprep.subr.mxu0 0.0
        %1804 = vmatpush1.msra.mxu0 0.0
        %1805 = vmatprep.subr.mxu0 0.0
        %1806 = vmatpush1.msra.mxu0 0.0
        %1807 = vmatprep.subr.mxu0 0.0
        %1808 = vmatpush1.msra.mxu0 0.0
        %1809 = vmatprep.subr.mxu0 0.0
        %1810 = vmatpush1.msra.mxu0 0.0
        %1811 = vmatprep.subr.mxu0 0.0
        %1812 = vmatpush1.msra.mxu0 0.0
        %1813 = vmatprep.subr.mxu0 0.0
        %1814 = vmatpush1.msra.mxu0 0.0
        %1815 = vmatprep.subr.mxu0 0.0
        %1816 = vmatpush1.msra.mxu0 0.0
        %1817 = vmatprep.subr.mxu0 0.0
        %1818 = vmatpush1.msra.mxu0 0.0
        %1819 = vmatprep.subr.mxu0 0.0
        %1820 = vmatpush1.msra.mxu0 0.0
        %1821 = vmatprep.subr.mxu0 0.0
        %1822 = vmatpush1.msra.mxu0 0.0
        %1823 = vmatprep.subr.mxu0 0.0
        %1824 = vmatpush1.msra.mxu0 0.0
        %1825 = vmatprep.subr.mxu0 0.0
        %1826 = vmatpush1.msra.mxu0 0.0
        %1827 = vmatprep.subr.mxu0 0.0
        %1828 = vmatpush1.msra.mxu0 0.0
        %1829 = vmatprep.subr.mxu0 0.0
        %1830 = vmatpush1.msra.mxu0 0.0
        %1831 = vmatprep.subr.mxu0 0.0
        %1832 = vmatpush1.msra.mxu0 0.0
        %1833 = vmatprep.subr.mxu0 0.0
        %1834 = vmatpush1.msra.mxu0 0.0
        %1835 = vmatprep.subr.mxu0 0.0
        %1836 = vmatpush1.msra.mxu0 0.0
        %1837 = vmatprep.subr.mxu0 0.0
        %1838 = vmatpush1.msra.mxu0 0.0
        %1839 = vmatprep.subr.mxu0 0.0
        %1840 = vmatpush1.msra.mxu0 0.0
        %1841 = vmatprep.subr.mxu0 0.0
        %1842 = vmatpush1.msra.mxu0 0.0
        %1843 = vmatprep.subr.mxu0 0.0
        %1844 = vmatpush1.msra.mxu0 0.0
        %1845 = vmatprep.subr.mxu0 0.0
        %1846 = vmatpush1.msra.mxu0 0.0
        %1847 = vmatprep.subr.mxu0 0.0
        %1848 = vmatpush1.msra.mxu0 0.0
        %1849 = vmatprep.subr.mxu0 0.0
        %1850 = vmatpush1.msra.mxu0 0.0
        %1851 = vmatprep.subr.mxu0 0.0
        %1852 = vmatpush1.msra.mxu0 0.0
        %1853 = vmatprep.subr.mxu0 0.0
        %1854 = vmatpush1.msra.mxu0 0.0
        %1855 = vmatprep.mubr.f32.mxu0 0.0
        %1856 = vmatmul.mubr.f32.gmra.mrb[0].mxu0 %v1789
        %v1857 = vpop.f32.mrb[0].mxu0
        %v1858 = vadd.f32 0.0, %v1857
        %v1859 = vpop.f32.mrb[0].mxu0
        %1860 = vdwg.mxu0
        %1862 = vrot.lane.b32.xlu0 %v735, 96
        %v1863 = vpop.permute.xlu0 %1862
        %v1866 = vsel %vm1380, %v1466, 0
        %1868 = vmatprep.subr.mxu0 0.0
        %1869 = vmatpush1.msra.mxu0 %v1863
        %1870 = vmatprep.subr.mxu0 0.0
        %1871 = vmatpush1.msra.mxu0 0.0
        %1872 = vmatprep.subr.mxu0 0.0
        %1873 = vmatpush1.msra.mxu0 0.0
        %1874 = vmatprep.subr.mxu0 0.0
        %1875 = vmatpush1.msra.mxu0 0.0
        %1876 = vmatprep.subr.mxu0 0.0
        %1877 = vmatpush1.msra.mxu0 0.0
        %1878 = vmatprep.subr.mxu0 0.0
        %1879 = vmatpush1.msra.mxu0 0.0
        %1880 = vmatprep.subr.mxu0 0.0
        %1881 = vmatpush1.msra.mxu0 0.0
        %1882 = vmatprep.subr.mxu0 0.0
        %1883 = vmatpush1.msra.mxu0 0.0
        %1884 = vmatprep.subr.mxu0 0.0
        %1885 = vmatpush1.msra.mxu0 0.0
        %1886 = vmatprep.subr.mxu0 0.0
        %1887 = vmatpush1.msra.mxu0 0.0
        %1888 = vmatprep.subr.mxu0 0.0
        %1889 = vmatpush1.msra.mxu0 0.0
        %1890 = vmatprep.subr.mxu0 0.0
        %1891 = vmatpush1.msra.mxu0 0.0
        %1892 = vmatprep.subr.mxu0 0.0
        %1893 = vmatpush1.msra.mxu0 0.0
        %1894 = vmatprep.subr.mxu0 0.0
        %1895 = vmatpush1.msra.mxu0 0.0
        %1896 = vmatprep.subr.mxu0 0.0
        %1897 = vmatpush1.msra.mxu0 0.0
        %1898 = vmatprep.subr.mxu0 0.0
        %1899 = vmatpush1.msra.mxu0 0.0
        %1900 = vmatprep.subr.mxu0 0.0
        %1901 = vmatpush1.msra.mxu0 0.0
        %1902 = vmatprep.subr.mxu0 0.0
        %1903 = vmatpush1.msra.mxu0 0.0
        %1904 = vmatprep.subr.mxu0 0.0
        %1905 = vmatpush1.msra.mxu0 0.0
        %1906 = vmatprep.subr.mxu0 0.0
        %1907 = vmatpush1.msra.mxu0 0.0
        %1908 = vmatprep.subr.mxu0 0.0
        %1909 = vmatpush1.msra.mxu0 0.0
        %1910 = vmatprep.subr.mxu0 0.0
        %1911 = vmatpush1.msra.mxu0 0.0
        %1912 = vmatprep.subr.mxu0 0.0
        %1913 = vmatpush1.msra.mxu0 0.0
        %1914 = vmatprep.subr.mxu0 0.0
        %1915 = vmatpush1.msra.mxu0 0.0
        %1916 = vmatprep.subr.mxu0 0.0
        %1917 = vmatpush1.msra.mxu0 0.0
        %1918 = vmatprep.subr.mxu0 0.0
        %1919 = vmatpush1.msra.mxu0 0.0
        %1920 = vmatprep.subr.mxu0 0.0
        %1921 = vmatpush1.msra.mxu0 0.0
        %1922 = vmatprep.subr.mxu0 0.0
        %1923 = vmatpush1.msra.mxu0 0.0
        %1924 = vmatprep.subr.mxu0 0.0
        %1925 = vmatpush1.msra.mxu0 0.0
        %1926 = vmatprep.subr.mxu0 0.0
        %1927 = vmatpush1.msra.mxu0 0.0
        %1928 = vmatprep.subr.mxu0 0.0
        %1929 = vmatpush1.msra.mxu0 0.0
        %1930 = vmatprep.subr.mxu0 0.0
        %1931 = vmatpush1.msra.mxu0 0.0
        %1932 = vmatprep.mubr.f32.mxu0 0.0
        %1933 = vmatmul.mubr.f32.gmra.mrb[0].mxu0 %v1866
        %v1934 = vpop.f32.mrb[0].mxu0
        %v1935 = vadd.f32 0.0, %v1934
        %v1936 = vpop.f32.mrb[0].mxu0
        %1937 = vdwg.mxu0
        %1938 = vrot.lane.b32.xlu0 %v735, 64
        %v1939 = vpop.permute.xlu0 %1938
        %v1942 = vsel %vm1380, %v1467, 0
        %1944 = vmatprep.subr.mxu0 0.0
        %1945 = vmatpush1.msra.mxu0 %v1939
        %1946 = vmatprep.subr.mxu0 0.0
        %1947 = vmatpush1.msra.mxu0 0.0
        %1948 = vmatprep.subr.mxu0 0.0
        %1949 = vmatpush1.msra.mxu0 0.0
        %1950 = vmatprep.subr.mxu0 0.0
        %1951 = vmatpush1.msra.mxu0 0.0
        %1952 = vmatprep.subr.mxu0 0.0
        %1953 = vmatpush1.msra.mxu0 0.0
        %1954 = vmatprep.subr.mxu0 0.0
        %1955 = vmatpush1.msra.mxu0 0.0
        %1956 = vmatprep.subr.mxu0 0.0
        %1957 = vmatpush1.msra.mxu0 0.0
        %1958 = vmatprep.subr.mxu0 0.0
        %1959 = vmatpush1.msra.mxu0 0.0
        %1960 = vmatprep.subr.mxu0 0.0
        %1961 = vmatpush1.msra.mxu0 0.0
        %1962 = vmatprep.subr.mxu0 0.0
        %1963 = vmatpush1.msra.mxu0 0.0
        %1964 = vmatprep.subr.mxu0 0.0
        %1965 = vmatpush1.msra.mxu0 0.0
        %1966 = vmatprep.subr.mxu0 0.0
        %1967 = vmatpush1.msra.mxu0 0.0
        %1968 = vmatprep.subr.mxu0 0.0
        %1969 = vmatpush1.msra.mxu0 0.0
        %1970 = vmatprep.subr.mxu0 0.0
        %1971 = vmatpush1.msra.mxu0 0.0
        %1972 = vmatprep.subr.mxu0 0.0
        %1973 = vmatpush1.msra.mxu0 0.0
        %1974 = vmatprep.subr.mxu0 0.0
        %1975 = vmatpush1.msra.mxu0 0.0
        %1976 = vmatprep.subr.mxu0 0.0
        %1977 = vmatpush1.msra.mxu0 0.0
        %1978 = vmatprep.subr.mxu0 0.0
        %1979 = vmatpush1.msra.mxu0 0.0
        %1980 = vmatprep.subr.mxu0 0.0
        %1981 = vmatpush1.msra.mxu0 0.0
        %1982 = vmatprep.subr.mxu0 0.0
        %1983 = vmatpush1.msra.mxu0 0.0
        %1984 = vmatprep.subr.mxu0 0.0
        %1985 = vmatpush1.msra.mxu0 0.0
        %1986 = vmatprep.subr.mxu0 0.0
        %1987 = vmatpush1.msra.mxu0 0.0
        %1988 = vmatprep.subr.mxu0 0.0
        %1989 = vmatpush1.msra.mxu0 0.0
        %1990 = vmatprep.subr.mxu0 0.0
        %1991 = vmatpush1.msra.mxu0 0.0
        %1992 = vmatprep.subr.mxu0 0.0
        %1993 = vmatpush1.msra.mxu0 0.0
        %1994 = vmatprep.subr.mxu0 0.0
        %1995 = vmatpush1.msra.mxu0 0.0
        %1996 = vmatprep.subr.mxu0 0.0
        %1997 = vmatpush1.msra.mxu0 0.0
        %1998 = vmatprep.subr.mxu0 0.0
        %1999 = vmatpush1.msra.mxu0 0.0
        %2000 = vmatprep.subr.mxu0 0.0
        %2001 = vmatpush1.msra.mxu0 0.0
        %2002 = vmatprep.subr.mxu0 0.0
        %2003 = vmatpush1.msra.mxu0 0.0
        %2004 = vmatprep.subr.mxu0 0.0
        %2005 = vmatpush1.msra.mxu0 0.0
        %2006 = vmatprep.subr.mxu0 0.0
        %2007 = vmatpush1.msra.mxu0 0.0
        %2008 = vmatprep.mubr.f32.mxu0 0.0
        %2009 = vmatmul.mubr.f32.gmra.mrb[0].mxu0 %v1942
        %v2010 = vpop.f32.mrb[0].mxu0
        %v2011 = vadd.f32 0.0, %v2010
        %v2012 = vpop.f32.mrb[0].mxu0
        %2013 = vdwg.mxu0
        %2014 = vrot.lane.b32.xlu0 %v735, 32
        %v2015 = vpop.permute.xlu0 %2014
        %v2018 = vsel %vm1380, %v1468, 0
        %2020 = vmatprep.subr.mxu0 0.0
        %2021 = vmatpush1.msra.mxu0 %v2015
        %2022 = vmatprep.subr.mxu0 0.0
        %2023 = vmatpush1.msra.mxu0 0.0
        %2024 = vmatprep.subr.mxu0 0.0
        %2025 = vmatpush1.msra.mxu0 0.0
        %2026 = vmatprep.subr.mxu0 0.0
        %2027 = vmatpush1.msra.mxu0 0.0
        %2028 = vmatprep.subr.mxu0 0.0
        %2029 = vmatpush1.msra.mxu0 0.0
        %2030 = vmatprep.subr.mxu0 0.0
        %2031 = vmatpush1.msra.mxu0 0.0
        %2032 = vmatprep.subr.mxu0 0.0
        %2033 = vmatpush1.msra.mxu0 0.0
        %2034 = vmatprep.subr.mxu0 0.0
        %2035 = vmatpush1.msra.mxu0 0.0
        %2036 = vmatprep.subr.mxu0 0.0
        %2037 = vmatpush1.msra.mxu0 0.0
        %2038 = vmatprep.subr.mxu0 0.0
        %2039 = vmatpush1.msra.mxu0 0.0
        %2040 = vmatprep.subr.mxu0 0.0
        %2041 = vmatpush1.msra.mxu0 0.0
        %2042 = vmatprep.subr.mxu0 0.0
        %2043 = vmatpush1.msra.mxu0 0.0
        %2044 = vmatprep.subr.mxu0 0.0
        %2045 = vmatpush1.msra.mxu0 0.0
        %2046 = vmatprep.subr.mxu0 0.0
        %2047 = vmatpush1.msra.mxu0 0.0
        %2048 = vmatprep.subr.mxu0 0.0
        %2049 = vmatpush1.msra.mxu0 0.0
        %2050 = vmatprep.subr.mxu0 0.0
        %2051 = vmatpush1.msra.mxu0 0.0
        %2052 = vmatprep.subr.mxu0 0.0
        %2053 = vmatpush1.msra.mxu0 0.0
        %2054 = vmatprep.subr.mxu0 0.0
        %2055 = vmatpush1.msra.mxu0 0.0
        %2056 = vmatprep.subr.mxu0 0.0
        %2057 = vmatpush1.msra.mxu0 0.0
        %2058 = vmatprep.subr.mxu0 0.0
        %2059 = vmatpush1.msra.mxu0 0.0
        %2060 = vmatprep.subr.mxu0 0.0
        %2061 = vmatpush1.msra.mxu0 0.0
        %2062 = vmatprep.subr.mxu0 0.0
        %2063 = vmatpush1.msra.mxu0 0.0
        %2064 = vmatprep.subr.mxu0 0.0
        %2065 = vmatpush1.msra.mxu0 0.0
        %2066 = vmatprep.subr.mxu0 0.0
        %2067 = vmatpush1.msra.mxu0 0.0
        %2068 = vmatprep.subr.mxu0 0.0
        %2069 = vmatpush1.msra.mxu0 0.0
        %2070 = vmatprep.subr.mxu0 0.0
        %2071 = vmatpush1.msra.mxu0 0.0
        %2072 = vmatprep.subr.mxu0 0.0
        %2073 = vmatpush1.msra.mxu0 0.0
        %2074 = vmatprep.subr.mxu0 0.0
        %2075 = vmatpush1.msra.mxu0 0.0
        %2076 = vmatprep.subr.mxu0 0.0
        %2077 = vmatpush1.msra.mxu0 0.0
        %2078 = vmatprep.subr.mxu0 0.0
        %2079 = vmatpush1.msra.mxu0 0.0
        %2080 = vmatprep.subr.mxu0 0.0
        %2081 = vmatpush1.msra.mxu0 0.0
        %2082 = vmatprep.subr.mxu0 0.0
        %2083 = vmatpush1.msra.mxu0 0.0
        %2084 = vmatprep.mubr.f32.mxu0 0.0
        %2085 = vmatmul.mubr.f32.gmra.mrb[0].mxu0 %v2018
        %v2086 = vpop.f32.mrb[0].mxu0
        %v2087 = vadd.f32 0.0, %v2086
        %v2088 = vpop.f32.mrb[0].mxu0
        %2089 = vdwg.mxu0
        %2091 = vrot.lane.b32.xlu0 %v1935, 32
        %v2092 = vpop.permute.xlu0 %2091
        %2095 = vrot.lane.b32.xlu0 %v2011, 64
        %v2096 = vpop.permute.xlu0 %2095
        %2099 = vrot.lane.b32.xlu0 %v2087, 96
        %v2100 = vpop.permute.xlu0 %2099
        %v2102 = vsel %vm738, %v1858, %v2092
        %v2103 = vsel %vm1784, %v2102, %v2096
        %v2104 = vsel %vm1786, %v2103, %v2100
        %v2105 = vld [vmem:[#allocation7] sm:$0xff]
        %v2106 = vld [vmem:[#allocation7 + $0x8] sm:$0xff]
        %v2107 = vld [vmem:[#allocation7 + $0x10] sm:$0xff]
        %v2108 = vld [vmem:[#allocation7 + $0x18] sm:$0xff]
        %v2109 = vld [vmem:[#allocation7 + $0x20] sm:$0xff]
        %v2110 = vld [vmem:[#allocation7 + $0x28] sm:$0xff]
        %v2111 = vld [vmem:[#allocation7 + $0x30] sm:$0xff]
        %v2112 = vld [vmem:[#allocation7 + $0x38] sm:$0xff]
        %v2113 = vld [vmem:[#allocation7 + $0x40] sm:$0xff]
        %v2114 = vld [vmem:[#allocation7 + $0x48] sm:$0xff]
        %v2115 = vld [vmem:[#allocation7 + $0x50] sm:$0xff]
        %v2116 = vld [vmem:[#allocation7 + $0x58] sm:$0xff]
        %v2117 = vld [vmem:[#allocation7 + $0x60] sm:$0xff]
        %v2118 = vld [vmem:[#allocation7 + $0x68] sm:$0xff]
        %v2119 = vld [vmem:[#allocation7 + $0x70] sm:$0xff]
        %v2120 = vld [vmem:[#allocation7 + $0x78] sm:$0xff]
        %v2121 = vld [vmem:[%s4] sm:$0x1]
        %v2123 = vlaneseq
        %v2124 = vshrl.u32 %v2123, 7
        %v2125 = vsub.s32 0, %v2124
        %v2126 = vrot.slane %v2121, %v2125
        %2128 = vmatprep.subr.mxu0 0.0
        %2129 = vmatpush1.msra.mxu0 %v2105
        %2130 = vmatprep.subr.mxu0 0.0
        %2131 = vmatpush1.msra.mxu0 %v2106
        %2132 = vmatprep.subr.mxu0 0.0
        %2133 = vmatpush1.msra.mxu0 %v2107
        %2134 = vmatprep.subr.mxu0 0.0
        %2135 = vmatpush1.msra.mxu0 %v2108
        %2136 = vmatprep.subr.mxu0 0.0
        %2137 = vmatpush1.msra.mxu0 %v2109
        %2138 = vmatprep.subr.mxu0 0.0
        %2139 = vmatpush1.msra.mxu0 %v2110
        %2140 = vmatprep.subr.mxu0 0.0
        %2141 = vmatpush1.msra.mxu0 %v2111
        %2142 = vmatprep.subr.mxu0 0.0
        %2143 = vmatpush1.msra.mxu0 %v2112
        %2144 = vmatprep.subr.mxu0 0.0
        %2145 = vmatpush1.msra.mxu0 %v2113
        %2146 = vmatprep.subr.mxu0 0.0
        %2147 = vmatpush1.msra.mxu0 %v2114
        %2148 = vmatprep.subr.mxu0 0.0
        %2149 = vmatpush1.msra.mxu0 %v2115
        %2150 = vmatprep.subr.mxu0 0.0
        %2151 = vmatpush1.msra.mxu0 %v2116
        %2152 = vmatprep.subr.mxu0 0.0
        %2153 = vmatpush1.msra.mxu0 %v2117
        %2154 = vmatprep.subr.mxu0 0.0
        %2155 = vmatpush1.msra.mxu0 %v2118
        %2156 = vmatprep.subr.mxu0 0.0
        %2157 = vmatpush1.msra.mxu0 %v2119
        %2158 = vmatprep.subr.mxu0 0.0
        %2159 = vmatpush1.msra.mxu0 %v2120
        %2160 = vmatprep.subr.mxu0 0.0
        %2161 = vmatpush1.msra.mxu0 0.0
        %2162 = vmatprep.subr.mxu0 0.0
        %2163 = vmatpush1.msra.mxu0 0.0
        %2164 = vmatprep.subr.mxu0 0.0
        %2165 = vmatpush1.msra.mxu0 0.0
        %2166 = vmatprep.subr.mxu0 0.0
        %2167 = vmatpush1.msra.mxu0 0.0
        %2168 = vmatprep.subr.mxu0 0.0
        %2169 = vmatpush1.msra.mxu0 0.0
        %2170 = vmatprep.subr.mxu0 0.0
        %2171 = vmatpush1.msra.mxu0 0.0
        %2172 = vmatprep.subr.mxu0 0.0
        %2173 = vmatpush1.msra.mxu0 0.0
        %2174 = vmatprep.subr.mxu0 0.0
        %2175 = vmatpush1.msra.mxu0 0.0
        %2176 = vmatprep.subr.mxu0 0.0
        %2177 = vmatpush1.msra.mxu0 0.0
        %2178 = vmatprep.subr.mxu0 0.0
        %2179 = vmatpush1.msra.mxu0 0.0
        %2180 = vmatprep.subr.mxu0 0.0
        %2181 = vmatpush1.msra.mxu0 0.0
        %2182 = vmatprep.subr.mxu0 0.0
        %2183 = vmatpush1.msra.mxu0 0.0
        %2184 = vmatprep.subr.mxu0 0.0
        %2185 = vmatpush1.msra.mxu0 0.0
        %2186 = vmatprep.subr.mxu0 0.0
        %2187 = vmatpush1.msra.mxu0 0.0
        %2188 = vmatprep.subr.mxu0 0.0
        %2189 = vmatpush1.msra.mxu0 0.0
        %2190 = vmatprep.subr.mxu0 0.0
        %2191 = vmatpush1.msra.mxu0 0.0
        %2192 = vmatprep.mubr.f32.mxu0 0.0
        %2193 = vmatmul.mubr.f32.gmra.mrb[0].mxu0 %v1787
        %v2194 = vpop.f32.mrb[0].mxu0
        %v2195 = vadd.f32 %v2126, %v2194
        %v2196 = vpop.f32.mrb[0].mxu0
        %2197 = vmatprep.mubr.f32.mxu0 0.0
        %2198 = vmatmul.mubr.f32.gmra.mrb[0].mxu0 %v2104
        %v2199 = vpop.f32.mrb[0].mxu0
        %v2200 = vadd.f32 %v2126, %v2199
        %v2201 = vpop.f32.mrb[0].mxu0
        %2202 = vdwg.mxu0
        %v2203 = vadd.f32 %v519, %v2195
        %v2204 = vadd.f32 %v520, %v2200
        %v2205 = vld [vmem:[%s5] sm:$0x1]
        %v2206 = vld [vmem:[%s6] sm:$0x1]
        %2207 = vadd.xlane.f32.xlu0 %v2203
        %v2208 = vpop.xlane.xlu0 %2207
        %2209 = vadd.xlane.f32.xlu0 %v2204
        %v2210 = vpop.xlane.xlu0 %2209
        %v2211 = vrcp.pop 128.0
        %v2212 = vmul.f32 %v2208, %v2211
        %v2213 = vmul.f32 %v2210, %v2211
        %v2214 = vsub.f32 %v2203, %v2212
        %v2215 = vsub.f32 %v2204, %v2213
        %v2216 = vmul.f32 %v2214, %v2214
        %v2217 = vmul.f32 %v2215, %v2215
        %2218 = vadd.xlane.f32.xlu0 %v2216
        %v2219 = vpop.xlane.xlu0 %2218
        %2220 = vadd.xlane.f32.xlu0 %v2217
        %v2221 = vpop.xlane.xlu0 %2220
        %v2222 = vmul.f32 %v2219, %v2211
        %v2223 = vmul.f32 %v2221, %v2211
        %v2224 = vadd.f32 %v2222, 1e-05
        %v2225 = vadd.f32 %v2223, 1e-05
        %v2226 = vrsqrt.pop %v2224
        %v2227 = vrsqrt.pop %v2225
        %v2228 = vmul.f32 %v2214, %v2226
        %v2229 = vmul.f32 %v2215, %v2227
        %v2231 = vlaneseq
        %v2232 = vshrl.u32 %v2231, 7
        %v2233 = vsub.s32 0, %v2232
        %v2234 = vrot.slane %v2205, %v2233
        %v2236 = vmul.f32 %v2228, %v2234
        %v2237 = vmul.f32 %v2229, %v2234
        %v2239 = vlaneseq
        %v2240 = vshrl.u32 %v2239, 7
        %v2241 = vsub.s32 0, %v2240
        %v2242 = vrot.slane %v2206, %v2241
        %v2244 = vadd.f32 %v2236, %v2242
        %v2245 = vadd.f32 %v2237, %v2242
        %v2246 = vld [vmem:[#allocation8] sm:$0xff]
        %v2247 = vld [vmem:[#allocation8 + $0x8] sm:$0xff]
        %v2248 = vld [vmem:[#allocation8 + $0x10] sm:$0xff]
        %v2249 = vld [vmem:[#allocation8 + $0x18] sm:$0xff]
        %v2250 = vld [vmem:[#allocation8 + $0x20] sm:$0xff]
        %v2251 = vld [vmem:[#allocation8 + $0x28] sm:$0xff]
        %v2252 = vld [vmem:[#allocation8 + $0x30] sm:$0xff]
        %v2253 = vld [vmem:[#allocation8 + $0x38] sm:$0xff]
        %v2254 = vld [vmem:[#allocation8 + $0x40] sm:$0xff]
        %v2255 = vld [vmem:[#allocation8 + $0x48] sm:$0xff]
        %v2256 = vld [vmem:[#allocation8 + $0x50] sm:$0xff]
        %v2257 = vld [vmem:[#allocation8 + $0x58] sm:$0xff]
        %v2258 = vld [vmem:[#allocation8 + $0x60] sm:$0xff]
        %v2259 = vld [vmem:[#allocation8 + $0x68] sm:$0xff]
        %v2260 = vld [vmem:[#allocation8 + $0x70] sm:$0xff]
        %v2261 = vld [vmem:[#allocation8 + $0x78] sm:$0xff]
        %v2262 = vld [vmem:[#allocation8 + $0x80] sm:$0xff]
        %v2263 = vld [vmem:[#allocation8 + $0x88] sm:$0xff]
        %v2264 = vld [vmem:[#allocation8 + $0x90] sm:$0xff]
        %v2265 = vld [vmem:[#allocation8 + $0x98] sm:$0xff]
        %v2266 = vld [vmem:[#allocation8 + $0xa0] sm:$0xff]
        %v2267 = vld [vmem:[#allocation8 + $0xa8] sm:$0xff]
        %v2268 = vld [vmem:[#allocation8 + $0xb0] sm:$0xff]
        %v2269 = vld [vmem:[#allocation8 + $0xb8] sm:$0xff]
        %v2270 = vld [vmem:[#allocation8 + $0xc0] sm:$0xff]
        %v2271 = vld [vmem:[#allocation8 + $0xc8] sm:$0xff]
        %v2272 = vld [vmem:[#allocation8 + $0xd0] sm:$0xff]
        %v2273 = vld [vmem:[#allocation8 + $0xd8] sm:$0xff]
        %v2274 = vld [vmem:[#allocation8 + $0xe0] sm:$0xff]
        %v2275 = vld [vmem:[#allocation8 + $0xe8] sm:$0xff]
        %v2276 = vld [vmem:[#allocation8 + $0xf0] sm:$0xff]
        %v2277 = vld [vmem:[#allocation8 + $0xf8] sm:$0xff]
        %v2278 = vld [vmem:[#allocation8 + $0x100] sm:$0xff]
        %v2279 = vld [vmem:[#allocation8 + $0x108] sm:$0xff]
        %v2280 = vld [vmem:[#allocation8 + $0x110] sm:$0xff]
        %v2281 = vld [vmem:[#allocation8 + $0x118] sm:$0xff]
        %v2282 = vld [vmem:[#allocation8 + $0x120] sm:$0xff]
        %v2283 = vld [vmem:[#allocation8 + $0x128] sm:$0xff]
        %v2284 = vld [vmem:[#allocation8 + $0x130] sm:$0xff]
        %v2285 = vld [vmem:[#allocation8 + $0x138] sm:$0xff]
        %v2286 = vld [vmem:[#allocation8 + $0x140] sm:$0xff]
        %v2287 = vld [vmem:[#allocation8 + $0x148] sm:$0xff]
        %v2288 = vld [vmem:[#allocation8 + $0x150] sm:$0xff]
        %v2289 = vld [vmem:[#allocation8 + $0x158] sm:$0xff]
        %v2290 = vld [vmem:[#allocation8 + $0x160] sm:$0xff]
        %v2291 = vld [vmem:[#allocation8 + $0x168] sm:$0xff]
        %v2292 = vld [vmem:[#allocation8 + $0x170] sm:$0xff]
        %v2293 = vld [vmem:[#allocation8 + $0x178] sm:$0xff]
        %v2294 = vld [vmem:[#allocation8 + $0x180] sm:$0xff]
        %v2295 = vld [vmem:[#allocation8 + $0x188] sm:$0xff]
        %v2296 = vld [vmem:[#allocation8 + $0x190] sm:$0xff]
        %v2297 = vld [vmem:[#allocation8 + $0x198] sm:$0xff]
        %v2298 = vld [vmem:[#allocation8 + $0x1a0] sm:$0xff]
        %v2299 = vld [vmem:[#allocation8 + $0x1a8] sm:$0xff]
        %v2300 = vld [vmem:[#allocation8 + $0x1b0] sm:$0xff]
        %v2301 = vld [vmem:[#allocation8 + $0x1b8] sm:$0xff]
        %v2302 = vld [vmem:[#allocation8 + $0x1c0] sm:$0xff]
        %v2303 = vld [vmem:[#allocation8 + $0x1c8] sm:$0xff]
        %v2304 = vld [vmem:[#allocation8 + $0x1d0] sm:$0xff]
        %v2305 = vld [vmem:[#allocation8 + $0x1d8] sm:$0xff]
        %v2306 = vld [vmem:[#allocation8 + $0x1e0] sm:$0xff]
        %v2307 = vld [vmem:[#allocation8 + $0x1e8] sm:$0xff]
        %v2308 = vld [vmem:[#allocation8 + $0x1f0] sm:$0xff]
        %v2309 = vld [vmem:[#allocation8 + $0x1f8] sm:$0xff]
        %v2310 = vld [vmem:[%s8] sm:$0xf]
        %v2312 = vlaneseq
        %v2313 = vshrl.u32 %v2312, 7
        %v2314 = vsub.s32 0, %v2313
        %v2315 = vrot.slane %v2310, %v2314
        %v2316 = vlaneseq
        %v2317 = vshrl.u32 %v2316, 7
        %v2318 = vsub.s32 1, %v2317
        %v2319 = vrot.slane %v2310, %v2318
        %v2320 = vlaneseq
        %v2321 = vshrl.u32 %v2320, 7
        %v2322 = vsub.s32 2, %v2321
        %v2323 = vrot.slane %v2310, %v2322
        %v2324 = vlaneseq
        %v2325 = vshrl.u32 %v2324, 7
        %v2326 = vsub.s32 3, %v2325
        %v2327 = vrot.slane %v2310, %v2326
        %2332 = vmatprep.subr.mxu0 %v2247
        %2333 = vmatpush1.msra.mxu0 %v2246
        %2334 = vmatprep.subr.mxu0 %v2251
        %2335 = vmatpush1.msra.mxu0 %v2250
        %2336 = vmatprep.subr.mxu0 %v2255
        %2337 = vmatpush1.msra.mxu0 %v2254
        %2338 = vmatprep.subr.mxu0 %v2259
        %2339 = vmatpush1.msra.mxu0 %v2258
        %2340 = vmatprep.subr.mxu0 %v2263
        %2341 = vmatpush1.msra.mxu0 %v2262
        %2342 = vmatprep.subr.mxu0 %v2267
        %2343 = vmatpush1.msra.mxu0 %v2266
        %2344 = vmatprep.subr.mxu0 %v2271
        %2345 = vmatpush1.msra.mxu0 %v2270
        %2346 = vmatprep.subr.mxu0 %v2275
        %2347 = vmatpush1.msra.mxu0 %v2274
        %2348 = vmatprep.subr.mxu0 %v2279
        %2349 = vmatpush1.msra.mxu0 %v2278
        %2350 = vmatprep.subr.mxu0 %v2283
        %2351 = vmatpush1.msra.mxu0 %v2282
        %2352 = vmatprep.subr.mxu0 %v2287
        %2353 = vmatpush1.msra.mxu0 %v2286
        %2354 = vmatprep.subr.mxu0 %v2291
        %2355 = vmatpush1.msra.mxu0 %v2290
        %2356 = vmatprep.subr.mxu0 %v2295
        %2357 = vmatpush1.msra.mxu0 %v2294
        %2358 = vmatprep.subr.mxu0 %v2299
        %2359 = vmatpush1.msra.mxu0 %v2298
        %2360 = vmatprep.subr.mxu0 %v2303
        %2361 = vmatpush1.msra.mxu0 %v2302
        %2362 = vmatprep.subr.mxu0 %v2307
        %2363 = vmatpush1.msra.mxu0 %v2306
        %2364 = vmatprep.subr.mxu0 0.0
        %2365 = vmatpush1.msra.mxu0 0.0
        %2366 = vmatprep.subr.mxu0 0.0
        %2367 = vmatpush1.msra.mxu0 0.0
        %2368 = vmatprep.subr.mxu0 0.0
        %2369 = vmatpush1.msra.mxu0 0.0
        %2370 = vmatprep.subr.mxu0 0.0
        %2371 = vmatpush1.msra.mxu0 0.0
        %2372 = vmatprep.subr.mxu0 0.0
        %2373 = vmatpush1.msra.mxu0 0.0
        %2374 = vmatprep.subr.mxu0 0.0
        %2375 = vmatpush1.msra.mxu0 0.0
        %2376 = vmatprep.subr.mxu0 0.0
        %2377 = vmatpush1.msra.mxu0 0.0
        %2378 = vmatprep.subr.mxu0 0.0
        %2379 = vmatpush1.msra.mxu0 0.0
        %2380 = vmatprep.subr.mxu0 0.0
        %2381 = vmatpush1.msra.mxu0 0.0
        %2382 = vmatprep.subr.mxu0 0.0
        %2383 = vmatpush1.msra.mxu0 0.0
        %2384 = vmatprep.subr.mxu0 0.0
        %2385 = vmatpush1.msra.mxu0 0.0
        %2386 = vmatprep.subr.mxu0 0.0
        %2387 = vmatpush1.msra.mxu0 0.0
        %2388 = vmatprep.subr.mxu0 0.0
        %2389 = vmatpush1.msra.mxu0 0.0
        %2390 = vmatprep.subr.mxu0 0.0
        %2391 = vmatpush1.msra.mxu0 0.0
        %2392 = vmatprep.subr.mxu0 0.0
        %2393 = vmatpush1.msra.mxu0 0.0
        %2394 = vmatprep.subr.mxu0 0.0
        %2395 = vmatpush1.msra.mxu0 0.0
        %2396 = vmatprep.mubr.f32.mxu0 0.0
        %2397 = vmatmul.mubr.f32.gmra.mrb[0].mxu0 %v2244
        %v2398 = vpop.f32.mrb[0].mxu0
        %v2399 = vadd.f32 %v2315, %v2398
        %v2400 = vpop.f32.mrb[0].mxu0
        %v2401 = vadd.f32 %v2319, %v2400
        %2402 = vmatprep.mubr.f32.mxu0 0.0
        %2403 = vmatmul.mubr.f32.gmra.mrb[0].mxu0 %v2245
        %v2404 = vpop.f32.mrb[0].mxu0
        %v2405 = vadd.f32 %v2315, %v2404
        %v2406 = vpop.f32.mrb[0].mxu0
        %v2407 = vadd.f32 %v2319, %v2406
        %2408 = vdwg.mxu0
        %2409 = vmatprep.subr.mxu0 %v2249
        %2410 = vmatpush1.msra.mxu0 %v2248
        %2411 = vmatprep.subr.mxu0 %v2253
        %2412 = vmatpush1.msra.mxu0 %v2252
        %2413 = vmatprep.subr.mxu0 %v2257
        %2414 = vmatpush1.msra.mxu0 %v2256
        %2415 = vmatprep.subr.mxu0 %v2261
        %2416 = vmatpush1.msra.mxu0 %v2260
        %2417 = vmatprep.subr.mxu0 %v2265
        %2418 = vmatpush1.msra.mxu0 %v2264
        %2419 = vmatprep.subr.mxu0 %v2269
        %2420 = vmatpush1.msra.mxu0 %v2268
        %2421 = vmatprep.subr.mxu0 %v2273
        %2422 = vmatpush1.msra.mxu0 %v2272
        %2423 = vmatprep.subr.mxu0 %v2277
        %2424 = vmatpush1.msra.mxu0 %v2276
        %2425 = vmatprep.subr.mxu0 %v2281
        %2426 = vmatpush1.msra.mxu0 %v2280
        %2427 = vmatprep.subr.mxu0 %v2285
        %2428 = vmatpush1.msra.mxu0 %v2284
        %2429 = vmatprep.subr.mxu0 %v2289
        %2430 = vmatpush1.msra.mxu0 %v2288
        %2431 = vmatprep.subr.mxu0 %v2293
        %2432 = vmatpush1.msra.mxu0 %v2292
        %2433 = vmatprep.subr.mxu0 %v2297
        %2434 = vmatpush1.msra.mxu0 %v2296
        %2435 = vmatprep.subr.mxu0 %v2301
        %2436 = vmatpush1.msra.mxu0 %v2300
        %2437 = vmatprep.subr.mxu0 %v2305
        %2438 = vmatpush1.msra.mxu0 %v2304
        %2439 = vmatprep.subr.mxu0 %v2309
        %2440 = vmatpush1.msra.mxu0 %v2308
        %2441 = vmatprep.subr.mxu0 0.0
        %2442 = vmatpush1.msra.mxu0 0.0
        %2443 = vmatprep.subr.mxu0 0.0
        %2444 = vmatpush1.msra.mxu0 0.0
        %2445 = vmatprep.subr.mxu0 0.0
        %2446 = vmatpush1.msra.mxu0 0.0
        %2447 = vmatprep.subr.mxu0 0.0
        %2448 = vmatpush1.msra.mxu0 0.0
        %2449 = vmatprep.subr.mxu0 0.0
        %2450 = vmatpush1.msra.mxu0 0.0
        %2451 = vmatprep.subr.mxu0 0.0
        %2452 = vmatpush1.msra.mxu0 0.0
        %2453 = vmatprep.subr.mxu0 0.0
        %2454 = vmatpush1.msra.mxu0 0.0
        %2455 = vmatprep.subr.mxu0 0.0
        %2456 = vmatpush1.msra.mxu0 0.0
        %2457 = vmatprep.subr.mxu0 0.0
        %2458 = vmatpush1.msra.mxu0 0.0
        %2459 = vmatprep.subr.mxu0 0.0
        %2460 = vmatpush1.msra.mxu0 0.0
        %2461 = vmatprep.subr.mxu0 0.0
        %2462 = vmatpush1.msra.mxu0 0.0
        %2463 = vmatprep.subr.mxu0 0.0
        %2464 = vmatpush1.msra.mxu0 0.0
        %2465 = vmatprep.subr.mxu0 0.0
        %2466 = vmatpush1.msra.mxu0 0.0
        %2467 = vmatprep.subr.mxu0 0.0
        %2468 = vmatpush1.msra.mxu0 0.0
        %2469 = vmatprep.subr.mxu0 0.0
        %2470 = vmatpush1.msra.mxu0 0.0
        %2471 = vmatprep.subr.mxu0 0.0
        %2472 = vmatpush1.msra.mxu0 0.0
        %2473 = vmatprep.mubr.f32.mxu0 0.0
        %2474 = vmatmul.mubr.f32.gmra.mrb[0].mxu0 %v2244
        %v2475 = vpop.f32.mrb[0].mxu0
        %v2476 = vadd.f32 %v2323, %v2475
        %v2477 = vpop.f32.mrb[0].mxu0
        %v2478 = vadd.f32 %v2327, %v2477
        %2479 = vmatprep.mubr.f32.mxu0 0.0
        %2480 = vmatmul.mubr.f32.gmra.mrb[0].mxu0 %v2245
        %v2481 = vpop.f32.mrb[0].mxu0
        %v2482 = vadd.f32 %v2323, %v2481
        %v2483 = vpop.f32.mrb[0].mxu0
        %v2484 = vadd.f32 %v2327, %v2483
        %2485 = vdwg.mxu0
        %v2486 = vmul.f32 %v2399, 0.5
        %v2487 = vmul.f32 %v2401, 0.5
        %v2488 = vmul.f32 %v2476, 0.5
        %v2489 = vmul.f32 %v2478, 0.5
        %v2490 = vmul.f32 %v2405, 0.5
        %v2491 = vmul.f32 %v2407, 0.5
        %v2492 = vmul.f32 %v2482, 0.5
        %v2493 = vmul.f32 %v2484, 0.5
        %v2494 = vmul.f32 %v2399, 0.70710677
        %v2495 = vmul.f32 %v2401, 0.70710677
        %v2496 = vmul.f32 %v2476, 0.70710677
        %v2497 = vmul.f32 %v2478, 0.70710677
        %v2498 = vmul.f32 %v2405, 0.70710677
        %v2499 = vmul.f32 %v2407, 0.70710677
        %v2500 = vmul.f32 %v2482, 0.70710677
        %v2501 = vmul.f32 %v2484, 0.70710677
        %vm2502 = vcmp.ge.f32.partialorder %v2494, 0.0
        %vm2503 = vcmp.ge.f32.partialorder %v2495, 0.0
        %vm2504 = vcmp.ge.f32.partialorder %v2496, 0.0
        %vm2505 = vcmp.ge.f32.partialorder %v2497, 0.0
        %vm2506 = vcmp.ge.f32.partialorder %v2498, 0.0
        %vm2507 = vcmp.ge.f32.partialorder %v2499, 0.0
        %vm2508 = vcmp.ge.f32.partialorder %v2500, 0.0
        %vm2509 = vcmp.ge.f32.partialorder %v2501, 0.0
        %v2510 = vsel %vm2502, 1.0, -1.0
        %v2511 = vsel %vm2503, 1.0, -1.0
        %v2512 = vsel %vm2504, 1.0, -1.0
        %v2513 = vsel %vm2505, 1.0, -1.0
        %v2514 = vsel %vm2506, 1.0, -1.0
        %v2515 = vsel %vm2507, 1.0, -1.0
        %v2516 = vsel %vm2508, 1.0, -1.0
        %v2517 = vsel %vm2509, 1.0, -1.0
        %v2518 = vand.u32 2147483647, %v2494
        %v2519 = vand.u32 2147483647, %v2495
        %v2520 = vand.u32 2147483647, %v2496
        %v2521 = vand.u32 2147483647, %v2497
        %v2522 = vand.u32 2147483647, %v2498
        %v2523 = vand.u32 2147483647, %v2499
        %v2524 = vand.u32 2147483647, %v2500
        %v2525 = vand.u32 2147483647, %v2501
        %v2526 = vmul.f32 %v2518, 0.3275911
        %v2527 = vmul.f32 %v2519, 0.3275911
        %v2528 = vmul.f32 %v2520, 0.3275911
        %v2529 = vmul.f32 %v2521, 0.3275911
        %v2530 = vmul.f32 %v2522, 0.3275911
        %v2531 = vmul.f32 %v2523, 0.3275911
        %v2532 = vmul.f32 %v2524, 0.3275911
        %v2533 = vmul.f32 %v2525, 0.3275911
        %v2534 = vadd.f32 %v2526, 1.0
        %v2535 = vadd.f32 %v2527, 1.0
        %v2536 = vadd.f32 %v2528, 1.0
        %v2537 = vadd.f32 %v2529, 1.0
        %v2538 = vadd.f32 %v2530, 1.0
        %v2539 = vadd.f32 %v2531, 1.0
        %v2540 = vadd.f32 %v2532, 1.0
        %v2541 = vadd.f32 %v2533, 1.0
        %v2542 = vrcp.pop %v2534
        %v2543 = vmul.f32 1.0, %v2542
        %v2544 = vrcp.pop %v2535
        %v2545 = vmul.f32 1.0, %v2544
        %v2546 = vrcp.pop %v2536
        %v2547 = vmul.f32 1.0, %v2546
        %v2548 = vrcp.pop %v2537
        %v2549 = vmul.f32 1.0, %v2548
        %v2550 = vrcp.pop %v2538
        %v2551 = vmul.f32 1.0, %v2550
        %v2552 = vrcp.pop %v2539
        %v2553 = vmul.f32 1.0, %v2552
        %v2554 = vrcp.pop %v2540
        %v2555 = vmul.f32 1.0, %v2554
        %v2556 = vrcp.pop %v2541
        %v2557 = vmul.f32 1.0, %v2556
        %v2558 = vmul.f32 %v2543, 1.0614054
        %v2559 = vmul.f32 %v2545, 1.0614054
        %v2560 = vmul.f32 %v2547, 1.0614054
        %v2561 = vmul.f32 %v2549, 1.0614054
        %v2562 = vmul.f32 %v2551, 1.0614054
        %v2563 = vmul.f32 %v2553, 1.0614054
        %v2564 = vmul.f32 %v2555, 1.0614054
        %v2565 = vmul.f32 %v2557, 1.0614054
        %v2566 = vadd.f32 %v2558, -1.4531521
        %v2567 = vadd.f32 %v2559, -1.4531521
        %v2568 = vadd.f32 %v2560, -1.4531521
        %v2569 = vadd.f32 %v2561, -1.4531521
        %v2570 = vadd.f32 %v2562, -1.4531521
        %v2571 = vadd.f32 %v2563, -1.4531521
        %v2572 = vadd.f32 %v2564, -1.4531521
        %v2573 = vadd.f32 %v2565, -1.4531521
        %v2574 = vmul.f32 %v2543, %v2566
        %v2575 = vmul.f32 %v2545, %v2567
        %v2576 = vmul.f32 %v2547, %v2568
        %v2577 = vmul.f32 %v2549, %v2569
        %v2578 = vmul.f32 %v2551, %v2570
        %v2579 = vmul.f32 %v2553, %v2571
        %v2580 = vmul.f32 %v2555, %v2572
        %v2581 = vmul.f32 %v2557, %v2573
        %v2582 = vadd.f32 %v2574, 1.4214138
        %v2583 = vadd.f32 %v2575, 1.4214138
        %v2584 = vadd.f32 %v2576, 1.4214138
        %v2585 = vadd.f32 %v2577, 1.4214138
        %v2586 = vadd.f32 %v2578, 1.4214138
        %v2587 = vadd.f32 %v2579, 1.4214138
        %v2588 = vadd.f32 %v2580, 1.4214138
        %v2589 = vadd.f32 %v2581, 1.4214138
        %v2590 = vmul.f32 %v2543, %v2582
        %v2591 = vmul.f32 %v2545, %v2583
        %v2592 = vmul.f32 %v2547, %v2584
        %v2593 = vmul.f32 %v2549, %v2585
        %v2594 = vmul.f32 %v2551, %v2586
        %v2595 = vmul.f32 %v2553, %v2587
        %v2596 = vmul.f32 %v2555, %v2588
        %v2597 = vmul.f32 %v2557, %v2589
        %v2598 = vadd.f32 %v2590, -0.28449672
        %v2599 = vadd.f32 %v2591, -0.28449672
        %v2600 = vadd.f32 %v2592, -0.28449672
        %v2601 = vadd.f32 %v2593, -0.28449672
        %v2602 = vadd.f32 %v2594, -0.28449672
        %v2603 = vadd.f32 %v2595, -0.28449672
        %v2604 = vadd.f32 %v2596, -0.28449672
        %v2605 = vadd.f32 %v2597, -0.28449672
        %v2606 = vmul.f32 %v2543, %v2598
        %v2607 = vmul.f32 %v2545, %v2599
        %v2608 = vmul.f32 %v2547, %v2600
        %v2609 = vmul.f32 %v2549, %v2601
        %v2610 = vmul.f32 %v2551, %v2602
        %v2611 = vmul.f32 %v2553, %v2603
        %v2612 = vmul.f32 %v2555, %v2604
        %v2613 = vmul.f32 %v2557, %v2605
        %v2614 = vadd.f32 %v2606, 0.2548296
        %v2615 = vadd.f32 %v2607, 0.2548296
        %v2616 = vadd.f32 %v2608, 0.2548296
        %v2617 = vadd.f32 %v2609, 0.2548296
        %v2618 = vadd.f32 %v2610, 0.2548296
        %v2619 = vadd.f32 %v2611, 0.2548296
        %v2620 = vadd.f32 %v2612, 0.2548296
        %v2621 = vadd.f32 %v2613, 0.2548296
        %v2622 = vmul.f32 %v2543, %v2614
        %v2623 = vmul.f32 %v2545, %v2615
        %v2624 = vmul.f32 %v2547, %v2616
        %v2625 = vmul.f32 %v2549, %v2617
        %v2626 = vmul.f32 %v2551, %v2618
        %v2627 = vmul.f32 %v2553, %v2619
        %v2628 = vmul.f32 %v2555, %v2620
        %v2629 = vmul.f32 %v2557, %v2621
        %v2630 = vsub.f32 0.0, %v2518
        %v2631 = vsub.f32 0.0, %v2519
        %v2632 = vsub.f32 0.0, %v2520
        %v2633 = vsub.f32 0.0, %v2521
        %v2634 = vsub.f32 0.0, %v2522
        %v2635 = vsub.f32 0.0, %v2523
        %v2636 = vsub.f32 0.0, %v2524
        %v2637 = vsub.f32 0.0, %v2525
        %v2638 = vmul.f32 %v2630, %v2518
        %v2639 = vmul.f32 %v2631, %v2519
        %v2640 = vmul.f32 %v2632, %v2520
        %v2641 = vmul.f32 %v2633, %v2521
        %v2642 = vmul.f32 %v2634, %v2522
        %v2643 = vmul.f32 %v2635, %v2523
        %v2644 = vmul.f32 %v2636, %v2524
        %v2645 = vmul.f32 %v2637, %v2525
        %v2646 = vmul.f32 %v2638, 1.442695
        %v2647 = vpow.pop %v2646
        %v2648 = vmul.f32 %v2639, 1.442695
        %v2649 = vpow.pop %v2648
        %v2650 = vmul.f32 %v2640, 1.442695
        %v2651 = vpow.pop %v2650
        %v2652 = vmul.f32 %v2641, 1.442695
        %v2653 = vpow.pop %v2652
        %v2654 = vmul.f32 %v2642, 1.442695
        %v2655 = vpow.pop %v2654
        %v2656 = vmul.f32 %v2643, 1.442695
        %v2657 = vpow.pop %v2656
        %v2658 = vmul.f32 %v2644, 1.442695
        %v2659 = vpow.pop %v2658
        %v2660 = vmul.f32 %v2645, 1.442695
        %v2661 = vpow.pop %v2660
        %v2662 = vmul.f32 %v2622, %v2647
        %v2663 = vmul.f32 %v2623, %v2649
        %v2664 = vmul.f32 %v2624, %v2651
        %v2665 = vmul.f32 %v2625, %v2653
        %v2666 = vmul.f32 %v2626, %v2655
        %v2667 = vmul.f32 %v2627, %v2657
        %v2668 = vmul.f32 %v2628, %v2659
        %v2669 = vmul.f32 %v2629, %v2661
        %v2670 = vsub.f32 1.0, %v2662
        %v2671 = vsub.f32 1.0, %v2663
        %v2672 = vsub.f32 1.0, %v2664
        %v2673 = vsub.f32 1.0, %v2665
        %v2674 = vsub.f32 1.0, %v2666
        %v2675 = vsub.f32 1.0, %v2667
        %v2676 = vsub.f32 1.0, %v2668
        %v2677 = vsub.f32 1.0, %v2669
        %v2678 = vmul.f32 %v2510, %v2670
        %v2679 = vmul.f32 %v2511, %v2671
        %v2680 = vmul.f32 %v2512, %v2672
        %v2681 = vmul.f32 %v2513, %v2673
        %v2682 = vmul.f32 %v2514, %v2674
        %v2683 = vmul.f32 %v2515, %v2675
        %v2684 = vmul.f32 %v2516, %v2676
        %v2685 = vmul.f32 %v2517, %v2677
        %v2686 = vadd.f32 %v2678, 1.0
        %v2687 = vadd.f32 %v2679, 1.0
        %v2688 = vadd.f32 %v2680, 1.0
        %v2689 = vadd.f32 %v2681, 1.0
        %v2690 = vadd.f32 %v2682, 1.0
        %v2691 = vadd.f32 %v2683, 1.0
        %v2692 = vadd.f32 %v2684, 1.0
        %v2693 = vadd.f32 %v2685, 1.0
        %v2694 = vmul.f32 %v2486, %v2686
        %v2695 = vmul.f32 %v2487, %v2687
        %v2696 = vmul.f32 %v2488, %v2688
        %v2697 = vmul.f32 %v2489, %v2689
        %v2698 = vmul.f32 %v2490, %v2690
        %v2699 = vmul.f32 %v2491, %v2691
        %v2700 = vmul.f32 %v2492, %v2692
        %v2701 = vmul.f32 %v2493, %v2693
        %v2702 = vld [vmem:[#allocation10] sm:$0xff]
        %v2703 = vld [vmem:[#allocation10 + $0x8] sm:$0xff]
        %v2704 = vld [vmem:[#allocation10 + $0x10] sm:$0xff]
        %v2705 = vld [vmem:[#allocation10 + $0x18] sm:$0xff]
        %v2706 = vld [vmem:[#allocation10 + $0x20] sm:$0xff]
        %v2707 = vld [vmem:[#allocation10 + $0x28] sm:$0xff]
        %v2708 = vld [vmem:[#allocation10 + $0x30] sm:$0xff]
        %v2709 = vld [vmem:[#allocation10 + $0x38] sm:$0xff]
        %v2710 = vld [vmem:[#allocation10 + $0x40] sm:$0xff]
        %v2711 = vld [vmem:[#allocation10 + $0x48] sm:$0xff]
        %v2712 = vld [vmem:[#allocation10 + $0x50] sm:$0xff]
        %v2713 = vld [vmem:[#allocation10 + $0x58] sm:$0xff]
        %v2714 = vld [vmem:[#allocation10 + $0x60] sm:$0xff]
        %v2715 = vld [vmem:[#allocation10 + $0x68] sm:$0xff]
        %v2716 = vld [vmem:[#allocation10 + $0x70] sm:$0xff]
        %v2717 = vld [vmem:[#allocation10 + $0x78] sm:$0xff]
        %v2718 = vld [vmem:[#allocation10 + $0x80] sm:$0xff]
        %v2719 = vld [vmem:[#allocation10 + $0x88] sm:$0xff]
        %v2720 = vld [vmem:[#allocation10 + $0x90] sm:$0xff]
        %v2721 = vld [vmem:[#allocation10 + $0x98] sm:$0xff]
        %v2722 = vld [vmem:[#allocation10 + $0xa0] sm:$0xff]
        %v2723 = vld [vmem:[#allocation10 + $0xa8] sm:$0xff]
        %v2724 = vld [vmem:[#allocation10 + $0xb0] sm:$0xff]
        %v2725 = vld [vmem:[#allocation10 + $0xb8] sm:$0xff]
        %v2726 = vld [vmem:[#allocation10 + $0xc0] sm:$0xff]
        %v2727 = vld [vmem:[#allocation10 + $0xc8] sm:$0xff]
        %v2728 = vld [vmem:[#allocation10 + $0xd0] sm:$0xff]
        %v2729 = vld [vmem:[#allocation10 + $0xd8] sm:$0xff]
        %v2730 = vld [vmem:[#allocation10 + $0xe0] sm:$0xff]
        %v2731 = vld [vmem:[#allocation10 + $0xe8] sm:$0xff]
        %v2732 = vld [vmem:[#allocation10 + $0xf0] sm:$0xff]
        %v2733 = vld [vmem:[#allocation10 + $0xf8] sm:$0xff]
        %v2734 = vld [vmem:[#allocation10 + $0x100] sm:$0xff]
        %v2735 = vld [vmem:[#allocation10 + $0x108] sm:$0xff]
        %v2736 = vld [vmem:[#allocation10 + $0x110] sm:$0xff]
        %v2737 = vld [vmem:[#allocation10 + $0x118] sm:$0xff]
        %v2738 = vld [vmem:[#allocation10 + $0x120] sm:$0xff]
        %v2739 = vld [vmem:[#allocation10 + $0x128] sm:$0xff]
        %v2740 = vld [vmem:[#allocation10 + $0x130] sm:$0xff]
        %v2741 = vld [vmem:[#allocation10 + $0x138] sm:$0xff]
        %v2742 = vld [vmem:[#allocation10 + $0x140] sm:$0xff]
        %v2743 = vld [vmem:[#allocation10 + $0x148] sm:$0xff]
        %v2744 = vld [vmem:[#allocation10 + $0x150] sm:$0xff]
        %v2745 = vld [vmem:[#allocation10 + $0x158] sm:$0xff]
        %v2746 = vld [vmem:[#allocation10 + $0x160] sm:$0xff]
        %v2747 = vld [vmem:[#allocation10 + $0x168] sm:$0xff]
        %v2748 = vld [vmem:[#allocation10 + $0x170] sm:$0xff]
        %v2749 = vld [vmem:[#allocation10 + $0x178] sm:$0xff]
        %v2750 = vld [vmem:[#allocation10 + $0x180] sm:$0xff]
        %v2751 = vld [vmem:[#allocation10 + $0x188] sm:$0xff]
        %v2752 = vld [vmem:[#allocation10 + $0x190] sm:$0xff]
        %v2753 = vld [vmem:[#allocation10 + $0x198] sm:$0xff]
        %v2754 = vld [vmem:[#allocation10 + $0x1a0] sm:$0xff]
        %v2755 = vld [vmem:[#allocation10 + $0x1a8] sm:$0xff]
        %v2756 = vld [vmem:[#allocation10 + $0x1b0] sm:$0xff]
        %v2757 = vld [vmem:[#allocation10 + $0x1b8] sm:$0xff]
        %v2758 = vld [vmem:[#allocation10 + $0x1c0] sm:$0xff]
        %v2759 = vld [vmem:[#allocation10 + $0x1c8] sm:$0xff]
        %v2760 = vld [vmem:[#allocation10 + $0x1d0] sm:$0xff]
        %v2761 = vld [vmem:[#allocation10 + $0x1d8] sm:$0xff]
        %v2762 = vld [vmem:[#allocation10 + $0x1e0] sm:$0xff]
        %v2763 = vld [vmem:[#allocation10 + $0x1e8] sm:$0xff]
        %v2764 = vld [vmem:[#allocation10 + $0x1f0] sm:$0xff]
        %v2765 = vld [vmem:[#allocation10 + $0x1f8] sm:$0xff]
        %v2766 = vld [vmem:[%s10] sm:$0x1]
        %v2768 = vlaneseq
        %v2769 = vshrl.u32 %v2768, 7
        %v2770 = vsub.s32 0, %v2769
        %v2771 = vrot.slane %v2766, %v2770
        %2773 = vmatprep.subr.mxu0 0.0
        %2774 = vmatpush1.msra.mxu0 %v2702
        %2775 = vmatprep.subr.mxu0 0.0
        %2776 = vmatpush1.msra.mxu0 %v2703
        %2777 = vmatprep.subr.mxu0 0.0
        %2778 = vmatpush1.msra.mxu0 %v2704
        %2779 = vmatprep.subr.mxu0 0.0
        %2780 = vmatpush1.msra.mxu0 %v2705
        %2781 = vmatprep.subr.mxu0 0.0
        %2782 = vmatpush1.msra.mxu0 %v2706
        %2783 = vmatprep.subr.mxu0 0.0
        %2784 = vmatpush1.msra.mxu0 %v2707
        %2785 = vmatprep.subr.mxu0 0.0
        %2786 = vmatpush1.msra.mxu0 %v2708
        %2787 = vmatprep.subr.mxu0 0.0
        %2788 = vmatpush1.msra.mxu0 %v2709
        %2789 = vmatprep.subr.mxu0 0.0
        %2790 = vmatpush1.msra.mxu0 %v2710
        %2791 = vmatprep.subr.mxu0 0.0
        %2792 = vmatpush1.msra.mxu0 %v2711
        %2793 = vmatprep.subr.mxu0 0.0
        %2794 = vmatpush1.msra.mxu0 %v2712
        %2795 = vmatprep.subr.mxu0 0.0
        %2796 = vmatpush1.msra.mxu0 %v2713
        %2797 = vmatprep.subr.mxu0 0.0
        %2798 = vmatpush1.msra.mxu0 %v2714
        %2799 = vmatprep.subr.mxu0 0.0
        %2800 = vmatpush1.msra.mxu0 %v2715
        %2801 = vmatprep.subr.mxu0 0.0
        %2802 = vmatpush1.msra.mxu0 %v2716
        %2803 = vmatprep.subr.mxu0 0.0
        %2804 = vmatpush1.msra.mxu0 %v2717
        %2805 = vmatprep.subr.mxu0 0.0
        %2806 = vmatpush1.msra.mxu0 %v2718
        %2807 = vmatprep.subr.mxu0 0.0
        %2808 = vmatpush1.msra.mxu0 %v2719
        %2809 = vmatprep.subr.mxu0 0.0
        %2810 = vmatpush1.msra.mxu0 %v2720
        %2811 = vmatprep.subr.mxu0 0.0
        %2812 = vmatpush1.msra.mxu0 %v2721
        %2813 = vmatprep.subr.mxu0 0.0
        %2814 = vmatpush1.msra.mxu0 %v2722
        %2815 = vmatprep.subr.mxu0 0.0
        %2816 = vmatpush1.msra.mxu0 %v2723
        %2817 = vmatprep.subr.mxu0 0.0
        %2818 = vmatpush1.msra.mxu0 %v2724
        %2819 = vmatprep.subr.mxu0 0.0
        %2820 = vmatpush1.msra.mxu0 %v2725
        %2821 = vmatprep.subr.mxu0 0.0
        %2822 = vmatpush1.msra.mxu0 %v2726
        %2823 = vmatprep.subr.mxu0 0.0
        %2824 = vmatpush1.msra.mxu0 %v2727
        %2825 = vmatprep.subr.mxu0 0.0
        %2826 = vmatpush1.msra.mxu0 %v2728
        %2827 = vmatprep.subr.mxu0 0.0
        %2828 = vmatpush1.msra.mxu0 %v2729
        %2829 = vmatprep.subr.mxu0 0.0
        %2830 = vmatpush1.msra.mxu0 %v2730
        %2831 = vmatprep.subr.mxu0 0.0
        %2832 = vmatpush1.msra.mxu0 %v2731
        %2833 = vmatprep.subr.mxu0 0.0
        %2834 = vmatpush1.msra.mxu0 %v2732
        %2835 = vmatprep.subr.mxu0 0.0
        %2836 = vmatpush1.msra.mxu0 %v2733
        %2837 = vmatprep.mubr.f32.mxu0 %v2695
        %2838 = vmatmul.mubr.f32.gmra.mrb[0].mxu0 %v2694
        %v2839 = vpop.f32.mrb[0].mxu0
        %v2840 = vadd.f32 %v2771, %v2839
        %v2841 = vpop.f32.mrb[0].mxu0
        %2842 = vmatprep.mubr.f32.mxu0 %v2699
        %2843 = vmatmul.mubr.f32.gmra.mrb[0].mxu0 %v2698
        %v2844 = vpop.f32.mrb[0].mxu0
        %v2845 = vadd.f32 %v2771, %v2844
        %v2846 = vpop.f32.mrb[0].mxu0
        %2847 = vdwg.mxu0
        %2848 = vmatprep.subr.mxu0 0.0
        %2849 = vmatpush1.msra.mxu0 %v2734
        %2850 = vmatprep.subr.mxu0 0.0
        %2851 = vmatpush1.msra.mxu0 %v2735
        %2852 = vmatprep.subr.mxu0 0.0
        %2853 = vmatpush1.msra.mxu0 %v2736
        %2854 = vmatprep.subr.mxu0 0.0
        %2855 = vmatpush1.msra.mxu0 %v2737
        %2856 = vmatprep.subr.mxu0 0.0
        %2857 = vmatpush1.msra.mxu0 %v2738
        %2858 = vmatprep.subr.mxu0 0.0
        %2859 = vmatpush1.msra.mxu0 %v2739
        %2860 = vmatprep.subr.mxu0 0.0
        %2861 = vmatpush1.msra.mxu0 %v2740
        %2862 = vmatprep.subr.mxu0 0.0
        %2863 = vmatpush1.msra.mxu0 %v2741
        %2864 = vmatprep.subr.mxu0 0.0
        %2865 = vmatpush1.msra.mxu0 %v2742
        %2866 = vmatprep.subr.mxu0 0.0
        %2867 = vmatpush1.msra.mxu0 %v2743
        %2868 = vmatprep.subr.mxu0 0.0
        %2869 = vmatpush1.msra.mxu0 %v2744
        %2870 = vmatprep.subr.mxu0 0.0
        %2871 = vmatpush1.msra.mxu0 %v2745
        %2872 = vmatprep.subr.mxu0 0.0
        %2873 = vmatpush1.msra.mxu0 %v2746
        %2874 = vmatprep.subr.mxu0 0.0
        %2875 = vmatpush1.msra.mxu0 %v2747
        %2876 = vmatprep.subr.mxu0 0.0
        %2877 = vmatpush1.msra.mxu0 %v2748
        %2878 = vmatprep.subr.mxu0 0.0
        %2879 = vmatpush1.msra.mxu0 %v2749
        %2880 = vmatprep.subr.mxu0 0.0
        %2881 = vmatpush1.msra.mxu0 %v2750
        %2882 = vmatprep.subr.mxu0 0.0
        %2883 = vmatpush1.msra.mxu0 %v2751
        %2884 = vmatprep.subr.mxu0 0.0
        %2885 = vmatpush1.msra.mxu0 %v2752
        %2886 = vmatprep.subr.mxu0 0.0
        %2887 = vmatpush1.msra.mxu0 %v2753
        %2888 = vmatprep.subr.mxu0 0.0
        %2889 = vmatpush1.msra.mxu0 %v2754
        %2890 = vmatprep.subr.mxu0 0.0
        %2891 = vmatpush1.msra.mxu0 %v2755
        %2892 = vmatprep.subr.mxu0 0.0
        %2893 = vmatpush1.msra.mxu0 %v2756
        %2894 = vmatprep.subr.mxu0 0.0
        %2895 = vmatpush1.msra.mxu0 %v2757
        %2896 = vmatprep.subr.mxu0 0.0
        %2897 = vmatpush1.msra.mxu0 %v2758
        %2898 = vmatprep.subr.mxu0 0.0
        %2899 = vmatpush1.msra.mxu0 %v2759
        %2900 = vmatprep.subr.mxu0 0.0
        %2901 = vmatpush1.msra.mxu0 %v2760
        %2902 = vmatprep.subr.mxu0 0.0
        %2903 = vmatpush1.msra.mxu0 %v2761
        %2904 = vmatprep.subr.mxu0 0.0
        %2905 = vmatpush1.msra.mxu0 %v2762
        %2906 = vmatprep.subr.mxu0 0.0
        %2907 = vmatpush1.msra.mxu0 %v2763
        %2908 = vmatprep.subr.mxu0 0.0
        %2909 = vmatpush1.msra.mxu0 %v2764
        %2910 = vmatprep.subr.mxu0 0.0
        %2911 = vmatpush1.msra.mxu0 %v2765
        %2912 = vmatprep.mubr.f32.mxu0 %v2697
        %2913 = vmatmul.mubr.f32.gmra.mrb[0].mxu0 %v2696
        %v2914 = vpop.f32.mrb[0].mxu0
        %v2915 = vadd.f32 %v2840, %v2914
        %v2916 = vpop.f32.mrb[0].mxu0
        %2917 = vmatprep.mubr.f32.mxu0 %v2701
        %2918 = vmatmul.mubr.f32.gmra.mrb[0].mxu0 %v2700
        %v2919 = vpop.f32.mrb[0].mxu0
        %v2920 = vadd.f32 %v2845, %v2919
        %v2921 = vpop.f32.mrb[0].mxu0
        %2922 = vdwg.mxu0
        %v2923 = vadd.f32 %v2244, %v2915
        %v2924 = vadd.f32 %v2245, %v2920
        %v2925 = vld [vmem:[%s11] sm:$0x1]
        %v2926 = vld [vmem:[%s12] sm:$0x1]
        %2927 = vadd.xlane.f32.xlu0 %v2923
        %v2928 = vpop.xlane.xlu0 %2927
        %2929 = vadd.xlane.f32.xlu0 %v2924
        %v2930 = vpop.xlane.xlu0 %2929
        %v2931 = vmul.f32 %v2928, %v2211
        %v2932 = vmul.f32 %v2930, %v2211
        %v2933 = vsub.f32 %v2923, %v2931
        %v2934 = vsub.f32 %v2924, %v2932
        %v2935 = vmul.f32 %v2933, %v2933
        %v2936 = vmul.f32 %v2934, %v2934
        %2937 = vadd.xlane.f32.xlu0 %v2935
        %v2938 = vpop.xlane.xlu0 %2937
        %2939 = vadd.xlane.f32.xlu0 %v2936
        %v2940 = vpop.xlane.xlu0 %2939
        %v2941 = vmul.f32 %v2938, %v2211
        %v2942 = vmul.f32 %v2940, %v2211
        %v2943 = vadd.f32 %v2941, 1e-05
        %v2944 = vadd.f32 %v2942, 1e-05
        %v2945 = vrsqrt.pop %v2943
        %v2946 = vrsqrt.pop %v2944
        %v2947 = vmul.f32 %v2933, %v2945
        %v2948 = vmul.f32 %v2934, %v2946
        %v2950 = vlaneseq
        %v2951 = vshrl.u32 %v2950, 7
        %v2952 = vsub.s32 0, %v2951
        %v2953 = vrot.slane %v2925, %v2952
        %v2955 = vmul.f32 %v2947, %v2953
        %v2956 = vmul.f32 %v2948, %v2953
        %v2958 = vlaneseq
        %v2959 = vshrl.u32 %v2958, 7
        %v2960 = vsub.s32 0, %v2959
        %v2961 = vrot.slane %v2926, %v2960
        %v2963 = vadd.f32 %v2955, %v2961
        %v2964 = vadd.f32 %v2956, %v2961
        %2965 = vst [vmem:[%s516] sm:$0xff] %v2963
        %2966 = vst [vmem:[%s516 + $0x8] sm:$0xff] %v2964
        %s2967 = sand.u32 %s318, 1
        %s2968 = scalar_lea.sflag [#allocation4], %s2967
        %s2969 = sand.u32 %s318, 1
        %s2970 = smul.addr %s2969, 16
        %s2971 = scalar_lea.vmem [#allocation11], %s2970
        // Predicated region
        $region93: #{tpu_custom_call.1} parent=71 // pred_check
          %p2972 = pneg %p328
        $region94: #{tpu_custom_call.1} parent=71 // pred_check_branch
          %2974 = sbr.rel (%p2972) target = $region96
        $region95: #{tpu_custom_call.1} parent=71 // pred_region
          %s2975 = smul.u32 2, %s32
          %s2977 = ssub.s32 256, 256
          %2978 = vsyncadd %s2968, %s2977
          %s2979 = smul.addr %s2975, 128
          %s2980 = scalar_lea.hbm %s13, %s2979
          %s2981 = sshll.u32 %s2971, 4
          %s2982 = int_to_ptr.vmem [resolvable:$true] %s2981
          %2987 = dma.vmem_to_hbm [thread:$0]  %s2982, 256, %s2980, %s2968, 128, 128, 8
        $region96: #{tpu_custom_call.1} parent=71 // pred_fallthru
          _
      $region72: #{tpu_custom_call.1} parent=5 // pred_fallthru
        _
      %p2988 = scmp.le.s32.totalorder 2, %s27
      // Predicated region
      $region97: #{tpu_custom_call.1} parent=5 // pred_check
        %p2989 = pneg %p2988
      $region98: #{tpu_custom_call.1} parent=5 // pred_check_branch
        %2991 = sbr.rel (%p2989) target = $region100
      $region99: #{tpu_custom_call.1} parent=5 // pred_region
        %s2992 = ssub.s32 %s27, 2
        // Predicated region
        $region101: #{tpu_custom_call.1} parent=99 // pred_check
          %p2993 = pneg %p334
        $region102: #{tpu_custom_call.1} parent=99 // pred_check_branch
          %2995 = sbr.rel (%p2993) target = $region104
        $region103: #{tpu_custom_call.1} parent=99 // pred_region
          %s2996 = sand.u32 %s319, 1
          %s2997 = scalar_lea.sflag [#allocation4], %s2996
          %s2998 = sand.u32 %s319, 1
          %s2999 = smul.addr %s2998, 16
          %s3000 = scalar_lea.vmem [#allocation11], %s2999
          %3001 = dma.done %s2997, 256
        $region104: #{tpu_custom_call.1} parent=99 // pred_fallthru
          _
      $region100: #{tpu_custom_call.1} parent=5 // pred_fallthru
        _
    $region6: #{tpu_custom_call.1} parent=1 // loop_footer
      %s31 = sadd.s32 1, %s27
    $region7: #{tpu_custom_call.1} parent=1 // loop_footer_branch
      %26 = sbr.rel target = $region3
    $region8: #{tpu_custom_call.1} parent=1 // loop_exit
      _
    %3002 = vsyncpa [#allocation3], 1
    %s3003 = scalar_lea.sflag [#allocation3], 1
    %3004 = vsyncpa %s3003, 1
    %3005 = vsyncpa [#allocation6], 1
    %3006 = vsyncpa [#allocation9], 1
    %3007 = vsyncpa [#allocation4], 1
    %s3008 = scalar_lea.sflag [#allocation4], 1
    %3009 = vsyncpa %s3008, 1

</llo_original>
